<compile_context>
chip_gen: v6e
topology: v6e:2x2x1
jax: 0.10.0
libtpu: 0.0.40
codegen_flags: <defaults>
</compile_context>

<pallas_src>
import functools

import numpy as np
import jax
import jax.numpy as jnp
from jax import lax
from jax.experimental import pallas as pl
from jax.experimental.pallas import tpu as pltpu


# ----------------------------------------------------------------------------
# helpers
# ----------------------------------------------------------------------------
def _layernorm(x, g, b, eps=1e-5):
    mu = jnp.mean(x, axis=-1, keepdims=True)
    var = jnp.mean((x - mu) ** 2, axis=-1, keepdims=True)
    return (x - mu) * lax.rsqrt(var + eps) * g + b


def positional_encoding_table(max_len, d_model):
    """Same math as PositionalEncoding.__init__ (pe buffer, pre-transpose)."""
    position = np.arange(max_len, dtype=np.float32)[:, None]
    div_term = np.exp(
        np.arange(0, d_model, 2, dtype=np.float32) * (-np.log(10000.0) / d_model)
    )
    pe = np.zeros((max_len, d_model), dtype=np.float32)
    pe[:, 0::2] = np.sin(position * div_term)
    pe[:, 1::2] = np.cos(position * div_term)
    return jnp.asarray(pe)


def _pick_tb(B, S, d_model, dff, state_dim, act_budget=24 << 20):
    """Largest batch tile whose activation working set fits the VMEM budget.

    Weights are VMEM-resident regardless of tb, so larger tb only costs
    activation VMEM and buys MXU rows + fewer grid-step overheads.
    """
    width = max(d_model, dff, state_dim, 128)

    def act_bytes(t):
        return t * S * width * 4 * 16          # ~16 live f32 slabs, conservative

    cands = [t for t in range(1, B + 1)
             if B % t == 0 and (t == B or t % 8 == 0) and act_bytes(t) <= act_budget]
    tb = max(cands) if cands else 1
    # Keep >= 2 parallel grid steps (both v7x TensorCores busy) only when the
    # per-step matmul M dimension stays >= 256.
    half = tb // 2
    if tb == B and half > 0 and half % 8 == 0 and half * S >= 256:
        tb = half
    return tb


# ----------------------------------------------------------------------------
# Pallas kernel: one batch tile per grid step
#   input proj -> pos enc -> N encoder layers (post-LN MHA + relu FFN)
#   -> mean pool -> fc + LN + relu -> lane-padded q head
# ----------------------------------------------------------------------------
def transformer_q_kernel(
    state_ref, pe_ref,
    w_in_ref, b_in_ref,
    wq_ref, bq_ref, wk_ref, bk_ref, wv_ref, bv_ref,
    wo_ref, bo_ref, ln1g_ref, ln1b_ref,
    w1_ref, b1_ref, w2_ref, b2_ref, ln2g_ref, ln2b_ref,
    wfc_ref, bfc_ref, lnfcg_ref, lnfcb_ref,
    wqh_ref, bqh_ref,
    out_ref,
    *, tb, seq, nhead, num_layers, compute_dtype,
):
    d_model = pe_ref.shape[2]
    hd = d_model // nhead
    n_rows = tb * seq
    cd = compute_dtype

    def mm(a, w):
        # MXU matmul: bf16 operands, f32 accumulation.
        return jnp.dot(a.astype(cd), w.astype(cd),
                       preferred_element_type=jnp.float32)

    # ---- input projection + positional encoding (batch-index quirk) -------
    x2 = state_ref[...].reshape(n_rows, state_ref.shape[2])          # (TB*S, Ds)
    h = mm(x2, w_in_ref[...]) + b_in_ref[...]                         # (TB*S, D)
    h = (h.reshape(tb, seq, d_model) + pe_ref[...]).reshape(n_rows, d_model)

    # ---- transformer encoder layers (post-norm, relu FFN) -----------------
    for l in range(num_layers):
        attn = None
        for hh in range(nhead):
            # Head-stacked weights: leading-axis indexing only, no lane slices.
            q = mm(h, wq_ref[l, hh]) + bq_ref[l, hh]      # scale folded into Wq/bq
            k = mm(h, wk_ref[l, hh]) + bk_ref[l, hh]
            v = mm(h, wv_ref[l, hh]) + bv_ref[l, hh]
            q3 = q.reshape(tb, seq, hd)
            k3 = k.reshape(tb, seq, hd)
            v3 = v.reshape(tb, seq, hd)
            # single-batch-dim einsums, batched over the batch tile
            s = jnp.einsum("bqd,bkd->bqk", q3.astype(cd), k3.astype(cd),
                           preferred_element_type=jnp.float32)
            m = jnp.max(s, axis=-1, keepdims=True)
            e = jnp.exp(s - m)
            p = e / jnp.sum(e, axis=-1, keepdims=True)     # exact divide, f32 stats
            ctx = jnp.einsum("bqk,bkd->bqd", p.astype(cd), v3.astype(cd),
                             preferred_element_type=jnp.float32)
            # fold the head straight through its slice of Wo: lane-dense add.
            contrib = mm(ctx.reshape(n_rows, hd), wo_ref[l, hh])     # (TB*S, D)
            attn = contrib if attn is None else attn + contrib
        attn = attn + bo_ref[l]
        h = _layernorm(h + attn, ln1g_ref[l], ln1b_ref[l])

        ff = jnp.maximum(mm(h, w1_ref[l]) + b1_ref[l], 0.0)
        ff = mm(ff, w2_ref[l]) + b2_ref[l]
        h = _layernorm(h + ff, ln2g_ref[l], ln2b_ref[l])

    # ---- mean pool over the sequence (cheap sublane reduction) ------------
    pooled = jnp.mean(h.reshape(tb, seq, d_model), axis=1)            # (TB, D)

    # ---- fc head: Linear -> LayerNorm -> relu -> q_layer (lane-padded) ----
    fc = mm(pooled, wfc_ref[...]) + bfc_ref[...]
    fc = jnp.maximum(_layernorm(fc, lnfcg_ref[...], lnfcb_ref[...]), 0.0)
    out_ref[...] = mm(fc, wqh_ref[...]) + bqh_ref[...]                # (TB, ADP)


# ----------------------------------------------------------------------------
# wrapper
# ----------------------------------------------------------------------------
def transformer_q_forward(state, params, pe_table, *, nhead, num_layers, tb=None,
                          compute_dtype=jnp.bfloat16):
    B, S, Ds = state.shape
    d_model = params["w_in"].shape[1]
    dff = params["w1"].shape[2]
    action_dim = params["wq_head"].shape[1]
    L = num_layers
    assert d_model % nhead == 0
    hd = d_model // nhead
    assert B <= pe_table.shape[0], (
        "PositionalEncoding max_len exceeded (PyTorch quirk indexes PE by batch)")

    if tb is None:
        tb = _pick_tb(B, S, d_model, dff, Ds)
    assert B % tb == 0
    grid = (B // tb,)

    cd = compute_dtype
    scale = 1.0 / float(np.sqrt(hd))

    # ---- weight re-layout: head-stacked, bf16 matmul operands -------------
    def split_heads_w(w, pre=1.0):
        # (L, D, D) -> (L, nhead, D, hd): head on a leading axis.
        return jnp.transpose((w * pre).reshape(L, d_model, nhead, hd),
                             (0, 2, 1, 3)).astype(cd)

    def split_heads_b(b, pre=1.0):
        return jnp.asarray(b * pre, jnp.float32).reshape(L, nhead, 1, hd)

    wq_h = split_heads_w(params["wq"], scale)       # 1/sqrt(hd) folded in
    bq_h = split_heads_b(params["bq"], scale)
    wk_h = split_heads_w(params["wk"]); bk_h = split_heads_b(params["bk"])
    wv_h = split_heads_w(params["wv"]); bv_h = split_heads_b(params["bv"])
    wo_h = params["wo"].reshape(L, nhead, hd, d_model).astype(cd)

    # pad the q head to a lane-dense 128-wide slab
    adp = max(128, ((action_dim + 127) // 128) * 128)
    wqh = jnp.pad(params["wq_head"], ((0, 0), (0, adp - action_dim))).astype(cd)
    bqh = jnp.pad(params["bq_head"], ((0, adp - action_dim),)).reshape(1, adp)

    # PyTorch quirk: PE row selected by *batch* index; one row per batch elem.
    pe_b = pe_table[:B, :d_model].reshape(B, 1, d_model)

    def row(v):   # (n,)   -> (1, n)   f32
        return jnp.asarray(v, jnp.float32).reshape(1, -1)

    def rows(v):  # (L, n) -> (L, 1, n) f32
        return jnp.asarray(v, jnp.float32).reshape(L, 1, -1)

    inputs = [
        state, pe_b,
        params["w_in"].astype(cd), row(params["b_in"]),
        wq_h, bq_h, wk_h, bk_h, wv_h, bv_h,
        wo_h, rows(params["bo"]), rows(params["ln1g"]), rows(params["ln1b"]),
        params["w1"].astype(cd), rows(params["b1"]),
        params["w2"].astype(cd), rows(params["b2"]),
        rows(params["ln2g"]), rows(params["ln2b"]),
        params["wfc"].astype(cd), row(params["bfc"]),
        row(params["lnfcg"]), row(params["lnfcb"]),
        wqh, bqh,
    ]

    def resident(a):
        # full array in VMEM; same block every grid step -> no re-DMA.
        nd = a.ndim
        return pl.BlockSpec(a.shape, lambda i, _n=nd: (0,) * _n)

    in_specs = [
        pl.BlockSpec((tb, S, Ds), lambda i: (i, 0, 0)),        # state: batch-tiled
        pl.BlockSpec((tb, 1, d_model), lambda i: (i, 0, 0)),   # PE rows
    ] + [resident(a) for a in inputs[2:]]
    out_specs = pl.BlockSpec((tb, adp), lambda i: (i, 0))      # 2-D lane-dense out

    # ---- VMEM limit from actual bytes, capped at ~85% of physical ---------
    def nbytes(a):
        return int(np.prod(a.shape)) * jnp.dtype(a.dtype).itemsize

    weight_bytes = sum(nbytes(a) for a in inputs)
    act_bytes = tb * S * max(d_model, dff, Ds, 128) * 4 * 16
    out_bytes = tb * adp * 4
    needed = 2 * (weight_bytes + out_bytes) + act_bytes + (4 << 20)
    try:
        phys = int(pltpu.get_tpu_info().vmem_capacity_bytes)
    except Exception:
        phys = 64 << 20                                        # v7x worst case
    vmem_limit = int(min(max(needed, 32 << 20), int(phys * 0.85)))

    kernel = functools.partial(
        transformer_q_kernel, tb=tb, seq=S, nhead=nhead, num_layers=num_layers,
        compute_dtype=compute_dtype)

    out = pl.pallas_call(
        kernel,
        out_shape=jax.ShapeDtypeStruct((B, adp), jnp.float32),
        grid_spec=pltpu.PrefetchScalarGridSpec(
            num_scalar_prefetch=0,
            grid=grid,
            in_specs=in_specs,
            out_specs=out_specs,
        ),
        compiler_params=pltpu.CompilerParams(
            dimension_semantics=("parallel",),
            vmem_limit_bytes=vmem_limit,
        ),
    )(*inputs)
    return out[:, :action_dim]


# ----------------------------------------------------------------------------
# deterministic parameter construction (synthetic init, PyTorch shapes)
# ----------------------------------------------------------------------------
def make_params(key, state_dim, action_dim, d_model, num_layers, dff, fc_dim):
    keys = jax.random.split(key, 18)
    ki = iter(range(18))

    def nrm(shape, scale=0.05):
        return jax.random.normal(keys[next(ki)], shape, dtype=jnp.float32) * scale

    L = num_layers
    return {
        "w_in": nrm((state_dim, d_model)),
        "b_in": nrm((d_model,)),
        "wq": nrm((L, d_model, d_model)),
        "bq": nrm((L, d_model)),
        "wk": nrm((L, d_model, d_model)),
        "bk": nrm((L, d_model)),
        "wv": nrm((L, d_model, d_model)),
        "bv": nrm((L, d_model)),
        "wo": nrm((L, d_model, d_model)),
        "bo": nrm((L, d_model)),
        "ln1g": jnp.ones((L, d_model), jnp.float32),
        "ln1b": jnp.zeros((L, d_model), jnp.float32),
        "w1": nrm((L, d_model, dff)),
        "b1": nrm((L, dff)),
        "w2": nrm((L, dff, d_model)),
        "b2": nrm((L, d_model)),
        "ln2g": jnp.ones((L, d_model), jnp.float32),
        "ln2b": jnp.zeros((L, d_model), jnp.float32),
        "wfc": nrm((d_model, fc_dim)),
        "bfc": nrm((fc_dim,)),
        "lnfcg": jnp.ones((fc_dim,), jnp.float32),
        "lnfcb": jnp.zeros((fc_dim,), jnp.float32),
        "wq_head": nrm((fc_dim, action_dim)),
        "bq_head": nrm((action_dim,)),
    }


# ----------------------------------------------------------------------------
# pure-JAX f32 reference (for correctness check)
# ----------------------------------------------------------------------------
def transformer_q_ref(state, params, pe_table, *, nhead, num_layers):
    B, S, _ = state.shape
    d_model = params["w_in"].shape[1]
    hd = d_model // nhead
    scale = 1.0 / np.sqrt(hd)

    h = jnp.einsum("bsd,de->bse", state, params["w_in"]) + params["b_in"]
    h = h + pe_table[:B][:, None, :]
    for l in range(num_layers):
        q = jnp.einsum("bsd,de->bse", h, params["wq"][l]) + params["bq"][l]
        k = jnp.einsum("bsd,de->bse", h, params["wk"][l]) + params["bk"][l]
        v = jnp.einsum("bsd,de->bse", h, params["wv"][l]) + params["bv"][l]
        q = q.reshape(B, S, nhead, hd)
        k = k.reshape(B, S, nhead, hd)
        v = v.reshape(B, S, nhead, hd)
        s = jnp.einsum("bqhd,bkhd->bhqk", q, k) * scale
        p = jax.nn.softmax(s, axis=-1)
        a = jnp.einsum("bhqk,bkhd->bqhd", p, v).reshape(B, S, d_model)
        a = jnp.einsum("bsd,de->bse", a, params["wo"][l]) + params["bo"][l]
        h = _layernorm(h + a, params["ln1g"][l], params["ln1b"][l])
        ff = jax.nn.relu(
            jnp.einsum("bsd,df->bsf", h, params["w1"][l]) + params["b1"][l])
        ff = jnp.einsum("bsf,fd->bsd", ff, params["w2"][l]) + params["b2"][l]
        h = _layernorm(h + ff, params["ln2g"][l], params["ln2b"][l])
    pooled = h.mean(axis=1)
    fc = pooled @ params["wfc"] + params["bfc"]
    fc = jax.nn.relu(_layernorm(fc, params["lnfcg"], params["lnfcb"]))
    return fc @ params["wq_head"] + params["bq_head"]


# ----------------------------------------------------------------------------
if __name__ == "__main__":
    B, S = 2, 8
    state_dim, action_dim = 16, 4
    d_model, nhead, num_layers, dff, fc_dim = 32, 4, 2, 64, 32

    key = jax.random.PRNGKey(0)
    pkey, skey = jax.random.split(key)
    params = make_params(pkey, state_dim, action_dim, d_model, num_layers, dff, fc_dim)
    pe_table = positional_encoding_table(64, d_model)
    state = jax.random.normal(skey, (B, S, state_dim), dtype=jnp.float32)

    out = transformer_q_forward(state, params, pe_table, nhead=nhead,
                                num_layers=num_layers)
    out = jax.block_until_ready(out)

    ref = transformer_q_ref(state, params, pe_table, nhead=nhead,
                            num_layers=num_layers)
    assert out.shape == (B, action_dim)
    # bf16 matmul operands with f32 accumulation / f32 LN & softmax stats:
    # tolerance loosened accordingly vs an exact-f32 run.
    np.testing.assert_allclose(np.asarray(out), np.asarray(ref),
                               rtol=3e-2, atol=2e-2)
    print("KERNEL_OK")
</pallas_src>

<mosaic_0001>
module attributes {stable_mosaic.version = 11 : i64} {
  func.func @transformer_q_kernel(%arg0: i32, %arg1: memref<2x8x16xf32, #tpu.memory_space<vmem>>, %arg2: memref<2x1x32xf32, #tpu.memory_space<vmem>>, %arg3: memref<16x32xbf16, #tpu.memory_space<vmem>>, %arg4: memref<1x32xf32, #tpu.memory_space<vmem>>, %arg5: memref<2x4x32x8xbf16, #tpu.memory_space<vmem>>, %arg6: memref<2x4x1x8xf32, #tpu.memory_space<vmem>>, %arg7: memref<2x4x32x8xbf16, #tpu.memory_space<vmem>>, %arg8: memref<2x4x1x8xf32, #tpu.memory_space<vmem>>, %arg9: memref<2x4x32x8xbf16, #tpu.memory_space<vmem>>, %arg10: memref<2x4x1x8xf32, #tpu.memory_space<vmem>>, %arg11: memref<2x4x8x32xbf16, #tpu.memory_space<vmem>>, %arg12: memref<2x1x32xf32, #tpu.memory_space<vmem>>, %arg13: memref<2x1x32xf32, #tpu.memory_space<vmem>>, %arg14: memref<2x1x32xf32, #tpu.memory_space<vmem>>, %arg15: memref<2x32x64xbf16, #tpu.memory_space<vmem>>, %arg16: memref<2x1x64xf32, #tpu.memory_space<vmem>>, %arg17: memref<2x64x32xbf16, #tpu.memory_space<vmem>>, %arg18: memref<2x1x32xf32, #tpu.memory_space<vmem>>, %arg19: memref<2x1x32xf32, #tpu.memory_space<vmem>>, %arg20: memref<2x1x32xf32, #tpu.memory_space<vmem>>, %arg21: memref<32x32xbf16, #tpu.memory_space<vmem>>, %arg22: memref<1x32xf32, #tpu.memory_space<vmem>>, %arg23: memref<1x32xf32, #tpu.memory_space<vmem>>, %arg24: memref<1x32xf32, #tpu.memory_space<vmem>>, %arg25: memref<32x128xbf16, #tpu.memory_space<vmem>>, %arg26: memref<1x128xf32, #tpu.memory_space<vmem>>, %arg27: memref<2x128xf32, #tpu.memory_space<vmem>>) attributes {dimension_semantics = [#tpu.dimension_semantics<parallel>], iteration_bounds = array<i64: 1>, scalar_prefetch = 0 : i64, scratch_operands = 0 : i64, tpu.core_type = #tpu.core_type<tc>, window_params = [{transform_indices = @transform_0, window_bounds = array<i64: 2, 8, 16>}, {transform_indices = @transform_1, window_bounds = array<i64: 2, 1, 32>}, {pipeline_mode = #tpu.pipeline_mode<synchronous>, transform_indices = @transform_2, window_bounds = array<i64: 16, 32>}, {pipeline_mode = #tpu.pipeline_mode<synchronous>, transform_indices = @transform_3, window_bounds = array<i64: 1, 32>}, {pipeline_mode = #tpu.pipeline_mode<synchronous>, transform_indices = @transform_4, window_bounds = array<i64: 2, 4, 32, 8>}, {pipeline_mode = #tpu.pipeline_mode<synchronous>, transform_indices = @transform_5, window_bounds = array<i64: 2, 4, 1, 8>}, {pipeline_mode = #tpu.pipeline_mode<synchronous>, transform_indices = @transform_6, window_bounds = array<i64: 2, 4, 32, 8>}, {pipeline_mode = #tpu.pipeline_mode<synchronous>, transform_indices = @transform_7, window_bounds = array<i64: 2, 4, 1, 8>}, {pipeline_mode = #tpu.pipeline_mode<synchronous>, transform_indices = @transform_8, window_bounds = array<i64: 2, 4, 32, 8>}, {pipeline_mode = #tpu.pipeline_mode<synchronous>, transform_indices = @transform_9, window_bounds = array<i64: 2, 4, 1, 8>}, {pipeline_mode = #tpu.pipeline_mode<synchronous>, transform_indices = @transform_10, window_bounds = array<i64: 2, 4, 8, 32>}, {pipeline_mode = #tpu.pipeline_mode<synchronous>, transform_indices = @transform_11, window_bounds = array<i64: 2, 1, 32>}, {pipeline_mode = #tpu.pipeline_mode<synchronous>, transform_indices = @transform_12, window_bounds = array<i64: 2, 1, 32>}, {pipeline_mode = #tpu.pipeline_mode<synchronous>, transform_indices = @transform_13, window_bounds = array<i64: 2, 1, 32>}, {pipeline_mode = #tpu.pipeline_mode<synchronous>, transform_indices = @transform_14, window_bounds = array<i64: 2, 32, 64>}, {pipeline_mode = #tpu.pipeline_mode<synchronous>, transform_indices = @transform_15, window_bounds = array<i64: 2, 1, 64>}, {pipeline_mode = #tpu.pipeline_mode<synchronous>, transform_indices = @transform_16, window_bounds = array<i64: 2, 64, 32>}, {pipeline_mode = #tpu.pipeline_mode<synchronous>, transform_indices = @transform_17, window_bounds = array<i64: 2, 1, 32>}, {pipeline_mode = #tpu.pipeline_mode<synchronous>, transform_indices = @transform_18, window_bounds = array<i64: 2, 1, 32>}, {pipeline_mode = #tpu.pipeline_mode<synchronous>, transform_indices = @transform_19, window_bounds = array<i64: 2, 1, 32>}, {pipeline_mode = #tpu.pipeline_mode<synchronous>, transform_indices = @transform_20, window_bounds = array<i64: 32, 32>}, {pipeline_mode = #tpu.pipeline_mode<synchronous>, transform_indices = @transform_21, window_bounds = array<i64: 1, 32>}, {pipeline_mode = #tpu.pipeline_mode<synchronous>, transform_indices = @transform_22, window_bounds = array<i64: 1, 32>}, {pipeline_mode = #tpu.pipeline_mode<synchronous>, transform_indices = @transform_23, window_bounds = array<i64: 1, 32>}, {pipeline_mode = #tpu.pipeline_mode<synchronous>, transform_indices = @transform_24, window_bounds = array<i64: 32, 128>}, {pipeline_mode = #tpu.pipeline_mode<synchronous>, transform_indices = @transform_25, window_bounds = array<i64: 1, 128>}, {transform_indices = @transform_26, window_bounds = array<i64: 2, 128>}]} {
    %c0 = arith.constant 0 : index
    %c0_0 = arith.constant 0 : index
    %c0_1 = arith.constant 0 : index
    %0 = vector.load %arg1[%c0, %c0_0, %c0_1] : memref<2x8x16xf32, #tpu.memory_space<vmem>>, vector<2x8x16xf32>
    %1 = vector.shape_cast %0 : vector<2x8x16xf32> to vector<16x16xf32>
    %c0_2 = arith.constant 0 : index
    %c0_3 = arith.constant 0 : index
    %2 = vector.load %arg3[%c0_2, %c0_3] : memref<16x32xbf16, #tpu.memory_space<vmem>>, vector<16x32xbf16>
    %3 = arith.truncf %1 : vector<16x16xf32> to vector<16x16xbf16>
    %cst = arith.constant dense<0.000000e+00> : vector<16x32xf32>
    %4 = tpu.matmul %3, %2, %cst {dimension_numbers = #tpu.dot_dimension_numbers<[1], [0], [0], [1], [0, 0, 1, 1], [], []>} : vector<16x16xbf16>, vector<16x32xbf16>, vector<16x32xf32> -> vector<16x32xf32>
    %c0_4 = arith.constant 0 : index
    %c0_5 = arith.constant 0 : index
    %5 = vector.load %arg4[%c0_4, %c0_5] : memref<1x32xf32, #tpu.memory_space<vmem>>, vector<1x32xf32>
    %6 = vector.broadcast %5 : vector<1x32xf32> to vector<16x32xf32>
    %7 = arith.addf %4, %6 : vector<16x32xf32>
    %8 = vector.shape_cast %7 : vector<16x32xf32> to vector<2x8x32xf32>
    %c0_6 = arith.constant 0 : index
    %c0_7 = arith.constant 0 : index
    %c0_8 = arith.constant 0 : index
    %9 = vector.load %arg2[%c0_6, %c0_7, %c0_8] : memref<2x1x32xf32, #tpu.memory_space<vmem>>, vector<2x1x32xf32>
    %10 = vector.broadcast %9 : vector<2x1x32xf32> to vector<2x8x32xf32>
    %11 = arith.addf %8, %10 : vector<2x8x32xf32>
    %12 = vector.shape_cast %11 : vector<2x8x32xf32> to vector<16x32xf32>
    %c0_9 = arith.constant 0 : index
    %c0_10 = arith.constant 0 : index
    %c0_11 = arith.constant 0 : index
    %c0_12 = arith.constant 0 : index
    %13 = vector.load %arg5[%c0_9, %c0_10, %c0_11, %c0_12] : memref<2x4x32x8xbf16, #tpu.memory_space<vmem>>, vector<1x1x32x8xbf16>
    %14 = vector.shape_cast %13 : vector<1x1x32x8xbf16> to vector<32x8xbf16>
    %15 = arith.truncf %12 : vector<16x32xf32> to vector<16x32xbf16>
    %cst_13 = arith.constant dense<0.000000e+00> : vector<16x8xf32>
    %16 = tpu.matmul %15, %14, %cst_13 {dimension_numbers = #tpu.dot_dimension_numbers<[1], [0], [0], [1], [0, 0, 1, 1], [], []>} : vector<16x32xbf16>, vector<32x8xbf16>, vector<16x8xf32> -> vector<16x8xf32>
    %c0_14 = arith.constant 0 : index
    %c0_15 = arith.constant 0 : index
    %c0_16 = arith.constant 0 : index
    %c0_17 = arith.constant 0 : index
    %17 = vector.load %arg6[%c0_14, %c0_15, %c0_16, %c0_17] : memref<2x4x1x8xf32, #tpu.memory_space<vmem>>, vector<1x1x1x8xf32>
    %18 = vector.shape_cast %17 : vector<1x1x1x8xf32> to vector<1x8xf32>
    %19 = vector.broadcast %18 : vector<1x8xf32> to vector<16x8xf32>
    %20 = arith.addf %16, %19 : vector<16x8xf32>
    %c0_18 = arith.constant 0 : index
    %c0_19 = arith.constant 0 : index
    %c0_20 = arith.constant 0 : index
    %c0_21 = arith.constant 0 : index
    %21 = vector.load %arg7[%c0_18, %c0_19, %c0_20, %c0_21] : memref<2x4x32x8xbf16, #tpu.memory_space<vmem>>, vector<1x1x32x8xbf16>
    %22 = vector.shape_cast %21 : vector<1x1x32x8xbf16> to vector<32x8xbf16>
    %23 = arith.truncf %12 : vector<16x32xf32> to vector<16x32xbf16>
    %cst_22 = arith.constant dense<0.000000e+00> : vector<16x8xf32>
    %24 = tpu.matmul %23, %22, %cst_22 {dimension_numbers = #tpu.dot_dimension_numbers<[1], [0], [0], [1], [0, 0, 1, 1], [], []>} : vector<16x32xbf16>, vector<32x8xbf16>, vector<16x8xf32> -> vector<16x8xf32>
    %c0_23 = arith.constant 0 : index
    %c0_24 = arith.constant 0 : index
    %c0_25 = arith.constant 0 : index
    %c0_26 = arith.constant 0 : index
    %25 = vector.load %arg8[%c0_23, %c0_24, %c0_25, %c0_26] : memref<2x4x1x8xf32, #tpu.memory_space<vmem>>, vector<1x1x1x8xf32>
    %26 = vector.shape_cast %25 : vector<1x1x1x8xf32> to vector<1x8xf32>
    %27 = vector.broadcast %26 : vector<1x8xf32> to vector<16x8xf32>
    %28 = arith.addf %24, %27 : vector<16x8xf32>
    %c0_27 = arith.constant 0 : index
    %c0_28 = arith.constant 0 : index
    %c0_29 = arith.constant 0 : index
    %c0_30 = arith.constant 0 : index
    %29 = vector.load %arg9[%c0_27, %c0_28, %c0_29, %c0_30] : memref<2x4x32x8xbf16, #tpu.memory_space<vmem>>, vector<1x1x32x8xbf16>
    %30 = vector.shape_cast %29 : vector<1x1x32x8xbf16> to vector<32x8xbf16>
    %31 = arith.truncf %12 : vector<16x32xf32> to vector<16x32xbf16>
    %cst_31 = arith.constant dense<0.000000e+00> : vector<16x8xf32>
    %32 = tpu.matmul %31, %30, %cst_31 {dimension_numbers = #tpu.dot_dimension_numbers<[1], [0], [0], [1], [0, 0, 1, 1], [], []>} : vector<16x32xbf16>, vector<32x8xbf16>, vector<16x8xf32> -> vector<16x8xf32>
    %c0_32 = arith.constant 0 : index
    %c0_33 = arith.constant 0 : index
    %c0_34 = arith.constant 0 : index
    %c0_35 = arith.constant 0 : index
    %33 = vector.load %arg10[%c0_32, %c0_33, %c0_34, %c0_35] : memref<2x4x1x8xf32, #tpu.memory_space<vmem>>, vector<1x1x1x8xf32>
    %34 = vector.shape_cast %33 : vector<1x1x1x8xf32> to vector<1x8xf32>
    %35 = vector.broadcast %34 : vector<1x8xf32> to vector<16x8xf32>
    %36 = arith.addf %32, %35 : vector<16x8xf32>
    %37 = vector.shape_cast %20 : vector<16x8xf32> to vector<2x8x8xf32>
    %38 = vector.shape_cast %28 : vector<16x8xf32> to vector<2x8x8xf32>
    %39 = vector.shape_cast %36 : vector<16x8xf32> to vector<2x8x8xf32>
    %40 = arith.truncf %37 : vector<2x8x8xf32> to vector<2x8x8xbf16>
    %41 = arith.truncf %38 : vector<2x8x8xf32> to vector<2x8x8xbf16>
    "tpu.trace_start"() <{level = 10 : i32, message = "bqd,bkd->bqk"}> : () -> ()
    %cst_36 = arith.constant dense<0.000000e+00> : vector<2x8x8xf32>
    %42 = tpu.matmul %40, %41, %cst_36 {dimension_numbers = #tpu.dot_dimension_numbers<[2], [2], [1], [1], [0, 0, 0, 1, 1, 1], [0], [0]>} : vector<2x8x8xbf16>, vector<2x8x8xbf16>, vector<2x8x8xf32> -> vector<2x8x8xf32>
    "tpu.trace_stop"() : () -> ()
    %cst_37 = arith.constant dense<0xFF800000> : vector<2x8xf32>
    %43 = vector.multi_reduction <maximumf>, %42, %cst_37 [2] : vector<2x8x8xf32> to vector<2x8xf32>
    %44 = vector.shape_cast %43 : vector<2x8xf32> to vector<2x8x1xf32>
    %45 = vector.broadcast %44 : vector<2x8x1xf32> to vector<2x8x8xf32>
    %46 = arith.subf %42, %45 : vector<2x8x8xf32>
    %47 = math.exp %46 : vector<2x8x8xf32>
    %cst_38 = arith.constant dense<0.000000e+00> : vector<2x8xf32>
    %48 = vector.multi_reduction <add>, %47, %cst_38 [2] : vector<2x8x8xf32> to vector<2x8xf32>
    %49 = vector.shape_cast %48 : vector<2x8xf32> to vector<2x8x1xf32>
    %50 = vector.broadcast %49 : vector<2x8x1xf32> to vector<2x8x8xf32>
    %51 = arith.divf %47, %50 : vector<2x8x8xf32>
    %52 = arith.truncf %51 : vector<2x8x8xf32> to vector<2x8x8xbf16>
    %53 = arith.truncf %39 : vector<2x8x8xf32> to vector<2x8x8xbf16>
    "tpu.trace_start"() <{level = 10 : i32, message = "bqk,bkd->bqd"}> : () -> ()
    %cst_39 = arith.constant dense<0.000000e+00> : vector<2x8x8xf32>
    %54 = tpu.matmul %52, %53, %cst_39 {dimension_numbers = #tpu.dot_dimension_numbers<[2], [1], [1], [2], [0, 0, 0, 1, 1, 2], [0], [0]>} : vector<2x8x8xbf16>, vector<2x8x8xbf16>, vector<2x8x8xf32> -> vector<2x8x8xf32>
    "tpu.trace_stop"() : () -> ()
    %55 = vector.shape_cast %54 : vector<2x8x8xf32> to vector<16x8xf32>
    %c0_40 = arith.constant 0 : index
    %c0_41 = arith.constant 0 : index
    %c0_42 = arith.constant 0 : index
    %c0_43 = arith.constant 0 : index
    %56 = vector.load %arg11[%c0_40, %c0_41, %c0_42, %c0_43] : memref<2x4x8x32xbf16, #tpu.memory_space<vmem>>, vector<1x1x8x32xbf16>
    %57 = vector.shape_cast %56 : vector<1x1x8x32xbf16> to vector<8x32xbf16>
    %58 = arith.truncf %55 : vector<16x8xf32> to vector<16x8xbf16>
    %cst_44 = arith.constant dense<0.000000e+00> : vector<16x32xf32>
    %59 = tpu.matmul %58, %57, %cst_44 {dimension_numbers = #tpu.dot_dimension_numbers<[1], [0], [0], [1], [0, 0, 1, 1], [], []>} : vector<16x8xbf16>, vector<8x32xbf16>, vector<16x32xf32> -> vector<16x32xf32>
    %c0_45 = arith.constant 0 : index
    %c1 = arith.constant 1 : index
    %c0_46 = arith.constant 0 : index
    %c0_47 = arith.constant 0 : index
    %60 = vector.load %arg5[%c0_45, %c1, %c0_46, %c0_47] : memref<2x4x32x8xbf16, #tpu.memory_space<vmem>>, vector<1x1x32x8xbf16>
    %61 = vector.shape_cast %60 : vector<1x1x32x8xbf16> to vector<32x8xbf16>
    %62 = arith.truncf %12 : vector<16x32xf32> to vector<16x32xbf16>
    %cst_48 = arith.constant dense<0.000000e+00> : vector<16x8xf32>
    %63 = tpu.matmul %62, %61, %cst_48 {dimension_numbers = #tpu.dot_dimension_numbers<[1], [0], [0], [1], [0, 0, 1, 1], [], []>} : vector<16x32xbf16>, vector<32x8xbf16>, vector<16x8xf32> -> vector<16x8xf32>
    %c0_49 = arith.constant 0 : index
    %c1_50 = arith.constant 1 : index
    %c0_51 = arith.constant 0 : index
    %c0_52 = arith.constant 0 : index
    %64 = vector.load %arg6[%c0_49, %c1_50, %c0_51, %c0_52] : memref<2x4x1x8xf32, #tpu.memory_space<vmem>>, vector<1x1x1x8xf32>
    %65 = vector.shape_cast %64 : vector<1x1x1x8xf32> to vector<1x8xf32>
    %66 = vector.broadcast %65 : vector<1x8xf32> to vector<16x8xf32>
    %67 = arith.addf %63, %66 : vector<16x8xf32>
    %c0_53 = arith.constant 0 : index
    %c1_54 = arith.constant 1 : index
    %c0_55 = arith.constant 0 : index
    %c0_56 = arith.constant 0 : index
    %68 = vector.load %arg7[%c0_53, %c1_54, %c0_55, %c0_56] : memref<2x4x32x8xbf16, #tpu.memory_space<vmem>>, vector<1x1x32x8xbf16>
    %69 = vector.shape_cast %68 : vector<1x1x32x8xbf16> to vector<32x8xbf16>
    %70 = arith.truncf %12 : vector<16x32xf32> to vector<16x32xbf16>
    %cst_57 = arith.constant dense<0.000000e+00> : vector<16x8xf32>
    %71 = tpu.matmul %70, %69, %cst_57 {dimension_numbers = #tpu.dot_dimension_numbers<[1], [0], [0], [1], [0, 0, 1, 1], [], []>} : vector<16x32xbf16>, vector<32x8xbf16>, vector<16x8xf32> -> vector<16x8xf32>
    %c0_58 = arith.constant 0 : index
    %c1_59 = arith.constant 1 : index
    %c0_60 = arith.constant 0 : index
    %c0_61 = arith.constant 0 : index
    %72 = vector.load %arg8[%c0_58, %c1_59, %c0_60, %c0_61] : memref<2x4x1x8xf32, #tpu.memory_space<vmem>>, vector<1x1x1x8xf32>
    %73 = vector.shape_cast %72 : vector<1x1x1x8xf32> to vector<1x8xf32>
    %74 = vector.broadcast %73 : vector<1x8xf32> to vector<16x8xf32>
    %75 = arith.addf %71, %74 : vector<16x8xf32>
    %c0_62 = arith.constant 0 : index
    %c1_63 = arith.constant 1 : index
    %c0_64 = arith.constant 0 : index
    %c0_65 = arith.constant 0 : index
    %76 = vector.load %arg9[%c0_62, %c1_63, %c0_64, %c0_65] : memref<2x4x32x8xbf16, #tpu.memory_space<vmem>>, vector<1x1x32x8xbf16>
    %77 = vector.shape_cast %76 : vector<1x1x32x8xbf16> to vector<32x8xbf16>
    %78 = arith.truncf %12 : vector<16x32xf32> to vector<16x32xbf16>
    %cst_66 = arith.constant dense<0.000000e+00> : vector<16x8xf32>
    %79 = tpu.matmul %78, %77, %cst_66 {dimension_numbers = #tpu.dot_dimension_numbers<[1], [0], [0], [1], [0, 0, 1, 1], [], []>} : vector<16x32xbf16>, vector<32x8xbf16>, vector<16x8xf32> -> vector<16x8xf32>
    %c0_67 = arith.constant 0 : index
    %c1_68 = arith.constant 1 : index
    %c0_69 = arith.constant 0 : index
    %c0_70 = arith.constant 0 : index
    %80 = vector.load %arg10[%c0_67, %c1_68, %c0_69, %c0_70] : memref<2x4x1x8xf32, #tpu.memory_space<vmem>>, vector<1x1x1x8xf32>
    %81 = vector.shape_cast %80 : vector<1x1x1x8xf32> to vector<1x8xf32>
    %82 = vector.broadcast %81 : vector<1x8xf32> to vector<16x8xf32>
    %83 = arith.addf %79, %82 : vector<16x8xf32>
    %84 = vector.shape_cast %67 : vector<16x8xf32> to vector<2x8x8xf32>
    %85 = vector.shape_cast %75 : vector<16x8xf32> to vector<2x8x8xf32>
    %86 = vector.shape_cast %83 : vector<16x8xf32> to vector<2x8x8xf32>
    %87 = arith.truncf %84 : vector<2x8x8xf32> to vector<2x8x8xbf16>
    %88 = arith.truncf %85 : vector<2x8x8xf32> to vector<2x8x8xbf16>
    "tpu.trace_start"() <{level = 10 : i32, message = "bqd,bkd->bqk"}> : () -> ()
    %cst_71 = arith.constant dense<0.000000e+00> : vector<2x8x8xf32>
    %89 = tpu.matmul %87, %88, %cst_71 {dimension_numbers = #tpu.dot_dimension_numbers<[2], [2], [1], [1], [0, 0, 0, 1, 1, 1], [0], [0]>} : vector<2x8x8xbf16>, vector<2x8x8xbf16>, vector<2x8x8xf32> -> vector<2x8x8xf32>
    "tpu.trace_stop"() : () -> ()
    %cst_72 = arith.constant dense<0xFF800000> : vector<2x8xf32>
    %90 = vector.multi_reduction <maximumf>, %89, %cst_72 [2] : vector<2x8x8xf32> to vector<2x8xf32>
    %91 = vector.shape_cast %90 : vector<2x8xf32> to vector<2x8x1xf32>
    %92 = vector.broadcast %91 : vector<2x8x1xf32> to vector<2x8x8xf32>
    %93 = arith.subf %89, %92 : vector<2x8x8xf32>
    %94 = math.exp %93 : vector<2x8x8xf32>
    %cst_73 = arith.constant dense<0.000000e+00> : vector<2x8xf32>
    %95 = vector.multi_reduction <add>, %94, %cst_73 [2] : vector<2x8x8xf32> to vector<2x8xf32>
    %96 = vector.shape_cast %95 : vector<2x8xf32> to vector<2x8x1xf32>
    %97 = vector.broadcast %96 : vector<2x8x1xf32> to vector<2x8x8xf32>
    %98 = arith.divf %94, %97 : vector<2x8x8xf32>
    %99 = arith.truncf %98 : vector<2x8x8xf32> to vector<2x8x8xbf16>
    %100 = arith.truncf %86 : vector<2x8x8xf32> to vector<2x8x8xbf16>
    "tpu.trace_start"() <{level = 10 : i32, message = "bqk,bkd->bqd"}> : () -> ()
    %cst_74 = arith.constant dense<0.000000e+00> : vector<2x8x8xf32>
    %101 = tpu.matmul %99, %100, %cst_74 {dimension_numbers = #tpu.dot_dimension_numbers<[2], [1], [1], [2], [0, 0, 0, 1, 1, 2], [0], [0]>} : vector<2x8x8xbf16>, vector<2x8x8xbf16>, vector<2x8x8xf32> -> vector<2x8x8xf32>
    "tpu.trace_stop"() : () -> ()
    %102 = vector.shape_cast %101 : vector<2x8x8xf32> to vector<16x8xf32>
    %c0_75 = arith.constant 0 : index
    %c1_76 = arith.constant 1 : index
    %c0_77 = arith.constant 0 : index
    %c0_78 = arith.constant 0 : index
    %103 = vector.load %arg11[%c0_75, %c1_76, %c0_77, %c0_78] : memref<2x4x8x32xbf16, #tpu.memory_space<vmem>>, vector<1x1x8x32xbf16>
    %104 = vector.shape_cast %103 : vector<1x1x8x32xbf16> to vector<8x32xbf16>
    %105 = arith.truncf %102 : vector<16x8xf32> to vector<16x8xbf16>
    %cst_79 = arith.constant dense<0.000000e+00> : vector<16x32xf32>
    %106 = tpu.matmul %105, %104, %cst_79 {dimension_numbers = #tpu.dot_dimension_numbers<[1], [0], [0], [1], [0, 0, 1, 1], [], []>} : vector<16x8xbf16>, vector<8x32xbf16>, vector<16x32xf32> -> vector<16x32xf32>
    %107 = arith.addf %59, %106 : vector<16x32xf32>
    %c0_80 = arith.constant 0 : index
    %c2 = arith.constant 2 : index
    %c0_81 = arith.constant 0 : index
    %c0_82 = arith.constant 0 : index
    %108 = vector.load %arg5[%c0_80, %c2, %c0_81, %c0_82] : memref<2x4x32x8xbf16, #tpu.memory_space<vmem>>, vector<1x1x32x8xbf16>
    %109 = vector.shape_cast %108 : vector<1x1x32x8xbf16> to vector<32x8xbf16>
    %110 = arith.truncf %12 : vector<16x32xf32> to vector<16x32xbf16>
    %cst_83 = arith.constant dense<0.000000e+00> : vector<16x8xf32>
    %111 = tpu.matmul %110, %109, %cst_83 {dimension_numbers = #tpu.dot_dimension_numbers<[1], [0], [0], [1], [0, 0, 1, 1], [], []>} : vector<16x32xbf16>, vector<32x8xbf16>, vector<16x8xf32> -> vector<16x8xf32>
    %c0_84 = arith.constant 0 : index
    %c2_85 = arith.constant 2 : index
    %c0_86 = arith.constant 0 : index
    %c0_87 = arith.constant 0 : index
    %112 = vector.load %arg6[%c0_84, %c2_85, %c0_86, %c0_87] : memref<2x4x1x8xf32, #tpu.memory_space<vmem>>, vector<1x1x1x8xf32>
    %113 = vector.shape_cast %112 : vector<1x1x1x8xf32> to vector<1x8xf32>
    %114 = vector.broadcast %113 : vector<1x8xf32> to vector<16x8xf32>
    %115 = arith.addf %111, %114 : vector<16x8xf32>
    %c0_88 = arith.constant 0 : index
    %c2_89 = arith.constant 2 : index
    %c0_90 = arith.constant 0 : index
    %c0_91 = arith.constant 0 : index
    %116 = vector.load %arg7[%c0_88, %c2_89, %c0_90, %c0_91] : memref<2x4x32x8xbf16, #tpu.memory_space<vmem>>, vector<1x1x32x8xbf16>
    %117 = vector.shape_cast %116 : vector<1x1x32x8xbf16> to vector<32x8xbf16>
    %118 = arith.truncf %12 : vector<16x32xf32> to vector<16x32xbf16>
    %cst_92 = arith.constant dense<0.000000e+00> : vector<16x8xf32>
    %119 = tpu.matmul %118, %117, %cst_92 {dimension_numbers = #tpu.dot_dimension_numbers<[1], [0], [0], [1], [0, 0, 1, 1], [], []>} : vector<16x32xbf16>, vector<32x8xbf16>, vector<16x8xf32> -> vector<16x8xf32>
    %c0_93 = arith.constant 0 : index
    %c2_94 = arith.constant 2 : index
    %c0_95 = arith.constant 0 : index
    %c0_96 = arith.constant 0 : index
    %120 = vector.load %arg8[%c0_93, %c2_94, %c0_95, %c0_96] : memref<2x4x1x8xf32, #tpu.memory_space<vmem>>, vector<1x1x1x8xf32>
    %121 = vector.shape_cast %120 : vector<1x1x1x8xf32> to vector<1x8xf32>
    %122 = vector.broadcast %121 : vector<1x8xf32> to vector<16x8xf32>
    %123 = arith.addf %119, %122 : vector<16x8xf32>
    %c0_97 = arith.constant 0 : index
    %c2_98 = arith.constant 2 : index
    %c0_99 = arith.constant 0 : index
    %c0_100 = arith.constant 0 : index
    %124 = vector.load %arg9[%c0_97, %c2_98, %c0_99, %c0_100] : memref<2x4x32x8xbf16, #tpu.memory_space<vmem>>, vector<1x1x32x8xbf16>
    %125 = vector.shape_cast %124 : vector<1x1x32x8xbf16> to vector<32x8xbf16>
    %126 = arith.truncf %12 : vector<16x32xf32> to vector<16x32xbf16>
    %cst_101 = arith.constant dense<0.000000e+00> : vector<16x8xf32>
    %127 = tpu.matmul %126, %125, %cst_101 {dimension_numbers = #tpu.dot_dimension_numbers<[1], [0], [0], [1], [0, 0, 1, 1], [], []>} : vector<16x32xbf16>, vector<32x8xbf16>, vector<16x8xf32> -> vector<16x8xf32>
    %c0_102 = arith.constant 0 : index
    %c2_103 = arith.constant 2 : index
    %c0_104 = arith.constant 0 : index
    %c0_105 = arith.constant 0 : index
    %128 = vector.load %arg10[%c0_102, %c2_103, %c0_104, %c0_105] : memref<2x4x1x8xf32, #tpu.memory_space<vmem>>, vector<1x1x1x8xf32>
    %129 = vector.shape_cast %128 : vector<1x1x1x8xf32> to vector<1x8xf32>
    %130 = vector.broadcast %129 : vector<1x8xf32> to vector<16x8xf32>
    %131 = arith.addf %127, %130 : vector<16x8xf32>
    %132 = vector.shape_cast %115 : vector<16x8xf32> to vector<2x8x8xf32>
    %133 = vector.shape_cast %123 : vector<16x8xf32> to vector<2x8x8xf32>
    %134 = vector.shape_cast %131 : vector<16x8xf32> to vector<2x8x8xf32>
    %135 = arith.truncf %132 : vector<2x8x8xf32> to vector<2x8x8xbf16>
    %136 = arith.truncf %133 : vector<2x8x8xf32> to vector<2x8x8xbf16>
    "tpu.trace_start"() <{level = 10 : i32, message = "bqd,bkd->bqk"}> : () -> ()
    %cst_106 = arith.constant dense<0.000000e+00> : vector<2x8x8xf32>
    %137 = tpu.matmul %135, %136, %cst_106 {dimension_numbers = #tpu.dot_dimension_numbers<[2], [2], [1], [1], [0, 0, 0, 1, 1, 1], [0], [0]>} : vector<2x8x8xbf16>, vector<2x8x8xbf16>, vector<2x8x8xf32> -> vector<2x8x8xf32>
    "tpu.trace_stop"() : () -> ()
    %cst_107 = arith.constant dense<0xFF800000> : vector<2x8xf32>
    %138 = vector.multi_reduction <maximumf>, %137, %cst_107 [2] : vector<2x8x8xf32> to vector<2x8xf32>
    %139 = vector.shape_cast %138 : vector<2x8xf32> to vector<2x8x1xf32>
    %140 = vector.broadcast %139 : vector<2x8x1xf32> to vector<2x8x8xf32>
    %141 = arith.subf %137, %140 : vector<2x8x8xf32>
    %142 = math.exp %141 : vector<2x8x8xf32>
    %cst_108 = arith.constant dense<0.000000e+00> : vector<2x8xf32>
    %143 = vector.multi_reduction <add>, %142, %cst_108 [2] : vector<2x8x8xf32> to vector<2x8xf32>
    %144 = vector.shape_cast %143 : vector<2x8xf32> to vector<2x8x1xf32>
    %145 = vector.broadcast %144 : vector<2x8x1xf32> to vector<2x8x8xf32>
    %146 = arith.divf %142, %145 : vector<2x8x8xf32>
    %147 = arith.truncf %146 : vector<2x8x8xf32> to vector<2x8x8xbf16>
    %148 = arith.truncf %134 : vector<2x8x8xf32> to vector<2x8x8xbf16>
    "tpu.trace_start"() <{level = 10 : i32, message = "bqk,bkd->bqd"}> : () -> ()
    %cst_109 = arith.constant dense<0.000000e+00> : vector<2x8x8xf32>
    %149 = tpu.matmul %147, %148, %cst_109 {dimension_numbers = #tpu.dot_dimension_numbers<[2], [1], [1], [2], [0, 0, 0, 1, 1, 2], [0], [0]>} : vector<2x8x8xbf16>, vector<2x8x8xbf16>, vector<2x8x8xf32> -> vector<2x8x8xf32>
    "tpu.trace_stop"() : () -> ()
    %150 = vector.shape_cast %149 : vector<2x8x8xf32> to vector<16x8xf32>
    %c0_110 = arith.constant 0 : index
    %c2_111 = arith.constant 2 : index
    %c0_112 = arith.constant 0 : index
    %c0_113 = arith.constant 0 : index
    %151 = vector.load %arg11[%c0_110, %c2_111, %c0_112, %c0_113] : memref<2x4x8x32xbf16, #tpu.memory_space<vmem>>, vector<1x1x8x32xbf16>
    %152 = vector.shape_cast %151 : vector<1x1x8x32xbf16> to vector<8x32xbf16>
    %153 = arith.truncf %150 : vector<16x8xf32> to vector<16x8xbf16>
    %cst_114 = arith.constant dense<0.000000e+00> : vector<16x32xf32>
    %154 = tpu.matmul %153, %152, %cst_114 {dimension_numbers = #tpu.dot_dimension_numbers<[1], [0], [0], [1], [0, 0, 1, 1], [], []>} : vector<16x8xbf16>, vector<8x32xbf16>, vector<16x32xf32> -> vector<16x32xf32>
    %155 = arith.addf %107, %154 : vector<16x32xf32>
    %c0_115 = arith.constant 0 : index
    %c3 = arith.constant 3 : index
    %c0_116 = arith.constant 0 : index
    %c0_117 = arith.constant 0 : index
    %156 = vector.load %arg5[%c0_115, %c3, %c0_116, %c0_117] : memref<2x4x32x8xbf16, #tpu.memory_space<vmem>>, vector<1x1x32x8xbf16>
    %157 = vector.shape_cast %156 : vector<1x1x32x8xbf16> to vector<32x8xbf16>
    %158 = arith.truncf %12 : vector<16x32xf32> to vector<16x32xbf16>
    %cst_118 = arith.constant dense<0.000000e+00> : vector<16x8xf32>
    %159 = tpu.matmul %158, %157, %cst_118 {dimension_numbers = #tpu.dot_dimension_numbers<[1], [0], [0], [1], [0, 0, 1, 1], [], []>} : vector<16x32xbf16>, vector<32x8xbf16>, vector<16x8xf32> -> vector<16x8xf32>
    %c0_119 = arith.constant 0 : index
    %c3_120 = arith.constant 3 : index
    %c0_121 = arith.constant 0 : index
    %c0_122 = arith.constant 0 : index
    %160 = vector.load %arg6[%c0_119, %c3_120, %c0_121, %c0_122] : memref<2x4x1x8xf32, #tpu.memory_space<vmem>>, vector<1x1x1x8xf32>
    %161 = vector.shape_cast %160 : vector<1x1x1x8xf32> to vector<1x8xf32>
    %162 = vector.broadcast %161 : vector<1x8xf32> to vector<16x8xf32>
    %163 = arith.addf %159, %162 : vector<16x8xf32>
    %c0_123 = arith.constant 0 : index
    %c3_124 = arith.constant 3 : index
    %c0_125 = arith.constant 0 : index
    %c0_126 = arith.constant 0 : index
    %164 = vector.load %arg7[%c0_123, %c3_124, %c0_125, %c0_126] : memref<2x4x32x8xbf16, #tpu.memory_space<vmem>>, vector<1x1x32x8xbf16>
    %165 = vector.shape_cast %164 : vector<1x1x32x8xbf16> to vector<32x8xbf16>
    %166 = arith.truncf %12 : vector<16x32xf32> to vector<16x32xbf16>
    %cst_127 = arith.constant dense<0.000000e+00> : vector<16x8xf32>
    %167 = tpu.matmul %166, %165, %cst_127 {dimension_numbers = #tpu.dot_dimension_numbers<[1], [0], [0], [1], [0, 0, 1, 1], [], []>} : vector<16x32xbf16>, vector<32x8xbf16>, vector<16x8xf32> -> vector<16x8xf32>
    %c0_128 = arith.constant 0 : index
    %c3_129 = arith.constant 3 : index
    %c0_130 = arith.constant 0 : index
    %c0_131 = arith.constant 0 : index
    %168 = vector.load %arg8[%c0_128, %c3_129, %c0_130, %c0_131] : memref<2x4x1x8xf32, #tpu.memory_space<vmem>>, vector<1x1x1x8xf32>
    %169 = vector.shape_cast %168 : vector<1x1x1x8xf32> to vector<1x8xf32>
    %170 = vector.broadcast %169 : vector<1x8xf32> to vector<16x8xf32>
    %171 = arith.addf %167, %170 : vector<16x8xf32>
    %c0_132 = arith.constant 0 : index
    %c3_133 = arith.constant 3 : index
    %c0_134 = arith.constant 0 : index
    %c0_135 = arith.constant 0 : index
    %172 = vector.load %arg9[%c0_132, %c3_133, %c0_134, %c0_135] : memref<2x4x32x8xbf16, #tpu.memory_space<vmem>>, vector<1x1x32x8xbf16>
    %173 = vector.shape_cast %172 : vector<1x1x32x8xbf16> to vector<32x8xbf16>
    %174 = arith.truncf %12 : vector<16x32xf32> to vector<16x32xbf16>
    %cst_136 = arith.constant dense<0.000000e+00> : vector<16x8xf32>
    %175 = tpu.matmul %174, %173, %cst_136 {dimension_numbers = #tpu.dot_dimension_numbers<[1], [0], [0], [1], [0, 0, 1, 1], [], []>} : vector<16x32xbf16>, vector<32x8xbf16>, vector<16x8xf32> -> vector<16x8xf32>
    %c0_137 = arith.constant 0 : index
    %c3_138 = arith.constant 3 : index
    %c0_139 = arith.constant 0 : index
    %c0_140 = arith.constant 0 : index
    %176 = vector.load %arg10[%c0_137, %c3_138, %c0_139, %c0_140] : memref<2x4x1x8xf32, #tpu.memory_space<vmem>>, vector<1x1x1x8xf32>
    %177 = vector.shape_cast %176 : vector<1x1x1x8xf32> to vector<1x8xf32>
    %178 = vector.broadcast %177 : vector<1x8xf32> to vector<16x8xf32>
    %179 = arith.addf %175, %178 : vector<16x8xf32>
    %180 = vector.shape_cast %163 : vector<16x8xf32> to vector<2x8x8xf32>
    %181 = vector.shape_cast %171 : vector<16x8xf32> to vector<2x8x8xf32>
    %182 = vector.shape_cast %179 : vector<16x8xf32> to vector<2x8x8xf32>
    %183 = arith.truncf %180 : vector<2x8x8xf32> to vector<2x8x8xbf16>
    %184 = arith.truncf %181 : vector<2x8x8xf32> to vector<2x8x8xbf16>
    "tpu.trace_start"() <{level = 10 : i32, message = "bqd,bkd->bqk"}> : () -> ()
    %cst_141 = arith.constant dense<0.000000e+00> : vector<2x8x8xf32>
    %185 = tpu.matmul %183, %184, %cst_141 {dimension_numbers = #tpu.dot_dimension_numbers<[2], [2], [1], [1], [0, 0, 0, 1, 1, 1], [0], [0]>} : vector<2x8x8xbf16>, vector<2x8x8xbf16>, vector<2x8x8xf32> -> vector<2x8x8xf32>
    "tpu.trace_stop"() : () -> ()
    %cst_142 = arith.constant dense<0xFF800000> : vector<2x8xf32>
    %186 = vector.multi_reduction <maximumf>, %185, %cst_142 [2] : vector<2x8x8xf32> to vector<2x8xf32>
    %187 = vector.shape_cast %186 : vector<2x8xf32> to vector<2x8x1xf32>
    %188 = vector.broadcast %187 : vector<2x8x1xf32> to vector<2x8x8xf32>
    %189 = arith.subf %185, %188 : vector<2x8x8xf32>
    %190 = math.exp %189 : vector<2x8x8xf32>
    %cst_143 = arith.constant dense<0.000000e+00> : vector<2x8xf32>
    %191 = vector.multi_reduction <add>, %190, %cst_143 [2] : vector<2x8x8xf32> to vector<2x8xf32>
    %192 = vector.shape_cast %191 : vector<2x8xf32> to vector<2x8x1xf32>
    %193 = vector.broadcast %192 : vector<2x8x1xf32> to vector<2x8x8xf32>
    %194 = arith.divf %190, %193 : vector<2x8x8xf32>
    %195 = arith.truncf %194 : vector<2x8x8xf32> to vector<2x8x8xbf16>
    %196 = arith.truncf %182 : vector<2x8x8xf32> to vector<2x8x8xbf16>
    "tpu.trace_start"() <{level = 10 : i32, message = "bqk,bkd->bqd"}> : () -> ()
    %cst_144 = arith.constant dense<0.000000e+00> : vector<2x8x8xf32>
    %197 = tpu.matmul %195, %196, %cst_144 {dimension_numbers = #tpu.dot_dimension_numbers<[2], [1], [1], [2], [0, 0, 0, 1, 1, 2], [0], [0]>} : vector<2x8x8xbf16>, vector<2x8x8xbf16>, vector<2x8x8xf32> -> vector<2x8x8xf32>
    "tpu.trace_stop"() : () -> ()
    %198 = vector.shape_cast %197 : vector<2x8x8xf32> to vector<16x8xf32>
    %c0_145 = arith.constant 0 : index
    %c3_146 = arith.constant 3 : index
    %c0_147 = arith.constant 0 : index
    %c0_148 = arith.constant 0 : index
    %199 = vector.load %arg11[%c0_145, %c3_146, %c0_147, %c0_148] : memref<2x4x8x32xbf16, #tpu.memory_space<vmem>>, vector<1x1x8x32xbf16>
    %200 = vector.shape_cast %199 : vector<1x1x8x32xbf16> to vector<8x32xbf16>
    %201 = arith.truncf %198 : vector<16x8xf32> to vector<16x8xbf16>
    %cst_149 = arith.constant dense<0.000000e+00> : vector<16x32xf32>
    %202 = tpu.matmul %201, %200, %cst_149 {dimension_numbers = #tpu.dot_dimension_numbers<[1], [0], [0], [1], [0, 0, 1, 1], [], []>} : vector<16x8xbf16>, vector<8x32xbf16>, vector<16x32xf32> -> vector<16x32xf32>
    %203 = arith.addf %155, %202 : vector<16x32xf32>
    %c0_150 = arith.constant 0 : index
    %c0_151 = arith.constant 0 : index
    %c0_152 = arith.constant 0 : index
    %204 = vector.load %arg12[%c0_150, %c0_151, %c0_152] : memref<2x1x32xf32, #tpu.memory_space<vmem>>, vector<1x1x32xf32>
    %205 = vector.shape_cast %204 : vector<1x1x32xf32> to vector<1x32xf32>
    %206 = vector.broadcast %205 : vector<1x32xf32> to vector<16x32xf32>
    %207 = arith.addf %203, %206 : vector<16x32xf32>
    %208 = arith.addf %12, %207 : vector<16x32xf32>
    %c0_153 = arith.constant 0 : index
    %c0_154 = arith.constant 0 : index
    %c0_155 = arith.constant 0 : index
    %209 = vector.load %arg13[%c0_153, %c0_154, %c0_155] : memref<2x1x32xf32, #tpu.memory_space<vmem>>, vector<1x1x32xf32>
    %210 = vector.shape_cast %209 : vector<1x1x32xf32> to vector<1x32xf32>
    %c0_156 = arith.constant 0 : index
    %c0_157 = arith.constant 0 : index
    %c0_158 = arith.constant 0 : index
    %211 = vector.load %arg14[%c0_156, %c0_157, %c0_158] : memref<2x1x32xf32, #tpu.memory_space<vmem>>, vector<1x1x32xf32>
    %212 = vector.shape_cast %211 : vector<1x1x32xf32> to vector<1x32xf32>
    %cst_159 = arith.constant dense<0.000000e+00> : vector<16xf32>
    %213 = vector.multi_reduction <add>, %208, %cst_159 [1] : vector<16x32xf32> to vector<16xf32>
    %214 = vector.shape_cast %213 : vector<16xf32> to vector<16x1xf32>
    %cst_160 = arith.constant 3.200000e+01 : f32
    %215 = vector.broadcast %cst_160 : f32 to vector<16x1xf32>
    %216 = arith.divf %214, %215 : vector<16x1xf32>
    %217 = vector.broadcast %216 : vector<16x1xf32> to vector<16x32xf32>
    %218 = arith.subf %208, %217 : vector<16x32xf32>
    %219 = arith.mulf %218, %218 : vector<16x32xf32>
    %cst_161 = arith.constant dense<0.000000e+00> : vector<16xf32>
    %220 = vector.multi_reduction <add>, %219, %cst_161 [1] : vector<16x32xf32> to vector<16xf32>
    %221 = vector.shape_cast %220 : vector<16xf32> to vector<16x1xf32>
    %cst_162 = arith.constant 3.200000e+01 : f32
    %222 = vector.broadcast %cst_162 : f32 to vector<16x1xf32>
    %223 = arith.divf %221, %222 : vector<16x1xf32>
    %224 = vector.broadcast %216 : vector<16x1xf32> to vector<16x32xf32>
    %225 = arith.subf %208, %224 : vector<16x32xf32>
    %cst_163 = arith.constant 9.99999974E-6 : f32
    %226 = vector.broadcast %cst_163 : f32 to vector<16x1xf32>
    %227 = arith.addf %223, %226 : vector<16x1xf32>
    %228 = math.rsqrt %227 : vector<16x1xf32>
    %229 = vector.broadcast %228 : vector<16x1xf32> to vector<16x32xf32>
    %230 = arith.mulf %225, %229 : vector<16x32xf32>
    %231 = vector.broadcast %210 : vector<1x32xf32> to vector<16x32xf32>
    %232 = arith.mulf %230, %231 : vector<16x32xf32>
    %233 = vector.broadcast %212 : vector<1x32xf32> to vector<16x32xf32>
    %234 = arith.addf %232, %233 : vector<16x32xf32>
    %c0_164 = arith.constant 0 : index
    %c0_165 = arith.constant 0 : index
    %c0_166 = arith.constant 0 : index
    %235 = vector.load %arg15[%c0_164, %c0_165, %c0_166] : memref<2x32x64xbf16, #tpu.memory_space<vmem>>, vector<1x32x64xbf16>
    %236 = vector.shape_cast %235 : vector<1x32x64xbf16> to vector<32x64xbf16>
    %237 = arith.truncf %234 : vector<16x32xf32> to vector<16x32xbf16>
    %cst_167 = arith.constant dense<0.000000e+00> : vector<16x64xf32>
    %238 = tpu.matmul %237, %236, %cst_167 {dimension_numbers = #tpu.dot_dimension_numbers<[1], [0], [0], [1], [0, 0, 1, 1], [], []>} : vector<16x32xbf16>, vector<32x64xbf16>, vector<16x64xf32> -> vector<16x64xf32>
    %c0_168 = arith.constant 0 : index
    %c0_169 = arith.constant 0 : index
    %c0_170 = arith.constant 0 : index
    %239 = vector.load %arg16[%c0_168, %c0_169, %c0_170] : memref<2x1x64xf32, #tpu.memory_space<vmem>>, vector<1x1x64xf32>
    %240 = vector.shape_cast %239 : vector<1x1x64xf32> to vector<1x64xf32>
    %241 = vector.broadcast %240 : vector<1x64xf32> to vector<16x64xf32>
    %242 = arith.addf %238, %241 : vector<16x64xf32>
    %cst_171 = arith.constant 0.000000e+00 : f32
    %243 = vector.broadcast %cst_171 : f32 to vector<16x64xf32>
    %244 = arith.maximumf %242, %243 : vector<16x64xf32>
    %c0_172 = arith.constant 0 : index
    %c0_173 = arith.constant 0 : index
    %c0_174 = arith.constant 0 : index
    %245 = vector.load %arg17[%c0_172, %c0_173, %c0_174] : memref<2x64x32xbf16, #tpu.memory_space<vmem>>, vector<1x64x32xbf16>
    %246 = vector.shape_cast %245 : vector<1x64x32xbf16> to vector<64x32xbf16>
    %247 = arith.truncf %244 : vector<16x64xf32> to vector<16x64xbf16>
    %cst_175 = arith.constant dense<0.000000e+00> : vector<16x32xf32>
    %248 = tpu.matmul %247, %246, %cst_175 {dimension_numbers = #tpu.dot_dimension_numbers<[1], [0], [0], [1], [0, 0, 1, 1], [], []>} : vector<16x64xbf16>, vector<64x32xbf16>, vector<16x32xf32> -> vector<16x32xf32>
    %c0_176 = arith.constant 0 : index
    %c0_177 = arith.constant 0 : index
    %c0_178 = arith.constant 0 : index
    %249 = vector.load %arg18[%c0_176, %c0_177, %c0_178] : memref<2x1x32xf32, #tpu.memory_space<vmem>>, vector<1x1x32xf32>
    %250 = vector.shape_cast %249 : vector<1x1x32xf32> to vector<1x32xf32>
    %251 = vector.broadcast %250 : vector<1x32xf32> to vector<16x32xf32>
    %252 = arith.addf %248, %251 : vector<16x32xf32>
    %253 = arith.addf %234, %252 : vector<16x32xf32>
    %c0_179 = arith.constant 0 : index
    %c0_180 = arith.constant 0 : index
    %c0_181 = arith.constant 0 : index
    %254 = vector.load %arg19[%c0_179, %c0_180, %c0_181] : memref<2x1x32xf32, #tpu.memory_space<vmem>>, vector<1x1x32xf32>
    %255 = vector.shape_cast %254 : vector<1x1x32xf32> to vector<1x32xf32>
    %c0_182 = arith.constant 0 : index
    %c0_183 = arith.constant 0 : index
    %c0_184 = arith.constant 0 : index
    %256 = vector.load %arg20[%c0_182, %c0_183, %c0_184] : memref<2x1x32xf32, #tpu.memory_space<vmem>>, vector<1x1x32xf32>
    %257 = vector.shape_cast %256 : vector<1x1x32xf32> to vector<1x32xf32>
    %cst_185 = arith.constant dense<0.000000e+00> : vector<16xf32>
    %258 = vector.multi_reduction <add>, %253, %cst_185 [1] : vector<16x32xf32> to vector<16xf32>
    %259 = vector.shape_cast %258 : vector<16xf32> to vector<16x1xf32>
    %cst_186 = arith.constant 3.200000e+01 : f32
    %260 = vector.broadcast %cst_186 : f32 to vector<16x1xf32>
    %261 = arith.divf %259, %260 : vector<16x1xf32>
    %262 = vector.broadcast %261 : vector<16x1xf32> to vector<16x32xf32>
    %263 = arith.subf %253, %262 : vector<16x32xf32>
    %264 = arith.mulf %263, %263 : vector<16x32xf32>
    %cst_187 = arith.constant dense<0.000000e+00> : vector<16xf32>
    %265 = vector.multi_reduction <add>, %264, %cst_187 [1] : vector<16x32xf32> to vector<16xf32>
    %266 = vector.shape_cast %265 : vector<16xf32> to vector<16x1xf32>
    %cst_188 = arith.constant 3.200000e+01 : f32
    %267 = vector.broadcast %cst_188 : f32 to vector<16x1xf32>
    %268 = arith.divf %266, %267 : vector<16x1xf32>
    %269 = vector.broadcast %261 : vector<16x1xf32> to vector<16x32xf32>
    %270 = arith.subf %253, %269 : vector<16x32xf32>
    %cst_189 = arith.constant 9.99999974E-6 : f32
    %271 = vector.broadcast %cst_189 : f32 to vector<16x1xf32>
    %272 = arith.addf %268, %271 : vector<16x1xf32>
    %273 = math.rsqrt %272 : vector<16x1xf32>
    %274 = vector.broadcast %273 : vector<16x1xf32> to vector<16x32xf32>
    %275 = arith.mulf %270, %274 : vector<16x32xf32>
    %276 = vector.broadcast %255 : vector<1x32xf32> to vector<16x32xf32>
    %277 = arith.mulf %275, %276 : vector<16x32xf32>
    %278 = vector.broadcast %257 : vector<1x32xf32> to vector<16x32xf32>
    %279 = arith.addf %277, %278 : vector<16x32xf32>
    %c1_190 = arith.constant 1 : index
    %c0_191 = arith.constant 0 : index
    %c0_192 = arith.constant 0 : index
    %c0_193 = arith.constant 0 : index
    %280 = vector.load %arg5[%c1_190, %c0_191, %c0_192, %c0_193] : memref<2x4x32x8xbf16, #tpu.memory_space<vmem>>, vector<1x1x32x8xbf16>
    %281 = vector.shape_cast %280 : vector<1x1x32x8xbf16> to vector<32x8xbf16>
    %282 = arith.truncf %279 : vector<16x32xf32> to vector<16x32xbf16>
    %cst_194 = arith.constant dense<0.000000e+00> : vector<16x8xf32>
    %283 = tpu.matmul %282, %281, %cst_194 {dimension_numbers = #tpu.dot_dimension_numbers<[1], [0], [0], [1], [0, 0, 1, 1], [], []>} : vector<16x32xbf16>, vector<32x8xbf16>, vector<16x8xf32> -> vector<16x8xf32>
    %c1_195 = arith.constant 1 : index
    %c0_196 = arith.constant 0 : index
    %c0_197 = arith.constant 0 : index
    %c0_198 = arith.constant 0 : index
    %284 = vector.load %arg6[%c1_195, %c0_196, %c0_197, %c0_198] : memref<2x4x1x8xf32, #tpu.memory_space<vmem>>, vector<1x1x1x8xf32>
    %285 = vector.shape_cast %284 : vector<1x1x1x8xf32> to vector<1x8xf32>
    %286 = vector.broadcast %285 : vector<1x8xf32> to vector<16x8xf32>
    %287 = arith.addf %283, %286 : vector<16x8xf32>
    %c1_199 = arith.constant 1 : index
    %c0_200 = arith.constant 0 : index
    %c0_201 = arith.constant 0 : index
    %c0_202 = arith.constant 0 : index
    %288 = vector.load %arg7[%c1_199, %c0_200, %c0_201, %c0_202] : memref<2x4x32x8xbf16, #tpu.memory_space<vmem>>, vector<1x1x32x8xbf16>
    %289 = vector.shape_cast %288 : vector<1x1x32x8xbf16> to vector<32x8xbf16>
    %290 = arith.truncf %279 : vector<16x32xf32> to vector<16x32xbf16>
    %cst_203 = arith.constant dense<0.000000e+00> : vector<16x8xf32>
    %291 = tpu.matmul %290, %289, %cst_203 {dimension_numbers = #tpu.dot_dimension_numbers<[1], [0], [0], [1], [0, 0, 1, 1], [], []>} : vector<16x32xbf16>, vector<32x8xbf16>, vector<16x8xf32> -> vector<16x8xf32>
    %c1_204 = arith.constant 1 : index
    %c0_205 = arith.constant 0 : index
    %c0_206 = arith.constant 0 : index
    %c0_207 = arith.constant 0 : index
    %292 = vector.load %arg8[%c1_204, %c0_205, %c0_206, %c0_207] : memref<2x4x1x8xf32, #tpu.memory_space<vmem>>, vector<1x1x1x8xf32>
    %293 = vector.shape_cast %292 : vector<1x1x1x8xf32> to vector<1x8xf32>
    %294 = vector.broadcast %293 : vector<1x8xf32> to vector<16x8xf32>
    %295 = arith.addf %291, %294 : vector<16x8xf32>
    %c1_208 = arith.constant 1 : index
    %c0_209 = arith.constant 0 : index
    %c0_210 = arith.constant 0 : index
    %c0_211 = arith.constant 0 : index
    %296 = vector.load %arg9[%c1_208, %c0_209, %c0_210, %c0_211] : memref<2x4x32x8xbf16, #tpu.memory_space<vmem>>, vector<1x1x32x8xbf16>
    %297 = vector.shape_cast %296 : vector<1x1x32x8xbf16> to vector<32x8xbf16>
    %298 = arith.truncf %279 : vector<16x32xf32> to vector<16x32xbf16>
    %cst_212 = arith.constant dense<0.000000e+00> : vector<16x8xf32>
    %299 = tpu.matmul %298, %297, %cst_212 {dimension_numbers = #tpu.dot_dimension_numbers<[1], [0], [0], [1], [0, 0, 1, 1], [], []>} : vector<16x32xbf16>, vector<32x8xbf16>, vector<16x8xf32> -> vector<16x8xf32>
    %c1_213 = arith.constant 1 : index
    %c0_214 = arith.constant 0 : index
    %c0_215 = arith.constant 0 : index
    %c0_216 = arith.constant 0 : index
    %300 = vector.load %arg10[%c1_213, %c0_214, %c0_215, %c0_216] : memref<2x4x1x8xf32, #tpu.memory_space<vmem>>, vector<1x1x1x8xf32>
    %301 = vector.shape_cast %300 : vector<1x1x1x8xf32> to vector<1x8xf32>
    %302 = vector.broadcast %301 : vector<1x8xf32> to vector<16x8xf32>
    %303 = arith.addf %299, %302 : vector<16x8xf32>
    %304 = vector.shape_cast %287 : vector<16x8xf32> to vector<2x8x8xf32>
    %305 = vector.shape_cast %295 : vector<16x8xf32> to vector<2x8x8xf32>
    %306 = vector.shape_cast %303 : vector<16x8xf32> to vector<2x8x8xf32>
    %307 = arith.truncf %304 : vector<2x8x8xf32> to vector<2x8x8xbf16>
    %308 = arith.truncf %305 : vector<2x8x8xf32> to vector<2x8x8xbf16>
    "tpu.trace_start"() <{level = 10 : i32, message = "bqd,bkd->bqk"}> : () -> ()
    %cst_217 = arith.constant dense<0.000000e+00> : vector<2x8x8xf32>
    %309 = tpu.matmul %307, %308, %cst_217 {dimension_numbers = #tpu.dot_dimension_numbers<[2], [2], [1], [1], [0, 0, 0, 1, 1, 1], [0], [0]>} : vector<2x8x8xbf16>, vector<2x8x8xbf16>, vector<2x8x8xf32> -> vector<2x8x8xf32>
    "tpu.trace_stop"() : () -> ()
    %cst_218 = arith.constant dense<0xFF800000> : vector<2x8xf32>
    %310 = vector.multi_reduction <maximumf>, %309, %cst_218 [2] : vector<2x8x8xf32> to vector<2x8xf32>
    %311 = vector.shape_cast %310 : vector<2x8xf32> to vector<2x8x1xf32>
    %312 = vector.broadcast %311 : vector<2x8x1xf32> to vector<2x8x8xf32>
    %313 = arith.subf %309, %312 : vector<2x8x8xf32>
    %314 = math.exp %313 : vector<2x8x8xf32>
    %cst_219 = arith.constant dense<0.000000e+00> : vector<2x8xf32>
    %315 = vector.multi_reduction <add>, %314, %cst_219 [2] : vector<2x8x8xf32> to vector<2x8xf32>
    %316 = vector.shape_cast %315 : vector<2x8xf32> to vector<2x8x1xf32>
    %317 = vector.broadcast %316 : vector<2x8x1xf32> to vector<2x8x8xf32>
    %318 = arith.divf %314, %317 : vector<2x8x8xf32>
    %319 = arith.truncf %318 : vector<2x8x8xf32> to vector<2x8x8xbf16>
    %320 = arith.truncf %306 : vector<2x8x8xf32> to vector<2x8x8xbf16>
    "tpu.trace_start"() <{level = 10 : i32, message = "bqk,bkd->bqd"}> : () -> ()
    %cst_220 = arith.constant dense<0.000000e+00> : vector<2x8x8xf32>
    %321 = tpu.matmul %319, %320, %cst_220 {dimension_numbers = #tpu.dot_dimension_numbers<[2], [1], [1], [2], [0, 0, 0, 1, 1, 2], [0], [0]>} : vector<2x8x8xbf16>, vector<2x8x8xbf16>, vector<2x8x8xf32> -> vector<2x8x8xf32>
    "tpu.trace_stop"() : () -> ()
    %322 = vector.shape_cast %321 : vector<2x8x8xf32> to vector<16x8xf32>
    %c1_221 = arith.constant 1 : index
    %c0_222 = arith.constant 0 : index
    %c0_223 = arith.constant 0 : index
    %c0_224 = arith.constant 0 : index
    %323 = vector.load %arg11[%c1_221, %c0_222, %c0_223, %c0_224] : memref<2x4x8x32xbf16, #tpu.memory_space<vmem>>, vector<1x1x8x32xbf16>
    %324 = vector.shape_cast %323 : vector<1x1x8x32xbf16> to vector<8x32xbf16>
    %325 = arith.truncf %322 : vector<16x8xf32> to vector<16x8xbf16>
    %cst_225 = arith.constant dense<0.000000e+00> : vector<16x32xf32>
    %326 = tpu.matmul %325, %324, %cst_225 {dimension_numbers = #tpu.dot_dimension_numbers<[1], [0], [0], [1], [0, 0, 1, 1], [], []>} : vector<16x8xbf16>, vector<8x32xbf16>, vector<16x32xf32> -> vector<16x32xf32>
    %c1_226 = arith.constant 1 : index
    %c1_227 = arith.constant 1 : index
    %c0_228 = arith.constant 0 : index
    %c0_229 = arith.constant 0 : index
    %327 = vector.load %arg5[%c1_226, %c1_227, %c0_228, %c0_229] : memref<2x4x32x8xbf16, #tpu.memory_space<vmem>>, vector<1x1x32x8xbf16>
    %328 = vector.shape_cast %327 : vector<1x1x32x8xbf16> to vector<32x8xbf16>
    %329 = arith.truncf %279 : vector<16x32xf32> to vector<16x32xbf16>
    %cst_230 = arith.constant dense<0.000000e+00> : vector<16x8xf32>
    %330 = tpu.matmul %329, %328, %cst_230 {dimension_numbers = #tpu.dot_dimension_numbers<[1], [0], [0], [1], [0, 0, 1, 1], [], []>} : vector<16x32xbf16>, vector<32x8xbf16>, vector<16x8xf32> -> vector<16x8xf32>
    %c1_231 = arith.constant 1 : index
    %c1_232 = arith.constant 1 : index
    %c0_233 = arith.constant 0 : index
    %c0_234 = arith.constant 0 : index
    %331 = vector.load %arg6[%c1_231, %c1_232, %c0_233, %c0_234] : memref<2x4x1x8xf32, #tpu.memory_space<vmem>>, vector<1x1x1x8xf32>
    %332 = vector.shape_cast %331 : vector<1x1x1x8xf32> to vector<1x8xf32>
    %333 = vector.broadcast %332 : vector<1x8xf32> to vector<16x8xf32>
    %334 = arith.addf %330, %333 : vector<16x8xf32>
    %c1_235 = arith.constant 1 : index
    %c1_236 = arith.constant 1 : index
    %c0_237 = arith.constant 0 : index
    %c0_238 = arith.constant 0 : index
    %335 = vector.load %arg7[%c1_235, %c1_236, %c0_237, %c0_238] : memref<2x4x32x8xbf16, #tpu.memory_space<vmem>>, vector<1x1x32x8xbf16>
    %336 = vector.shape_cast %335 : vector<1x1x32x8xbf16> to vector<32x8xbf16>
    %337 = arith.truncf %279 : vector<16x32xf32> to vector<16x32xbf16>
    %cst_239 = arith.constant dense<0.000000e+00> : vector<16x8xf32>
    %338 = tpu.matmul %337, %336, %cst_239 {dimension_numbers = #tpu.dot_dimension_numbers<[1], [0], [0], [1], [0, 0, 1, 1], [], []>} : vector<16x32xbf16>, vector<32x8xbf16>, vector<16x8xf32> -> vector<16x8xf32>
    %c1_240 = arith.constant 1 : index
    %c1_241 = arith.constant 1 : index
    %c0_242 = arith.constant 0 : index
    %c0_243 = arith.constant 0 : index
    %339 = vector.load %arg8[%c1_240, %c1_241, %c0_242, %c0_243] : memref<2x4x1x8xf32, #tpu.memory_space<vmem>>, vector<1x1x1x8xf32>
    %340 = vector.shape_cast %339 : vector<1x1x1x8xf32> to vector<1x8xf32>
    %341 = vector.broadcast %340 : vector<1x8xf32> to vector<16x8xf32>
    %342 = arith.addf %338, %341 : vector<16x8xf32>
    %c1_244 = arith.constant 1 : index
    %c1_245 = arith.constant 1 : index
    %c0_246 = arith.constant 0 : index
    %c0_247 = arith.constant 0 : index
    %343 = vector.load %arg9[%c1_244, %c1_245, %c0_246, %c0_247] : memref<2x4x32x8xbf16, #tpu.memory_space<vmem>>, vector<1x1x32x8xbf16>
    %344 = vector.shape_cast %343 : vector<1x1x32x8xbf16> to vector<32x8xbf16>
    %345 = arith.truncf %279 : vector<16x32xf32> to vector<16x32xbf16>
    %cst_248 = arith.constant dense<0.000000e+00> : vector<16x8xf32>
    %346 = tpu.matmul %345, %344, %cst_248 {dimension_numbers = #tpu.dot_dimension_numbers<[1], [0], [0], [1], [0, 0, 1, 1], [], []>} : vector<16x32xbf16>, vector<32x8xbf16>, vector<16x8xf32> -> vector<16x8xf32>
    %c1_249 = arith.constant 1 : index
    %c1_250 = arith.constant 1 : index
    %c0_251 = arith.constant 0 : index
    %c0_252 = arith.constant 0 : index
    %347 = vector.load %arg10[%c1_249, %c1_250, %c0_251, %c0_252] : memref<2x4x1x8xf32, #tpu.memory_space<vmem>>, vector<1x1x1x8xf32>
    %348 = vector.shape_cast %347 : vector<1x1x1x8xf32> to vector<1x8xf32>
    %349 = vector.broadcast %348 : vector<1x8xf32> to vector<16x8xf32>
    %350 = arith.addf %346, %349 : vector<16x8xf32>
    %351 = vector.shape_cast %334 : vector<16x8xf32> to vector<2x8x8xf32>
    %352 = vector.shape_cast %342 : vector<16x8xf32> to vector<2x8x8xf32>
    %353 = vector.shape_cast %350 : vector<16x8xf32> to vector<2x8x8xf32>
    %354 = arith.truncf %351 : vector<2x8x8xf32> to vector<2x8x8xbf16>
    %355 = arith.truncf %352 : vector<2x8x8xf32> to vector<2x8x8xbf16>
    "tpu.trace_start"() <{level = 10 : i32, message = "bqd,bkd->bqk"}> : () -> ()
    %cst_253 = arith.constant dense<0.000000e+00> : vector<2x8x8xf32>
    %356 = tpu.matmul %354, %355, %cst_253 {dimension_numbers = #tpu.dot_dimension_numbers<[2], [2], [1], [1], [0, 0, 0, 1, 1, 1], [0], [0]>} : vector<2x8x8xbf16>, vector<2x8x8xbf16>, vector<2x8x8xf32> -> vector<2x8x8xf32>
    "tpu.trace_stop"() : () -> ()
    %cst_254 = arith.constant dense<0xFF800000> : vector<2x8xf32>
    %357 = vector.multi_reduction <maximumf>, %356, %cst_254 [2] : vector<2x8x8xf32> to vector<2x8xf32>
    %358 = vector.shape_cast %357 : vector<2x8xf32> to vector<2x8x1xf32>
    %359 = vector.broadcast %358 : vector<2x8x1xf32> to vector<2x8x8xf32>
    %360 = arith.subf %356, %359 : vector<2x8x8xf32>
    %361 = math.exp %360 : vector<2x8x8xf32>
    %cst_255 = arith.constant dense<0.000000e+00> : vector<2x8xf32>
    %362 = vector.multi_reduction <add>, %361, %cst_255 [2] : vector<2x8x8xf32> to vector<2x8xf32>
    %363 = vector.shape_cast %362 : vector<2x8xf32> to vector<2x8x1xf32>
    %364 = vector.broadcast %363 : vector<2x8x1xf32> to vector<2x8x8xf32>
    %365 = arith.divf %361, %364 : vector<2x8x8xf32>
    %366 = arith.truncf %365 : vector<2x8x8xf32> to vector<2x8x8xbf16>
    %367 = arith.truncf %353 : vector<2x8x8xf32> to vector<2x8x8xbf16>
    "tpu.trace_start"() <{level = 10 : i32, message = "bqk,bkd->bqd"}> : () -> ()
    %cst_256 = arith.constant dense<0.000000e+00> : vector<2x8x8xf32>
    %368 = tpu.matmul %366, %367, %cst_256 {dimension_numbers = #tpu.dot_dimension_numbers<[2], [1], [1], [2], [0, 0, 0, 1, 1, 2], [0], [0]>} : vector<2x8x8xbf16>, vector<2x8x8xbf16>, vector<2x8x8xf32> -> vector<2x8x8xf32>
    "tpu.trace_stop"() : () -> ()
    %369 = vector.shape_cast %368 : vector<2x8x8xf32> to vector<16x8xf32>
    %c1_257 = arith.constant 1 : index
    %c1_258 = arith.constant 1 : index
    %c0_259 = arith.constant 0 : index
    %c0_260 = arith.constant 0 : index
    %370 = vector.load %arg11[%c1_257, %c1_258, %c0_259, %c0_260] : memref<2x4x8x32xbf16, #tpu.memory_space<vmem>>, vector<1x1x8x32xbf16>
    %371 = vector.shape_cast %370 : vector<1x1x8x32xbf16> to vector<8x32xbf16>
    %372 = arith.truncf %369 : vector<16x8xf32> to vector<16x8xbf16>
    %cst_261 = arith.constant dense<0.000000e+00> : vector<16x32xf32>
    %373 = tpu.matmul %372, %371, %cst_261 {dimension_numbers = #tpu.dot_dimension_numbers<[1], [0], [0], [1], [0, 0, 1, 1], [], []>} : vector<16x8xbf16>, vector<8x32xbf16>, vector<16x32xf32> -> vector<16x32xf32>
    %374 = arith.addf %326, %373 : vector<16x32xf32>
    %c1_262 = arith.constant 1 : index
    %c2_263 = arith.constant 2 : index
    %c0_264 = arith.constant 0 : index
    %c0_265 = arith.constant 0 : index
    %375 = vector.load %arg5[%c1_262, %c2_263, %c0_264, %c0_265] : memref<2x4x32x8xbf16, #tpu.memory_space<vmem>>, vector<1x1x32x8xbf16>
    %376 = vector.shape_cast %375 : vector<1x1x32x8xbf16> to vector<32x8xbf16>
    %377 = arith.truncf %279 : vector<16x32xf32> to vector<16x32xbf16>
    %cst_266 = arith.constant dense<0.000000e+00> : vector<16x8xf32>
    %378 = tpu.matmul %377, %376, %cst_266 {dimension_numbers = #tpu.dot_dimension_numbers<[1], [0], [0], [1], [0, 0, 1, 1], [], []>} : vector<16x32xbf16>, vector<32x8xbf16>, vector<16x8xf32> -> vector<16x8xf32>
    %c1_267 = arith.constant 1 : index
    %c2_268 = arith.constant 2 : index
    %c0_269 = arith.constant 0 : index
    %c0_270 = arith.constant 0 : index
    %379 = vector.load %arg6[%c1_267, %c2_268, %c0_269, %c0_270] : memref<2x4x1x8xf32, #tpu.memory_space<vmem>>, vector<1x1x1x8xf32>
    %380 = vector.shape_cast %379 : vector<1x1x1x8xf32> to vector<1x8xf32>
    %381 = vector.broadcast %380 : vector<1x8xf32> to vector<16x8xf32>
    %382 = arith.addf %378, %381 : vector<16x8xf32>
    %c1_271 = arith.constant 1 : index
    %c2_272 = arith.constant 2 : index
    %c0_273 = arith.constant 0 : index
    %c0_274 = arith.constant 0 : index
    %383 = vector.load %arg7[%c1_271, %c2_272, %c0_273, %c0_274] : memref<2x4x32x8xbf16, #tpu.memory_space<vmem>>, vector<1x1x32x8xbf16>
    %384 = vector.shape_cast %383 : vector<1x1x32x8xbf16> to vector<32x8xbf16>
    %385 = arith.truncf %279 : vector<16x32xf32> to vector<16x32xbf16>
    %cst_275 = arith.constant dense<0.000000e+00> : vector<16x8xf32>
    %386 = tpu.matmul %385, %384, %cst_275 {dimension_numbers = #tpu.dot_dimension_numbers<[1], [0], [0], [1], [0, 0, 1, 1], [], []>} : vector<16x32xbf16>, vector<32x8xbf16>, vector<16x8xf32> -> vector<16x8xf32>
    %c1_276 = arith.constant 1 : index
    %c2_277 = arith.constant 2 : index
    %c0_278 = arith.constant 0 : index
    %c0_279 = arith.constant 0 : index
    %387 = vector.load %arg8[%c1_276, %c2_277, %c0_278, %c0_279] : memref<2x4x1x8xf32, #tpu.memory_space<vmem>>, vector<1x1x1x8xf32>
    %388 = vector.shape_cast %387 : vector<1x1x1x8xf32> to vector<1x8xf32>
    %389 = vector.broadcast %388 : vector<1x8xf32> to vector<16x8xf32>
    %390 = arith.addf %386, %389 : vector<16x8xf32>
    %c1_280 = arith.constant 1 : index
    %c2_281 = arith.constant 2 : index
    %c0_282 = arith.constant 0 : index
    %c0_283 = arith.constant 0 : index
    %391 = vector.load %arg9[%c1_280, %c2_281, %c0_282, %c0_283] : memref<2x4x32x8xbf16, #tpu.memory_space<vmem>>, vector<1x1x32x8xbf16>
    %392 = vector.shape_cast %391 : vector<1x1x32x8xbf16> to vector<32x8xbf16>
    %393 = arith.truncf %279 : vector<16x32xf32> to vector<16x32xbf16>
    %cst_284 = arith.constant dense<0.000000e+00> : vector<16x8xf32>
    %394 = tpu.matmul %393, %392, %cst_284 {dimension_numbers = #tpu.dot_dimension_numbers<[1], [0], [0], [1], [0, 0, 1, 1], [], []>} : vector<16x32xbf16>, vector<32x8xbf16>, vector<16x8xf32> -> vector<16x8xf32>
    %c1_285 = arith.constant 1 : index
    %c2_286 = arith.constant 2 : index
    %c0_287 = arith.constant 0 : index
    %c0_288 = arith.constant 0 : index
    %395 = vector.load %arg10[%c1_285, %c2_286, %c0_287, %c0_288] : memref<2x4x1x8xf32, #tpu.memory_space<vmem>>, vector<1x1x1x8xf32>
    %396 = vector.shape_cast %395 : vector<1x1x1x8xf32> to vector<1x8xf32>
    %397 = vector.broadcast %396 : vector<1x8xf32> to vector<16x8xf32>
    %398 = arith.addf %394, %397 : vector<16x8xf32>
    %399 = vector.shape_cast %382 : vector<16x8xf32> to vector<2x8x8xf32>
    %400 = vector.shape_cast %390 : vector<16x8xf32> to vector<2x8x8xf32>
    %401 = vector.shape_cast %398 : vector<16x8xf32> to vector<2x8x8xf32>
    %402 = arith.truncf %399 : vector<2x8x8xf32> to vector<2x8x8xbf16>
    %403 = arith.truncf %400 : vector<2x8x8xf32> to vector<2x8x8xbf16>
    "tpu.trace_start"() <{level = 10 : i32, message = "bqd,bkd->bqk"}> : () -> ()
    %cst_289 = arith.constant dense<0.000000e+00> : vector<2x8x8xf32>
    %404 = tpu.matmul %402, %403, %cst_289 {dimension_numbers = #tpu.dot_dimension_numbers<[2], [2], [1], [1], [0, 0, 0, 1, 1, 1], [0], [0]>} : vector<2x8x8xbf16>, vector<2x8x8xbf16>, vector<2x8x8xf32> -> vector<2x8x8xf32>
    "tpu.trace_stop"() : () -> ()
    %cst_290 = arith.constant dense<0xFF800000> : vector<2x8xf32>
    %405 = vector.multi_reduction <maximumf>, %404, %cst_290 [2] : vector<2x8x8xf32> to vector<2x8xf32>
    %406 = vector.shape_cast %405 : vector<2x8xf32> to vector<2x8x1xf32>
    %407 = vector.broadcast %406 : vector<2x8x1xf32> to vector<2x8x8xf32>
    %408 = arith.subf %404, %407 : vector<2x8x8xf32>
    %409 = math.exp %408 : vector<2x8x8xf32>
    %cst_291 = arith.constant dense<0.000000e+00> : vector<2x8xf32>
    %410 = vector.multi_reduction <add>, %409, %cst_291 [2] : vector<2x8x8xf32> to vector<2x8xf32>
    %411 = vector.shape_cast %410 : vector<2x8xf32> to vector<2x8x1xf32>
    %412 = vector.broadcast %411 : vector<2x8x1xf32> to vector<2x8x8xf32>
    %413 = arith.divf %409, %412 : vector<2x8x8xf32>
    %414 = arith.truncf %413 : vector<2x8x8xf32> to vector<2x8x8xbf16>
    %415 = arith.truncf %401 : vector<2x8x8xf32> to vector<2x8x8xbf16>
    "tpu.trace_start"() <{level = 10 : i32, message = "bqk,bkd->bqd"}> : () -> ()
    %cst_292 = arith.constant dense<0.000000e+00> : vector<2x8x8xf32>
    %416 = tpu.matmul %414, %415, %cst_292 {dimension_numbers = #tpu.dot_dimension_numbers<[2], [1], [1], [2], [0, 0, 0, 1, 1, 2], [0], [0]>} : vector<2x8x8xbf16>, vector<2x8x8xbf16>, vector<2x8x8xf32> -> vector<2x8x8xf32>
    "tpu.trace_stop"() : () -> ()
    %417 = vector.shape_cast %416 : vector<2x8x8xf32> to vector<16x8xf32>
    %c1_293 = arith.constant 1 : index
    %c2_294 = arith.constant 2 : index
    %c0_295 = arith.constant 0 : index
    %c0_296 = arith.constant 0 : index
    %418 = vector.load %arg11[%c1_293, %c2_294, %c0_295, %c0_296] : memref<2x4x8x32xbf16, #tpu.memory_space<vmem>>, vector<1x1x8x32xbf16>
    %419 = vector.shape_cast %418 : vector<1x1x8x32xbf16> to vector<8x32xbf16>
    %420 = arith.truncf %417 : vector<16x8xf32> to vector<16x8xbf16>
    %cst_297 = arith.constant dense<0.000000e+00> : vector<16x32xf32>
    %421 = tpu.matmul %420, %419, %cst_297 {dimension_numbers = #tpu.dot_dimension_numbers<[1], [0], [0], [1], [0, 0, 1, 1], [], []>} : vector<16x8xbf16>, vector<8x32xbf16>, vector<16x32xf32> -> vector<16x32xf32>
    %422 = arith.addf %374, %421 : vector<16x32xf32>
    %c1_298 = arith.constant 1 : index
    %c3_299 = arith.constant 3 : index
    %c0_300 = arith.constant 0 : index
    %c0_301 = arith.constant 0 : index
    %423 = vector.load %arg5[%c1_298, %c3_299, %c0_300, %c0_301] : memref<2x4x32x8xbf16, #tpu.memory_space<vmem>>, vector<1x1x32x8xbf16>
    %424 = vector.shape_cast %423 : vector<1x1x32x8xbf16> to vector<32x8xbf16>
    %425 = arith.truncf %279 : vector<16x32xf32> to vector<16x32xbf16>
    %cst_302 = arith.constant dense<0.000000e+00> : vector<16x8xf32>
    %426 = tpu.matmul %425, %424, %cst_302 {dimension_numbers = #tpu.dot_dimension_numbers<[1], [0], [0], [1], [0, 0, 1, 1], [], []>} : vector<16x32xbf16>, vector<32x8xbf16>, vector<16x8xf32> -> vector<16x8xf32>
    %c1_303 = arith.constant 1 : index
    %c3_304 = arith.constant 3 : index
    %c0_305 = arith.constant 0 : index
    %c0_306 = arith.constant 0 : index
    %427 = vector.load %arg6[%c1_303, %c3_304, %c0_305, %c0_306] : memref<2x4x1x8xf32, #tpu.memory_space<vmem>>, vector<1x1x1x8xf32>
    %428 = vector.shape_cast %427 : vector<1x1x1x8xf32> to vector<1x8xf32>
    %429 = vector.broadcast %428 : vector<1x8xf32> to vector<16x8xf32>
    %430 = arith.addf %426, %429 : vector<16x8xf32>
    %c1_307 = arith.constant 1 : index
    %c3_308 = arith.constant 3 : index
    %c0_309 = arith.constant 0 : index
    %c0_310 = arith.constant 0 : index
    %431 = vector.load %arg7[%c1_307, %c3_308, %c0_309, %c0_310] : memref<2x4x32x8xbf16, #tpu.memory_space<vmem>>, vector<1x1x32x8xbf16>
    %432 = vector.shape_cast %431 : vector<1x1x32x8xbf16> to vector<32x8xbf16>
    %433 = arith.truncf %279 : vector<16x32xf32> to vector<16x32xbf16>
    %cst_311 = arith.constant dense<0.000000e+00> : vector<16x8xf32>
    %434 = tpu.matmul %433, %432, %cst_311 {dimension_numbers = #tpu.dot_dimension_numbers<[1], [0], [0], [1], [0, 0, 1, 1], [], []>} : vector<16x32xbf16>, vector<32x8xbf16>, vector<16x8xf32> -> vector<16x8xf32>
    %c1_312 = arith.constant 1 : index
    %c3_313 = arith.constant 3 : index
    %c0_314 = arith.constant 0 : index
    %c0_315 = arith.constant 0 : index
    %435 = vector.load %arg8[%c1_312, %c3_313, %c0_314, %c0_315] : memref<2x4x1x8xf32, #tpu.memory_space<vmem>>, vector<1x1x1x8xf32>
    %436 = vector.shape_cast %435 : vector<1x1x1x8xf32> to vector<1x8xf32>
    %437 = vector.broadcast %436 : vector<1x8xf32> to vector<16x8xf32>
    %438 = arith.addf %434, %437 : vector<16x8xf32>
    %c1_316 = arith.constant 1 : index
    %c3_317 = arith.constant 3 : index
    %c0_318 = arith.constant 0 : index
    %c0_319 = arith.constant 0 : index
    %439 = vector.load %arg9[%c1_316, %c3_317, %c0_318, %c0_319] : memref<2x4x32x8xbf16, #tpu.memory_space<vmem>>, vector<1x1x32x8xbf16>
    %440 = vector.shape_cast %439 : vector<1x1x32x8xbf16> to vector<32x8xbf16>
    %441 = arith.truncf %279 : vector<16x32xf32> to vector<16x32xbf16>
    %cst_320 = arith.constant dense<0.000000e+00> : vector<16x8xf32>
    %442 = tpu.matmul %441, %440, %cst_320 {dimension_numbers = #tpu.dot_dimension_numbers<[1], [0], [0], [1], [0, 0, 1, 1], [], []>} : vector<16x32xbf16>, vector<32x8xbf16>, vector<16x8xf32> -> vector<16x8xf32>
    %c1_321 = arith.constant 1 : index
    %c3_322 = arith.constant 3 : index
    %c0_323 = arith.constant 0 : index
    %c0_324 = arith.constant 0 : index
    %443 = vector.load %arg10[%c1_321, %c3_322, %c0_323, %c0_324] : memref<2x4x1x8xf32, #tpu.memory_space<vmem>>, vector<1x1x1x8xf32>
    %444 = vector.shape_cast %443 : vector<1x1x1x8xf32> to vector<1x8xf32>
    %445 = vector.broadcast %444 : vector<1x8xf32> to vector<16x8xf32>
    %446 = arith.addf %442, %445 : vector<16x8xf32>
    %447 = vector.shape_cast %430 : vector<16x8xf32> to vector<2x8x8xf32>
    %448 = vector.shape_cast %438 : vector<16x8xf32> to vector<2x8x8xf32>
    %449 = vector.shape_cast %446 : vector<16x8xf32> to vector<2x8x8xf32>
    %450 = arith.truncf %447 : vector<2x8x8xf32> to vector<2x8x8xbf16>
    %451 = arith.truncf %448 : vector<2x8x8xf32> to vector<2x8x8xbf16>
    "tpu.trace_start"() <{level = 10 : i32, message = "bqd,bkd->bqk"}> : () -> ()
    %cst_325 = arith.constant dense<0.000000e+00> : vector<2x8x8xf32>
    %452 = tpu.matmul %450, %451, %cst_325 {dimension_numbers = #tpu.dot_dimension_numbers<[2], [2], [1], [1], [0, 0, 0, 1, 1, 1], [0], [0]>} : vector<2x8x8xbf16>, vector<2x8x8xbf16>, vector<2x8x8xf32> -> vector<2x8x8xf32>
    "tpu.trace_stop"() : () -> ()
    %cst_326 = arith.constant dense<0xFF800000> : vector<2x8xf32>
    %453 = vector.multi_reduction <maximumf>, %452, %cst_326 [2] : vector<2x8x8xf32> to vector<2x8xf32>
    %454 = vector.shape_cast %453 : vector<2x8xf32> to vector<2x8x1xf32>
    %455 = vector.broadcast %454 : vector<2x8x1xf32> to vector<2x8x8xf32>
    %456 = arith.subf %452, %455 : vector<2x8x8xf32>
    %457 = math.exp %456 : vector<2x8x8xf32>
    %cst_327 = arith.constant dense<0.000000e+00> : vector<2x8xf32>
    %458 = vector.multi_reduction <add>, %457, %cst_327 [2] : vector<2x8x8xf32> to vector<2x8xf32>
    %459 = vector.shape_cast %458 : vector<2x8xf32> to vector<2x8x1xf32>
    %460 = vector.broadcast %459 : vector<2x8x1xf32> to vector<2x8x8xf32>
    %461 = arith.divf %457, %460 : vector<2x8x8xf32>
    %462 = arith.truncf %461 : vector<2x8x8xf32> to vector<2x8x8xbf16>
    %463 = arith.truncf %449 : vector<2x8x8xf32> to vector<2x8x8xbf16>
    "tpu.trace_start"() <{level = 10 : i32, message = "bqk,bkd->bqd"}> : () -> ()
    %cst_328 = arith.constant dense<0.000000e+00> : vector<2x8x8xf32>
    %464 = tpu.matmul %462, %463, %cst_328 {dimension_numbers = #tpu.dot_dimension_numbers<[2], [1], [1], [2], [0, 0, 0, 1, 1, 2], [0], [0]>} : vector<2x8x8xbf16>, vector<2x8x8xbf16>, vector<2x8x8xf32> -> vector<2x8x8xf32>
    "tpu.trace_stop"() : () -> ()
    %465 = vector.shape_cast %464 : vector<2x8x8xf32> to vector<16x8xf32>
    %c1_329 = arith.constant 1 : index
    %c3_330 = arith.constant 3 : index
    %c0_331 = arith.constant 0 : index
    %c0_332 = arith.constant 0 : index
    %466 = vector.load %arg11[%c1_329, %c3_330, %c0_331, %c0_332] : memref<2x4x8x32xbf16, #tpu.memory_space<vmem>>, vector<1x1x8x32xbf16>
    %467 = vector.shape_cast %466 : vector<1x1x8x32xbf16> to vector<8x32xbf16>
    %468 = arith.truncf %465 : vector<16x8xf32> to vector<16x8xbf16>
    %cst_333 = arith.constant dense<0.000000e+00> : vector<16x32xf32>
    %469 = tpu.matmul %468, %467, %cst_333 {dimension_numbers = #tpu.dot_dimension_numbers<[1], [0], [0], [1], [0, 0, 1, 1], [], []>} : vector<16x8xbf16>, vector<8x32xbf16>, vector<16x32xf32> -> vector<16x32xf32>
    %470 = arith.addf %422, %469 : vector<16x32xf32>
    %c1_334 = arith.constant 1 : index
    %c0_335 = arith.constant 0 : index
    %c0_336 = arith.constant 0 : index
    %471 = vector.load %arg12[%c1_334, %c0_335, %c0_336] : memref<2x1x32xf32, #tpu.memory_space<vmem>>, vector<1x1x32xf32>
    %472 = vector.shape_cast %471 : vector<1x1x32xf32> to vector<1x32xf32>
    %473 = vector.broadcast %472 : vector<1x32xf32> to vector<16x32xf32>
    %474 = arith.addf %470, %473 : vector<16x32xf32>
    %475 = arith.addf %279, %474 : vector<16x32xf32>
    %c1_337 = arith.constant 1 : index
    %c0_338 = arith.constant 0 : index
    %c0_339 = arith.constant 0 : index
    %476 = vector.load %arg13[%c1_337, %c0_338, %c0_339] : memref<2x1x32xf32, #tpu.memory_space<vmem>>, vector<1x1x32xf32>
    %477 = vector.shape_cast %476 : vector<1x1x32xf32> to vector<1x32xf32>
    %c1_340 = arith.constant 1 : index
    %c0_341 = arith.constant 0 : index
    %c0_342 = arith.constant 0 : index
    %478 = vector.load %arg14[%c1_340, %c0_341, %c0_342] : memref<2x1x32xf32, #tpu.memory_space<vmem>>, vector<1x1x32xf32>
    %479 = vector.shape_cast %478 : vector<1x1x32xf32> to vector<1x32xf32>
    %cst_343 = arith.constant dense<0.000000e+00> : vector<16xf32>
    %480 = vector.multi_reduction <add>, %475, %cst_343 [1] : vector<16x32xf32> to vector<16xf32>
    %481 = vector.shape_cast %480 : vector<16xf32> to vector<16x1xf32>
    %cst_344 = arith.constant 3.200000e+01 : f32
    %482 = vector.broadcast %cst_344 : f32 to vector<16x1xf32>
    %483 = arith.divf %481, %482 : vector<16x1xf32>
    %484 = vector.broadcast %483 : vector<16x1xf32> to vector<16x32xf32>
    %485 = arith.subf %475, %484 : vector<16x32xf32>
    %486 = arith.mulf %485, %485 : vector<16x32xf32>
    %cst_345 = arith.constant dense<0.000000e+00> : vector<16xf32>
    %487 = vector.multi_reduction <add>, %486, %cst_345 [1] : vector<16x32xf32> to vector<16xf32>
    %488 = vector.shape_cast %487 : vector<16xf32> to vector<16x1xf32>
    %cst_346 = arith.constant 3.200000e+01 : f32
    %489 = vector.broadcast %cst_346 : f32 to vector<16x1xf32>
    %490 = arith.divf %488, %489 : vector<16x1xf32>
    %491 = vector.broadcast %483 : vector<16x1xf32> to vector<16x32xf32>
    %492 = arith.subf %475, %491 : vector<16x32xf32>
    %cst_347 = arith.constant 9.99999974E-6 : f32
    %493 = vector.broadcast %cst_347 : f32 to vector<16x1xf32>
    %494 = arith.addf %490, %493 : vector<16x1xf32>
    %495 = math.rsqrt %494 : vector<16x1xf32>
    %496 = vector.broadcast %495 : vector<16x1xf32> to vector<16x32xf32>
    %497 = arith.mulf %492, %496 : vector<16x32xf32>
    %498 = vector.broadcast %477 : vector<1x32xf32> to vector<16x32xf32>
    %499 = arith.mulf %497, %498 : vector<16x32xf32>
    %500 = vector.broadcast %479 : vector<1x32xf32> to vector<16x32xf32>
    %501 = arith.addf %499, %500 : vector<16x32xf32>
    %c1_348 = arith.constant 1 : index
    %c0_349 = arith.constant 0 : index
    %c0_350 = arith.constant 0 : index
    %502 = vector.load %arg15[%c1_348, %c0_349, %c0_350] : memref<2x32x64xbf16, #tpu.memory_space<vmem>>, vector<1x32x64xbf16>
    %503 = vector.shape_cast %502 : vector<1x32x64xbf16> to vector<32x64xbf16>
    %504 = arith.truncf %501 : vector<16x32xf32> to vector<16x32xbf16>
    %cst_351 = arith.constant dense<0.000000e+00> : vector<16x64xf32>
    %505 = tpu.matmul %504, %503, %cst_351 {dimension_numbers = #tpu.dot_dimension_numbers<[1], [0], [0], [1], [0, 0, 1, 1], [], []>} : vector<16x32xbf16>, vector<32x64xbf16>, vector<16x64xf32> -> vector<16x64xf32>
    %c1_352 = arith.constant 1 : index
    %c0_353 = arith.constant 0 : index
    %c0_354 = arith.constant 0 : index
    %506 = vector.load %arg16[%c1_352, %c0_353, %c0_354] : memref<2x1x64xf32, #tpu.memory_space<vmem>>, vector<1x1x64xf32>
    %507 = vector.shape_cast %506 : vector<1x1x64xf32> to vector<1x64xf32>
    %508 = vector.broadcast %507 : vector<1x64xf32> to vector<16x64xf32>
    %509 = arith.addf %505, %508 : vector<16x64xf32>
    %cst_355 = arith.constant 0.000000e+00 : f32
    %510 = vector.broadcast %cst_355 : f32 to vector<16x64xf32>
    %511 = arith.maximumf %509, %510 : vector<16x64xf32>
    %c1_356 = arith.constant 1 : index
    %c0_357 = arith.constant 0 : index
    %c0_358 = arith.constant 0 : index
    %512 = vector.load %arg17[%c1_356, %c0_357, %c0_358] : memref<2x64x32xbf16, #tpu.memory_space<vmem>>, vector<1x64x32xbf16>
    %513 = vector.shape_cast %512 : vector<1x64x32xbf16> to vector<64x32xbf16>
    %514 = arith.truncf %511 : vector<16x64xf32> to vector<16x64xbf16>
    %cst_359 = arith.constant dense<0.000000e+00> : vector<16x32xf32>
    %515 = tpu.matmul %514, %513, %cst_359 {dimension_numbers = #tpu.dot_dimension_numbers<[1], [0], [0], [1], [0, 0, 1, 1], [], []>} : vector<16x64xbf16>, vector<64x32xbf16>, vector<16x32xf32> -> vector<16x32xf32>
    %c1_360 = arith.constant 1 : index
    %c0_361 = arith.constant 0 : index
    %c0_362 = arith.constant 0 : index
    %516 = vector.load %arg18[%c1_360, %c0_361, %c0_362] : memref<2x1x32xf32, #tpu.memory_space<vmem>>, vector<1x1x32xf32>
    %517 = vector.shape_cast %516 : vector<1x1x32xf32> to vector<1x32xf32>
    %518 = vector.broadcast %517 : vector<1x32xf32> to vector<16x32xf32>
    %519 = arith.addf %515, %518 : vector<16x32xf32>
    %520 = arith.addf %501, %519 : vector<16x32xf32>
    %c1_363 = arith.constant 1 : index
    %c0_364 = arith.constant 0 : index
    %c0_365 = arith.constant 0 : index
    %521 = vector.load %arg19[%c1_363, %c0_364, %c0_365] : memref<2x1x32xf32, #tpu.memory_space<vmem>>, vector<1x1x32xf32>
    %522 = vector.shape_cast %521 : vector<1x1x32xf32> to vector<1x32xf32>
    %c1_366 = arith.constant 1 : index
    %c0_367 = arith.constant 0 : index
    %c0_368 = arith.constant 0 : index
    %523 = vector.load %arg20[%c1_366, %c0_367, %c0_368] : memref<2x1x32xf32, #tpu.memory_space<vmem>>, vector<1x1x32xf32>
    %524 = vector.shape_cast %523 : vector<1x1x32xf32> to vector<1x32xf32>
    %cst_369 = arith.constant dense<0.000000e+00> : vector<16xf32>
    %525 = vector.multi_reduction <add>, %520, %cst_369 [1] : vector<16x32xf32> to vector<16xf32>
    %526 = vector.shape_cast %525 : vector<16xf32> to vector<16x1xf32>
    %cst_370 = arith.constant 3.200000e+01 : f32
    %527 = vector.broadcast %cst_370 : f32 to vector<16x1xf32>
    %528 = arith.divf %526, %527 : vector<16x1xf32>
    %529 = vector.broadcast %528 : vector<16x1xf32> to vector<16x32xf32>
    %530 = arith.subf %520, %529 : vector<16x32xf32>
    %531 = arith.mulf %530, %530 : vector<16x32xf32>
    %cst_371 = arith.constant dense<0.000000e+00> : vector<16xf32>
    %532 = vector.multi_reduction <add>, %531, %cst_371 [1] : vector<16x32xf32> to vector<16xf32>
    %533 = vector.shape_cast %532 : vector<16xf32> to vector<16x1xf32>
    %cst_372 = arith.constant 3.200000e+01 : f32
    %534 = vector.broadcast %cst_372 : f32 to vector<16x1xf32>
    %535 = arith.divf %533, %534 : vector<16x1xf32>
    %536 = vector.broadcast %528 : vector<16x1xf32> to vector<16x32xf32>
    %537 = arith.subf %520, %536 : vector<16x32xf32>
    %cst_373 = arith.constant 9.99999974E-6 : f32
    %538 = vector.broadcast %cst_373 : f32 to vector<16x1xf32>
    %539 = arith.addf %535, %538 : vector<16x1xf32>
    %540 = math.rsqrt %539 : vector<16x1xf32>
    %541 = vector.broadcast %540 : vector<16x1xf32> to vector<16x32xf32>
    %542 = arith.mulf %537, %541 : vector<16x32xf32>
    %543 = vector.broadcast %522 : vector<1x32xf32> to vector<16x32xf32>
    %544 = arith.mulf %542, %543 : vector<16x32xf32>
    %545 = vector.broadcast %524 : vector<1x32xf32> to vector<16x32xf32>
    %546 = arith.addf %544, %545 : vector<16x32xf32>
    %547 = vector.shape_cast %546 : vector<16x32xf32> to vector<2x8x32xf32>
    %cst_374 = arith.constant dense<0.000000e+00> : vector<2x32xf32>
    %548 = vector.multi_reduction <add>, %547, %cst_374 [1] : vector<2x8x32xf32> to vector<2x32xf32>
    %cst_375 = arith.constant 8.000000e+00 : f32
    %549 = vector.broadcast %cst_375 : f32 to vector<2x32xf32>
    %550 = arith.divf %548, %549 : vector<2x32xf32>
    %c0_376 = arith.constant 0 : index
    %c0_377 = arith.constant 0 : index
    %551 = vector.load %arg21[%c0_376, %c0_377] : memref<32x32xbf16, #tpu.memory_space<vmem>>, vector<32x32xbf16>
    %552 = arith.truncf %550 : vector<2x32xf32> to vector<2x32xbf16>
    %cst_378 = arith.constant dense<0.000000e+00> : vector<2x32xf32>
    %553 = tpu.matmul %552, %551, %cst_378 {dimension_numbers = #tpu.dot_dimension_numbers<[1], [0], [0], [1], [0, 0, 1, 1], [], []>} : vector<2x32xbf16>, vector<32x32xbf16>, vector<2x32xf32> -> vector<2x32xf32>
    %c0_379 = arith.constant 0 : index
    %c0_380 = arith.constant 0 : index
    %554 = vector.load %arg22[%c0_379, %c0_380] : memref<1x32xf32, #tpu.memory_space<vmem>>, vector<1x32xf32>
    %555 = vector.broadcast %554 : vector<1x32xf32> to vector<2x32xf32>
    %556 = arith.addf %553, %555 : vector<2x32xf32>
    %c0_381 = arith.constant 0 : index
    %c0_382 = arith.constant 0 : index
    %557 = vector.load %arg23[%c0_381, %c0_382] : memref<1x32xf32, #tpu.memory_space<vmem>>, vector<1x32xf32>
    %c0_383 = arith.constant 0 : index
    %c0_384 = arith.constant 0 : index
    %558 = vector.load %arg24[%c0_383, %c0_384] : memref<1x32xf32, #tpu.memory_space<vmem>>, vector<1x32xf32>
    %cst_385 = arith.constant dense<0.000000e+00> : vector<2xf32>
    %559 = vector.multi_reduction <add>, %556, %cst_385 [1] : vector<2x32xf32> to vector<2xf32>
    %560 = vector.shape_cast %559 : vector<2xf32> to vector<2x1xf32>
    %cst_386 = arith.constant 3.200000e+01 : f32
    %561 = vector.broadcast %cst_386 : f32 to vector<2x1xf32>
    %562 = arith.divf %560, %561 : vector<2x1xf32>
    %563 = vector.broadcast %562 : vector<2x1xf32> to vector<2x32xf32>
    %564 = arith.subf %556, %563 : vector<2x32xf32>
    %565 = arith.mulf %564, %564 : vector<2x32xf32>
    %cst_387 = arith.constant dense<0.000000e+00> : vector<2xf32>
    %566 = vector.multi_reduction <add>, %565, %cst_387 [1] : vector<2x32xf32> to vector<2xf32>
    %567 = vector.shape_cast %566 : vector<2xf32> to vector<2x1xf32>
    %cst_388 = arith.constant 3.200000e+01 : f32
    %568 = vector.broadcast %cst_388 : f32 to vector<2x1xf32>
    %569 = arith.divf %567, %568 : vector<2x1xf32>
    %570 = vector.broadcast %562 : vector<2x1xf32> to vector<2x32xf32>
    %571 = arith.subf %556, %570 : vector<2x32xf32>
    %cst_389 = arith.constant 9.99999974E-6 : f32
    %572 = vector.broadcast %cst_389 : f32 to vector<2x1xf32>
    %573 = arith.addf %569, %572 : vector<2x1xf32>
    %574 = math.rsqrt %573 : vector<2x1xf32>
    %575 = vector.broadcast %574 : vector<2x1xf32> to vector<2x32xf32>
    %576 = arith.mulf %571, %575 : vector<2x32xf32>
    %577 = vector.broadcast %557 : vector<1x32xf32> to vector<2x32xf32>
    %578 = arith.mulf %576, %577 : vector<2x32xf32>
    %579 = vector.broadcast %558 : vector<1x32xf32> to vector<2x32xf32>
    %580 = arith.addf %578, %579 : vector<2x32xf32>
    %cst_390 = arith.constant 0.000000e+00 : f32
    %581 = vector.broadcast %cst_390 : f32 to vector<2x32xf32>
    %582 = arith.maximumf %580, %581 : vector<2x32xf32>
    %c0_391 = arith.constant 0 : index
    %c0_392 = arith.constant 0 : index
    %583 = vector.load %arg25[%c0_391, %c0_392] : memref<32x128xbf16, #tpu.memory_space<vmem>>, vector<32x128xbf16>
    %584 = arith.truncf %582 : vector<2x32xf32> to vector<2x32xbf16>
    %cst_393 = arith.constant dense<0.000000e+00> : vector<2x128xf32>
    %585 = tpu.matmul %584, %583, %cst_393 {dimension_numbers = #tpu.dot_dimension_numbers<[1], [0], [0], [1], [0, 0, 1, 1], [], []>} : vector<2x32xbf16>, vector<32x128xbf16>, vector<2x128xf32> -> vector<2x128xf32>
    %c0_394 = arith.constant 0 : index
    %c0_395 = arith.constant 0 : index
    %586 = vector.load %arg26[%c0_394, %c0_395] : memref<1x128xf32, #tpu.memory_space<vmem>>, vector<1x128xf32>
    %587 = vector.broadcast %586 : vector<1x128xf32> to vector<2x128xf32>
    %588 = arith.addf %585, %587 : vector<2x128xf32>
    %c0_396 = arith.constant 0 : index
    %c0_397 = arith.constant 0 : index
    %589 = vector.load %arg27[%c0_396, %c0_397] : memref<2x128xf32, #tpu.memory_space<vmem>>, vector<2x128xf32>
    tpu.vector_store %arg27[%c0_396, %c0_397], %588 {strides = array<i32>} : memref<2x128xf32, #tpu.memory_space<vmem>>, vector<2x128xf32>,
    return
  }
  func.func @transform_0(%arg0: i32) -> (i32, i32, i32) {
    %c0_i32 = arith.constant 0 : i32
    %c0_i32_0 = arith.constant 0 : i32
    %c0_i32_1 = arith.constant 0 : i32
    return %arg0, %c0_i32, %c0_i32_0 : i32, i32, i32
  }
  func.func @transform_1(%arg0: i32) -> (i32, i32, i32) {
    %c0_i32 = arith.constant 0 : i32
    %c0_i32_0 = arith.constant 0 : i32
    %c0_i32_1 = arith.constant 0 : i32
    return %arg0, %c0_i32, %c0_i32_0 : i32, i32, i32
  }
  func.func @transform_2(%arg0: i32) -> (i32, i32) {
    %c0_i32 = arith.constant 0 : i32
    %c0_i32_0 = arith.constant 0 : i32
    %c0_i32_1 = arith.constant 0 : i32
    return %c0_i32, %c0_i32_0 : i32, i32
  }
  func.func @transform_3(%arg0: i32) -> (i32, i32) {
    %c0_i32 = arith.constant 0 : i32
    %c0_i32_0 = arith.constant 0 : i32
    %c0_i32_1 = arith.constant 0 : i32
    return %c0_i32, %c0_i32_0 : i32, i32
  }
  func.func @transform_4(%arg0: i32) -> (i32, i32, i32, i32) {
    %c0_i32 = arith.constant 0 : i32
    %c0_i32_0 = arith.constant 0 : i32
    %c0_i32_1 = arith.constant 0 : i32
    %c0_i32_2 = arith.constant 0 : i32
    %c0_i32_3 = arith.constant 0 : i32
    return %c0_i32, %c0_i32_0, %c0_i32_1, %c0_i32_2 : i32, i32, i32, i32
  }
  func.func @transform_5(%arg0: i32) -> (i32, i32, i32, i32) {
    %c0_i32 = arith.constant 0 : i32
    %c0_i32_0 = arith.constant 0 : i32
    %c0_i32_1 = arith.constant 0 : i32
    %c0_i32_2 = arith.constant 0 : i32
    %c0_i32_3 = arith.constant 0 : i32
    return %c0_i32, %c0_i32_0, %c0_i32_1, %c0_i32_2 : i32, i32, i32, i32
  }
  func.func @transform_6(%arg0: i32) -> (i32, i32, i32, i32) {
    %c0_i32 = arith.constant 0 : i32
    %c0_i32_0 = arith.constant 0 : i32
    %c0_i32_1 = arith.constant 0 : i32
    %c0_i32_2 = arith.constant 0 : i32
    %c0_i32_3 = arith.constant 0 : i32
    return %c0_i32, %c0_i32_0, %c0_i32_1, %c0_i32_2 : i32, i32, i32, i32
  }
  func.func @transform_7(%arg0: i32) -> (i32, i32, i32, i32) {
    %c0_i32 = arith.constant 0 : i32
    %c0_i32_0 = arith.constant 0 : i32
    %c0_i32_1 = arith.constant 0 : i32
    %c0_i32_2 = arith.constant 0 : i32
    %c0_i32_3 = arith.constant 0 : i32
    return %c0_i32, %c0_i32_0, %c0_i32_1, %c0_i32_2 : i32, i32, i32, i32
  }
  func.func @transform_8(%arg0: i32) -> (i32, i32, i32, i32) {
    %c0_i32 = arith.constant 0 : i32
    %c0_i32_0 = arith.constant 0 : i32
    %c0_i32_1 = arith.constant 0 : i32
    %c0_i32_2 = arith.constant 0 : i32
    %c0_i32_3 = arith.constant 0 : i32
    return %c0_i32, %c0_i32_0, %c0_i32_1, %c0_i32_2 : i32, i32, i32, i32
  }
  func.func @transform_9(%arg0: i32) -> (i32, i32, i32, i32) {
    %c0_i32 = arith.constant 0 : i32
    %c0_i32_0 = arith.constant 0 : i32
    %c0_i32_1 = arith.constant 0 : i32
    %c0_i32_2 = arith.constant 0 : i32
    %c0_i32_3 = arith.constant 0 : i32
    return %c0_i32, %c0_i32_0, %c0_i32_1, %c0_i32_2 : i32, i32, i32, i32
  }
  func.func @transform_10(%arg0: i32) -> (i32, i32, i32, i32) {
    %c0_i32 = arith.constant 0 : i32
    %c0_i32_0 = arith.constant 0 : i32
    %c0_i32_1 = arith.constant 0 : i32
    %c0_i32_2 = arith.constant 0 : i32
    %c0_i32_3 = arith.constant 0 : i32
    return %c0_i32, %c0_i32_0, %c0_i32_1, %c0_i32_2 : i32, i32, i32, i32
  }
  func.func @transform_11(%arg0: i32) -> (i32, i32, i32) {
    %c0_i32 = arith.constant 0 : i32
    %c0_i32_0 = arith.constant 0 : i32
    %c0_i32_1 = arith.constant 0 : i32
    %c0_i32_2 = arith.constant 0 : i32
    return %c0_i32, %c0_i32_0, %c0_i32_1 : i32, i32, i32
  }
  func.func @transform_12(%arg0: i32) -> (i32, i32, i32) {
    %c0_i32 = arith.constant 0 : i32
    %c0_i32_0 = arith.constant 0 : i32
    %c0_i32_1 = arith.constant 0 : i32
    %c0_i32_2 = arith.constant 0 : i32
    return %c0_i32, %c0_i32_0, %c0_i32_1 : i32, i32, i32
  }
  func.func @transform_13(%arg0: i32) -> (i32, i32, i32) {
    %c0_i32 = arith.constant 0 : i32
    %c0_i32_0 = arith.constant 0 : i32
    %c0_i32_1 = arith.constant 0 : i32
    %c0_i32_2 = arith.constant 0 : i32
    return %c0_i32, %c0_i32_0, %c0_i32_1 : i32, i32, i32
  }
  func.func @transform_14(%arg0: i32) -> (i32, i32, i32) {
    %c0_i32 = arith.constant 0 : i32
    %c0_i32_0 = arith.constant 0 : i32
    %c0_i32_1 = arith.constant 0 : i32
    %c0_i32_2 = arith.constant 0 : i32
    return %c0_i32, %c0_i32_0, %c0_i32_1 : i32, i32, i32
  }
  func.func @transform_15(%arg0: i32) -> (i32, i32, i32) {
    %c0_i32 = arith.constant 0 : i32
    %c0_i32_0 = arith.constant 0 : i32
    %c0_i32_1 = arith.constant 0 : i32
    %c0_i32_2 = arith.constant 0 : i32
    return %c0_i32, %c0_i32_0, %c0_i32_1 : i32, i32, i32
  }
  func.func @transform_16(%arg0: i32) -> (i32, i32, i32) {
    %c0_i32 = arith.constant 0 : i32
    %c0_i32_0 = arith.constant 0 : i32
    %c0_i32_1 = arith.constant 0 : i32
    %c0_i32_2 = arith.constant 0 : i32
    return %c0_i32, %c0_i32_0, %c0_i32_1 : i32, i32, i32
  }
  func.func @transform_17(%arg0: i32) -> (i32, i32, i32) {
    %c0_i32 = arith.constant 0 : i32
    %c0_i32_0 = arith.constant 0 : i32
    %c0_i32_1 = arith.constant 0 : i32
    %c0_i32_2 = arith.constant 0 : i32
    return %c0_i32, %c0_i32_0, %c0_i32_1 : i32, i32, i32
  }
  func.func @transform_18(%arg0: i32) -> (i32, i32, i32) {
    %c0_i32 = arith.constant 0 : i32
    %c0_i32_0 = arith.constant 0 : i32
    %c0_i32_1 = arith.constant 0 : i32
    %c0_i32_2 = arith.constant 0 : i32
    return %c0_i32, %c0_i32_0, %c0_i32_1 : i32, i32, i32
  }
  func.func @transform_19(%arg0: i32) -> (i32, i32, i32) {
    %c0_i32 = arith.constant 0 : i32
    %c0_i32_0 = arith.constant 0 : i32
    %c0_i32_1 = arith.constant 0 : i32
    %c0_i32_2 = arith.constant 0 : i32
    return %c0_i32, %c0_i32_0, %c0_i32_1 : i32, i32, i32
  }
  func.func @transform_20(%arg0: i32) -> (i32, i32) {
    %c0_i32 = arith.constant 0 : i32
    %c0_i32_0 = arith.constant 0 : i32
    %c0_i32_1 = arith.constant 0 : i32
    return %c0_i32, %c0_i32_0 : i32, i32
  }
  func.func @transform_21(%arg0: i32) -> (i32, i32) {
    %c0_i32 = arith.constant 0 : i32
    %c0_i32_0 = arith.constant 0 : i32
    %c0_i32_1 = arith.constant 0 : i32
    return %c0_i32, %c0_i32_0 : i32, i32
  }
  func.func @transform_22(%arg0: i32) -> (i32, i32) {
    %c0_i32 = arith.constant 0 : i32
    %c0_i32_0 = arith.constant 0 : i32
    %c0_i32_1 = arith.constant 0 : i32
    return %c0_i32, %c0_i32_0 : i32, i32
  }
  func.func @transform_23(%arg0: i32) -> (i32, i32) {
    %c0_i32 = arith.constant 0 : i32
    %c0_i32_0 = arith.constant 0 : i32
    %c0_i32_1 = arith.constant 0 : i32
    return %c0_i32, %c0_i32_0 : i32, i32
  }
  func.func @transform_24(%arg0: i32) -> (i32, i32) {
    %c0_i32 = arith.constant 0 : i32
    %c0_i32_0 = arith.constant 0 : i32
    %c0_i32_1 = arith.constant 0 : i32
    return %c0_i32, %c0_i32_0 : i32, i32
  }
  func.func @transform_25(%arg0: i32) -> (i32, i32) {
    %c0_i32 = arith.constant 0 : i32
    %c0_i32_0 = arith.constant 0 : i32
    %c0_i32_1 = arith.constant 0 : i32
    return %c0_i32, %c0_i32_0 : i32, i32
  }
  func.func @transform_26(%arg0: i32) -> (i32, i32) {
    %c0_i32 = arith.constant 0 : i32
    %c0_i32_0 = arith.constant 0 : i32
    return %arg0, %c0_i32 : i32, i32
  }
}

</mosaic_0001>

<llo_original>
// kernel: tpu_custom_call.1
$region0: #{tpu_custom_call.1}
  #allocation0 [shape = 'u32[]', space=smem, size = 0x4, offset = 0x4, fixed_abs, tag = 'smem constant byte address 0x4 - core index']
  #allocation1 [shape = 'u32[144,128]{1,0:T(1,128)}', space=vmem, size = 0x12000, scoped, tag = 'internal scratch']
  %s0 = inlined_call_operand.vmem [shape: f32[2,8,16], index: 0, kind: input, shape index: {}]
  %s1 = inlined_call_operand.vmem [shape: f32[2,1,32], index: 1, kind: input, shape index: {}]
  %s2 = inlined_call_operand.vmem [shape: bf16[16,32], index: 2, kind: input, shape index: {}]
  %s3 = inlined_call_operand.vmem [shape: f32[1,32], index: 3, kind: input, shape index: {}]
  %s4 = inlined_call_operand.vmem [shape: bf16[2,4,32,8], index: 4, kind: input, shape index: {}]
  %s5 = inlined_call_operand.vmem [shape: f32[2,4,1,8], index: 5, kind: input, shape index: {}]
  %s6 = inlined_call_operand.vmem [shape: bf16[2,4,32,8], index: 6, kind: input, shape index: {}]
  %s7 = inlined_call_operand.vmem [shape: f32[2,4,1,8], index: 7, kind: input, shape index: {}]
  %s8 = inlined_call_operand.vmem [shape: bf16[2,4,32,8], index: 8, kind: input, shape index: {}]
  %s9 = inlined_call_operand.vmem [shape: f32[2,4,1,8], index: 9, kind: input, shape index: {}]
  %s10 = inlined_call_operand.vmem [shape: bf16[2,4,8,32], index: 10, kind: input, shape index: {}]
  %s11 = inlined_call_operand.vmem [shape: f32[2,1,32], index: 11, kind: input, shape index: {}]
  %s12 = inlined_call_operand.vmem [shape: f32[2,1,32], index: 12, kind: input, shape index: {}]
  %s13 = inlined_call_operand.vmem [shape: f32[2,1,32], index: 13, kind: input, shape index: {}]
  %s14 = inlined_call_operand.vmem [shape: bf16[2,32,64], index: 14, kind: input, shape index: {}]
  %s15 = inlined_call_operand.vmem [shape: f32[2,1,64], index: 15, kind: input, shape index: {}]
  %s16 = inlined_call_operand.vmem [shape: bf16[2,64,32], index: 16, kind: input, shape index: {}]
  %s17 = inlined_call_operand.vmem [shape: f32[2,1,32], index: 17, kind: input, shape index: {}]
  %s18 = inlined_call_operand.vmem [shape: f32[2,1,32], index: 18, kind: input, shape index: {}]
  %s19 = inlined_call_operand.vmem [shape: f32[2,1,32], index: 19, kind: input, shape index: {}]
  %s20 = inlined_call_operand.vmem [shape: bf16[32,32], index: 20, kind: input, shape index: {}]
  %s21 = inlined_call_operand.vmem [shape: f32[1,32], index: 21, kind: input, shape index: {}]
  %s22 = inlined_call_operand.vmem [shape: f32[1,32], index: 22, kind: input, shape index: {}]
  %s23 = inlined_call_operand.vmem [shape: f32[1,32], index: 23, kind: input, shape index: {}]
  %s24 = inlined_call_operand.vmem [shape: bf16[32,128], index: 24, kind: input, shape index: {}]
  %s25 = inlined_call_operand.vmem [shape: f32[1,128], index: 25, kind: input, shape index: {}]
  %s26 = inlined_call_operand.hbm [shape: f32[2,128], index: 26, kind: output, shape index: {}]
  %s27 = sld [smem:[#allocation0]]
  $region114: #{tpu_custom_call.1} parent=0
    _
  %s29 = ssub.s32 1, %s27
  %s30 = scalar_select 0, %s29, %s27
  $region1: #{tpu_custom_call.1} parent=0
    #allocation2 [shape = 'u8[1024]{0}', space=vmem, size = 0x400, scoped, tag = 'output window, operand 0, single buffered']
    #allocation3 [shape = 's32[1]{0}', space=sflag, size = 0x4, scoped, tag = 'scoped memory for tpu_custom_call.1']
    %31 = vsyncpa [#allocation3], 0
    // Predicated region
    $region2: #{tpu_custom_call.1} parent=1 // pred_check
      _
    $region3: #{tpu_custom_call.1} parent=1 // pred_check_branch
      %33 = sbr.rel (0) target = $region5
    $region4: #{tpu_custom_call.1} parent=1 // pred_region
      _
    $region5: #{tpu_custom_call.1} parent=1 // pred_fallthru
      _
    // Predicated region
    $region6: #{tpu_custom_call.1} parent=1 // pred_check
      _
    $region7: #{tpu_custom_call.1} parent=1 // pred_check_branch
      %35 = sbr.rel (0) target = $region9
    $region8: #{tpu_custom_call.1} parent=1 // pred_region
      _
    $region9: #{tpu_custom_call.1} parent=1 // pred_fallthru
      _
    // Predicated region
    $region10: #{tpu_custom_call.1} parent=1 // pred_check
      _
    $region11: #{tpu_custom_call.1} parent=1 // pred_check_branch
      %37 = sbr.rel (0) target = $region13
    $region12: #{tpu_custom_call.1} parent=1 // pred_region
      _
    $region13: #{tpu_custom_call.1} parent=1 // pred_fallthru
      _
    // Predicated region
    $region14: #{tpu_custom_call.1} parent=1 // pred_check
      _
    $region15: #{tpu_custom_call.1} parent=1 // pred_check_branch
      %39 = sbr.rel (0) target = $region17
    $region16: #{tpu_custom_call.1} parent=1 // pred_region
      _
    $region17: #{tpu_custom_call.1} parent=1 // pred_fallthru
      _
    // Predicated region
    $region18: #{tpu_custom_call.1} parent=1 // pred_check
      _
    $region19: #{tpu_custom_call.1} parent=1 // pred_check_branch
      %41 = sbr.rel (0) target = $region21
    $region20: #{tpu_custom_call.1} parent=1 // pred_region
      _
    $region21: #{tpu_custom_call.1} parent=1 // pred_fallthru
      _
    // Predicated region
    $region22: #{tpu_custom_call.1} parent=1 // pred_check
      _
    $region23: #{tpu_custom_call.1} parent=1 // pred_check_branch
      %43 = sbr.rel (0) target = $region25
    $region24: #{tpu_custom_call.1} parent=1 // pred_region
      _
    $region25: #{tpu_custom_call.1} parent=1 // pred_fallthru
      _
    // Predicated region
    $region26: #{tpu_custom_call.1} parent=1 // pred_check
      _
    $region27: #{tpu_custom_call.1} parent=1 // pred_check_branch
      %45 = sbr.rel (0) target = $region29
    $region28: #{tpu_custom_call.1} parent=1 // pred_region
      _
    $region29: #{tpu_custom_call.1} parent=1 // pred_fallthru
      _
    // Predicated region
    $region30: #{tpu_custom_call.1} parent=1 // pred_check
      _
    $region31: #{tpu_custom_call.1} parent=1 // pred_check_branch
      %47 = sbr.rel (0) target = $region33
    $region32: #{tpu_custom_call.1} parent=1 // pred_region
      _
    $region33: #{tpu_custom_call.1} parent=1 // pred_fallthru
      _
    // Predicated region
    $region34: #{tpu_custom_call.1} parent=1 // pred_check
      _
    $region35: #{tpu_custom_call.1} parent=1 // pred_check_branch
      %49 = sbr.rel (0) target = $region37
    $region36: #{tpu_custom_call.1} parent=1 // pred_region
      _
    $region37: #{tpu_custom_call.1} parent=1 // pred_fallthru
      _
    // Predicated region
    $region38: #{tpu_custom_call.1} parent=1 // pred_check
      _
    $region39: #{tpu_custom_call.1} parent=1 // pred_check_branch
      %51 = sbr.rel (0) target = $region41
    $region40: #{tpu_custom_call.1} parent=1 // pred_region
      _
    $region41: #{tpu_custom_call.1} parent=1 // pred_fallthru
      _
    // Predicated region
    $region42: #{tpu_custom_call.1} parent=1 // pred_check
      _
    $region43: #{tpu_custom_call.1} parent=1 // pred_check_branch
      %53 = sbr.rel (0) target = $region45
    $region44: #{tpu_custom_call.1} parent=1 // pred_region
      _
    $region45: #{tpu_custom_call.1} parent=1 // pred_fallthru
      _
    // Predicated region
    $region46: #{tpu_custom_call.1} parent=1 // pred_check
      _
    $region47: #{tpu_custom_call.1} parent=1 // pred_check_branch
      %55 = sbr.rel (0) target = $region49
    $region48: #{tpu_custom_call.1} parent=1 // pred_region
      _
    $region49: #{tpu_custom_call.1} parent=1 // pred_fallthru
      _
    // Predicated region
    $region50: #{tpu_custom_call.1} parent=1 // pred_check
      _
    $region51: #{tpu_custom_call.1} parent=1 // pred_check_branch
      %57 = sbr.rel (0) target = $region53
    $region52: #{tpu_custom_call.1} parent=1 // pred_region
      _
    $region53: #{tpu_custom_call.1} parent=1 // pred_fallthru
      _
    // Predicated region
    $region54: #{tpu_custom_call.1} parent=1 // pred_check
      _
    $region55: #{tpu_custom_call.1} parent=1 // pred_check_branch
      %59 = sbr.rel (0) target = $region57
    $region56: #{tpu_custom_call.1} parent=1 // pred_region
      _
    $region57: #{tpu_custom_call.1} parent=1 // pred_fallthru
      _
    // Predicated region
    $region58: #{tpu_custom_call.1} parent=1 // pred_check
      _
    $region59: #{tpu_custom_call.1} parent=1 // pred_check_branch
      %61 = sbr.rel (0) target = $region61
    $region60: #{tpu_custom_call.1} parent=1 // pred_region
      _
    $region61: #{tpu_custom_call.1} parent=1 // pred_fallthru
      _
    // Predicated region
    $region62: #{tpu_custom_call.1} parent=1 // pred_check
      _
    $region63: #{tpu_custom_call.1} parent=1 // pred_check_branch
      %63 = sbr.rel (0) target = $region65
    $region64: #{tpu_custom_call.1} parent=1 // pred_region
      _
    $region65: #{tpu_custom_call.1} parent=1 // pred_fallthru
      _
    // Predicated region
    $region66: #{tpu_custom_call.1} parent=1 // pred_check
      _
    $region67: #{tpu_custom_call.1} parent=1 // pred_check_branch
      %65 = sbr.rel (0) target = $region69
    $region68: #{tpu_custom_call.1} parent=1 // pred_region
      _
    $region69: #{tpu_custom_call.1} parent=1 // pred_fallthru
      _
    // Predicated region
    $region70: #{tpu_custom_call.1} parent=1 // pred_check
      _
    $region71: #{tpu_custom_call.1} parent=1 // pred_check_branch
      %67 = sbr.rel (0) target = $region73
    $region72: #{tpu_custom_call.1} parent=1 // pred_region
      _
    $region73: #{tpu_custom_call.1} parent=1 // pred_fallthru
      _
    // Predicated region
    $region74: #{tpu_custom_call.1} parent=1 // pred_check
      _
    $region75: #{tpu_custom_call.1} parent=1 // pred_check_branch
      %69 = sbr.rel (0) target = $region77
    $region76: #{tpu_custom_call.1} parent=1 // pred_region
      _
    $region77: #{tpu_custom_call.1} parent=1 // pred_fallthru
      _
    // Predicated region
    $region78: #{tpu_custom_call.1} parent=1 // pred_check
      _
    $region79: #{tpu_custom_call.1} parent=1 // pred_check_branch
      %71 = sbr.rel (0) target = $region81
    $region80: #{tpu_custom_call.1} parent=1 // pred_region
      _
    $region81: #{tpu_custom_call.1} parent=1 // pred_fallthru
      _
    // Predicated region
    $region82: #{tpu_custom_call.1} parent=1 // pred_check
      _
    $region83: #{tpu_custom_call.1} parent=1 // pred_check_branch
      %73 = sbr.rel (0) target = $region85
    $region84: #{tpu_custom_call.1} parent=1 // pred_region
      _
    $region85: #{tpu_custom_call.1} parent=1 // pred_fallthru
      _
    // Predicated region
    $region86: #{tpu_custom_call.1} parent=1 // pred_check
      _
    $region87: #{tpu_custom_call.1} parent=1 // pred_check_branch
      %75 = sbr.rel (0) target = $region89
    $region88: #{tpu_custom_call.1} parent=1 // pred_region
      _
    $region89: #{tpu_custom_call.1} parent=1 // pred_fallthru
      _
    // Predicated region
    $region90: #{tpu_custom_call.1} parent=1 // pred_check
      _
    $region91: #{tpu_custom_call.1} parent=1 // pred_check_branch
      %77 = sbr.rel (0) target = $region93
    $region92: #{tpu_custom_call.1} parent=1 // pred_region
      _
    $region93: #{tpu_custom_call.1} parent=1 // pred_fallthru
      _
    // Predicated region
    $region94: #{tpu_custom_call.1} parent=1 // pred_check
      _
    $region95: #{tpu_custom_call.1} parent=1 // pred_check_branch
      %79 = sbr.rel (0) target = $region97
    $region96: #{tpu_custom_call.1} parent=1 // pred_region
      _
    $region97: #{tpu_custom_call.1} parent=1 // pred_fallthru
      _
    // Predicated region
    $region98: #{tpu_custom_call.1} parent=1 // pred_check
      _
    $region99: #{tpu_custom_call.1} parent=1 // pred_check_branch
      %81 = sbr.rel (0) target = $region101
    $region100: #{tpu_custom_call.1} parent=1 // pred_region
      _
    $region101: #{tpu_custom_call.1} parent=1 // pred_fallthru
      _
    // Predicated region
    $region102: #{tpu_custom_call.1} parent=1 // pred_check
      _
    $region103: #{tpu_custom_call.1} parent=1 // pred_check_branch
      %83 = sbr.rel (0) target = $region105
    $region104: #{tpu_custom_call.1} parent=1 // pred_region
      _
    $region105: #{tpu_custom_call.1} parent=1 // pred_fallthru
      _
    %v85 = vld [vmem:[%s0] sm:$0xff]
    %v86 = vld [vmem:[%s0 + $0x8] sm:$0xff]
    %v87 = vld [vmem:[%s2] sm:$0xf]
    %v88 = vld [vmem:[%s2 + $0x4] sm:$0xf]
    %v89 = vpack.c.bf16 %v86, %v85
    %v90 = vld [vmem:[%s3] sm:$0x1]
    %v92 = vlaneseq
    %v93 = vshrl.u32 %v92, 7
    %v94 = vsub.s32 0, %v93
    %v95 = vrot.slane %v90, %v94
    %v99 = vunpack.c.l.b16 %v87
    %v100 = vunpack.c.l.b16 %v88
    %v101 = vpack.c.b16 %v100, %v99
    %vm103 = vcmask 130048
    %v105 = vsel %vm103, %v89, 0
    %107 = vmatprep.subr.bf16.mxu0 0
    %108 = vmatpush1.bf16.msra.mxu0 0
    %109 = vmatprep.subr.bf16.mxu0 0
    %110 = vmatpush1.bf16.msra.mxu0 0
    %111 = vmatprep.subr.bf16.mxu0 0
    %112 = vmatpush1.bf16.msra.mxu0 0
    %113 = vmatprep.subr.bf16.mxu0 0
    %114 = vmatpush1.bf16.msra.mxu0 0
    %115 = vmatprep.subr.bf16.mxu0 0
    %116 = vmatpush1.bf16.msra.mxu0 0
    %117 = vmatprep.subr.bf16.mxu0 0
    %118 = vmatpush1.bf16.msra.mxu0 0
    %119 = vmatprep.subr.bf16.mxu0 0
    %120 = vmatpush1.bf16.msra.mxu0 0
    %121 = vmatprep.subr.bf16.mxu0 0
    %122 = vmatpush1.bf16.msra.mxu0 %v101
    %123 = vmatprep.subr.bf16.mxu0 0
    %124 = vmatpush2.bf16.msra.mxu0 0
    %125 = vmatprep.subr.bf16.mxu0 0
    %126 = vmatpush2.bf16.msra.mxu0 0
    %127 = vmatprep.subr.bf16.mxu0 0
    %128 = vmatpush2.bf16.msra.mxu0 0
    %129 = vmatprep.subr.bf16.mxu0 0
    %130 = vmatpush2.bf16.msra.mxu0 0
    %131 = vmatprep.subr.bf16.mxu0 0
    %132 = vmatpush2.bf16.msra.mxu0 0
    %133 = vmatprep.subr.bf16.mxu0 0
    %134 = vmatpush2.bf16.msra.mxu0 0
    %135 = vmatprep.subr.bf16.mxu0 0
    %136 = vmatpush2.bf16.msra.mxu0 0
    %137 = vmatprep.subr.bf16.mxu0 0
    %138 = vmatpush2.bf16.msra.mxu0 0
    %139 = vmatprep.mubr.bf16.mxu0 0
    %140 = vmatmul.mubr.bf16.gmra.mxu0 %v105
    %v141 = vpop.f32.mrf.mxu0
    %v142 = vadd.f32 %v95, %v141
    %v143 = vpop.f32.mrf.mxu0
    %v144 = vpop.f32.mrf.mxu0
    %v145 = vadd.f32 %v95, %v144
    %v146 = vpop.f32.mrf.mxu0
    %147 = vdwg.mxu0
    %v148 = vld [vmem:[%s1] sm:$0x1]
    %v149 = vld [vmem:[%s1 + $0x1] sm:$0x1]
    %v152 = vlaneseq
    %v153 = vshrl.u32 %v152, 7
    %v154 = vsub.s32 0, %v153
    %v155 = vrot.slane %v148, %v154
    %v156 = vlaneseq
    %v157 = vshrl.u32 %v156, 7
    %v158 = vsub.s32 0, %v157
    %v159 = vrot.slane %v149, %v158
    %v162 = vadd.f32 %v142, %v155
    %v163 = vadd.f32 %v145, %v159
    %v164 = vld [vmem:[%s4] sm:$0xf]
    %v165 = vld [vmem:[%s4 + $0x4] sm:$0xf]
    %v166 = vld [vmem:[%s4 + $0x8] sm:$0xf]
    %v167 = vld [vmem:[%s4 + $0xc] sm:$0xf]
    %v168 = vpack.c.bf16 %v163, %v162
    %v169 = vld [vmem:[%s5] sm:$0x1]
    %v171 = vlaneseq
    %v172 = vshrl.u32 %v171, 7
    %v173 = vsub.s32 0, %v172
    %v174 = vrot.slane %v169, %v173
    %v180 = vunpack.c.l.b16 %v164
    %v181 = vunpack.c.l.b16 %v165
    %v182 = vunpack.c.l.b16 %v166
    %v183 = vunpack.c.l.b16 %v167
    %v184 = vpack.c.b16 %v181, %v180
    %v185 = vpack.c.b16 %v183, %v182
    %vm188 = vcmask 261120
    %v190 = vsel %vm188, %v168, 0
    %192 = vmatprep.subr.bf16.mxu0 0
    %193 = vmatpush1.bf16.msra.mxu0 0
    %194 = vmatprep.subr.bf16.mxu0 0
    %195 = vmatpush1.bf16.msra.mxu0 0
    %196 = vmatprep.subr.bf16.mxu0 0
    %197 = vmatpush1.bf16.msra.mxu0 0
    %198 = vmatprep.subr.bf16.mxu0 0
    %199 = vmatpush1.bf16.msra.mxu0 0
    %200 = vmatprep.subr.bf16.mxu0 0
    %201 = vmatpush1.bf16.msra.mxu0 0
    %202 = vmatprep.subr.bf16.mxu0 0
    %203 = vmatpush1.bf16.msra.mxu0 0
    %204 = vmatprep.subr.bf16.mxu0 0
    %205 = vmatpush1.bf16.msra.mxu0 %v185
    %206 = vmatprep.subr.bf16.mxu0 0
    %207 = vmatpush1.bf16.msra.mxu0 %v184
    %208 = vmatprep.subr.bf16.mxu0 0
    %209 = vmatpush2.bf16.msra.mxu0 0
    %210 = vmatprep.subr.bf16.mxu0 0
    %211 = vmatpush2.bf16.msra.mxu0 0
    %212 = vmatprep.subr.bf16.mxu0 0
    %213 = vmatpush2.bf16.msra.mxu0 0
    %214 = vmatprep.subr.bf16.mxu0 0
    %215 = vmatpush2.bf16.msra.mxu0 0
    %216 = vmatprep.subr.bf16.mxu0 0
    %217 = vmatpush2.bf16.msra.mxu0 0
    %218 = vmatprep.subr.bf16.mxu0 0
    %219 = vmatpush2.bf16.msra.mxu0 0
    %220 = vmatprep.subr.bf16.mxu0 0
    %221 = vmatpush2.bf16.msra.mxu0 0
    %222 = vmatprep.subr.bf16.mxu0 0
    %223 = vmatpush2.bf16.msra.mxu0 0
    %224 = vmatprep.mubr.bf16.mxu0 0
    %225 = vmatmul.mubr.bf16.gmra.mxu0 %v190
    %v226 = vpop.f32.mrf.mxu0
    %v227 = vadd.f32 %v174, %v226
    %v228 = vpop.f32.mrf.mxu0
    %v229 = vpop.f32.mrf.mxu0
    %v230 = vadd.f32 %v174, %v229
    %v231 = vpop.f32.mrf.mxu0
    %232 = vdwg.mxu0
    %v233 = vld [vmem:[%s6] sm:$0xf]
    %v234 = vld [vmem:[%s6 + $0x4] sm:$0xf]
    %v235 = vld [vmem:[%s6 + $0x8] sm:$0xf]
    %v236 = vld [vmem:[%s6 + $0xc] sm:$0xf]
    %v237 = vld [vmem:[%s7] sm:$0x1]
    %v239 = vlaneseq
    %v240 = vshrl.u32 %v239, 7
    %v241 = vsub.s32 0, %v240
    %v242 = vrot.slane %v237, %v241
    %v248 = vunpack.c.l.b16 %v233
    %v249 = vunpack.c.l.b16 %v234
    %v250 = vunpack.c.l.b16 %v235
    %v251 = vunpack.c.l.b16 %v236
    %v252 = vpack.c.b16 %v249, %v248
    %v253 = vpack.c.b16 %v251, %v250
    %256 = vmatprep.subr.bf16.mxu0 0
    %257 = vmatpush1.bf16.msra.mxu0 0
    %258 = vmatprep.subr.bf16.mxu0 0
    %259 = vmatpush1.bf16.msra.mxu0 0
    %260 = vmatprep.subr.bf16.mxu0 0
    %261 = vmatpush1.bf16.msra.mxu0 0
    %262 = vmatprep.subr.bf16.mxu0 0
    %263 = vmatpush1.bf16.msra.mxu0 0
    %264 = vmatprep.subr.bf16.mxu0 0
    %265 = vmatpush1.bf16.msra.mxu0 0
    %266 = vmatprep.subr.bf16.mxu0 0
    %267 = vmatpush1.bf16.msra.mxu0 0
    %268 = vmatprep.subr.bf16.mxu0 0
    %269 = vmatpush1.bf16.msra.mxu0 %v253
    %270 = vmatprep.subr.bf16.mxu0 0
    %271 = vmatpush1.bf16.msra.mxu0 %v252
    %272 = vmatprep.subr.bf16.mxu0 0
    %273 = vmatpush2.bf16.msra.mxu0 0
    %274 = vmatprep.subr.bf16.mxu0 0
    %275 = vmatpush2.bf16.msra.mxu0 0
    %276 = vmatprep.subr.bf16.mxu0 0
    %277 = vmatpush2.bf16.msra.mxu0 0
    %278 = vmatprep.subr.bf16.mxu0 0
    %279 = vmatpush2.bf16.msra.mxu0 0
    %280 = vmatprep.subr.bf16.mxu0 0
    %281 = vmatpush2.bf16.msra.mxu0 0
    %282 = vmatprep.subr.bf16.mxu0 0
    %283 = vmatpush2.bf16.msra.mxu0 0
    %284 = vmatprep.subr.bf16.mxu0 0
    %285 = vmatpush2.bf16.msra.mxu0 0
    %286 = vmatprep.subr.bf16.mxu0 0
    %287 = vmatpush2.bf16.msra.mxu0 0
    %288 = vmatprep.mubr.bf16.mxu0 0
    %289 = vmatmul.mubr.bf16.gmra.mxu0 %v190
    %v290 = vpop.f32.mrf.mxu0
    %v291 = vadd.f32 %v242, %v290
    %v292 = vpop.f32.mrf.mxu0
    %v293 = vpop.f32.mrf.mxu0
    %v294 = vadd.f32 %v242, %v293
    %v295 = vpop.f32.mrf.mxu0
    %296 = vdwg.mxu0
    %v297 = vld [vmem:[%s8] sm:$0xf]
    %v298 = vld [vmem:[%s8 + $0x4] sm:$0xf]
    %v299 = vld [vmem:[%s8 + $0x8] sm:$0xf]
    %v300 = vld [vmem:[%s8 + $0xc] sm:$0xf]
    %v301 = vld [vmem:[%s9] sm:$0x1]
    %v303 = vlaneseq
    %v304 = vshrl.u32 %v303, 7
    %v305 = vsub.s32 0, %v304
    %v306 = vrot.slane %v301, %v305
    %v312 = vunpack.c.l.b16 %v297
    %v313 = vunpack.c.l.b16 %v298
    %v314 = vunpack.c.l.b16 %v299
    %v315 = vunpack.c.l.b16 %v300
    %v316 = vpack.c.b16 %v313, %v312
    %v317 = vpack.c.b16 %v315, %v314
    %320 = vmatprep.subr.bf16.mxu0 0
    %321 = vmatpush1.bf16.msra.mxu0 0
    %322 = vmatprep.subr.bf16.mxu0 0
    %323 = vmatpush1.bf16.msra.mxu0 0
    %324 = vmatprep.subr.bf16.mxu0 0
    %325 = vmatpush1.bf16.msra.mxu0 0
    %326 = vmatprep.subr.bf16.mxu0 0
    %327 = vmatpush1.bf16.msra.mxu0 0
    %328 = vmatprep.subr.bf16.mxu0 0
    %329 = vmatpush1.bf16.msra.mxu0 0
    %330 = vmatprep.subr.bf16.mxu0 0
    %331 = vmatpush1.bf16.msra.mxu0 0
    %332 = vmatprep.subr.bf16.mxu0 0
    %333 = vmatpush1.bf16.msra.mxu0 %v317
    %334 = vmatprep.subr.bf16.mxu0 0
    %335 = vmatpush1.bf16.msra.mxu0 %v316
    %336 = vmatprep.subr.bf16.mxu0 0
    %337 = vmatpush2.bf16.msra.mxu0 0
    %338 = vmatprep.subr.bf16.mxu0 0
    %339 = vmatpush2.bf16.msra.mxu0 0
    %340 = vmatprep.subr.bf16.mxu0 0
    %341 = vmatpush2.bf16.msra.mxu0 0
    %342 = vmatprep.subr.bf16.mxu0 0
    %343 = vmatpush2.bf16.msra.mxu0 0
    %344 = vmatprep.subr.bf16.mxu0 0
    %345 = vmatpush2.bf16.msra.mxu0 0
    %346 = vmatprep.subr.bf16.mxu0 0
    %347 = vmatpush2.bf16.msra.mxu0 0
    %348 = vmatprep.subr.bf16.mxu0 0
    %349 = vmatpush2.bf16.msra.mxu0 0
    %350 = vmatprep.subr.bf16.mxu0 0
    %351 = vmatpush2.bf16.msra.mxu0 0
    %352 = vmatprep.mubr.bf16.mxu0 0
    %353 = vmatmul.mubr.bf16.gmra.mxu0 %v190
    %v354 = vpop.f32.mrf.mxu0
    %v355 = vadd.f32 %v306, %v354
    %v356 = vpop.f32.mrf.mxu0
    %v357 = vpop.f32.mrf.mxu0
    %v358 = vadd.f32 %v306, %v357
    %v359 = vpop.f32.mrf.mxu0
    %360 = vdwg.mxu0
    %v361 = vpack.c.bf16 %v227, %v227
    %v362 = vpack.c.bf16 %v230, %v230
    %v363 = vpack.c.bf16 %v291, %v291
    %v364 = vpack.c.bf16 %v294, %v294
    %vm365 = vcmask 64512
    %v367 = vsel %vm365, %v361, 0
    %v370 = vsel %vm365, %v363, 0
    %372 = vmatprep.subr.bf16.mxu0 0
    %373 = vmatpush1.bf16.xpose.msra.mxu0 0
    %374 = vmatprep.subr.bf16.mxu0 0
    %375 = vmatpush1.bf16.xpose.msra.mxu0 0
    %376 = vmatprep.subr.bf16.mxu0 0
    %377 = vmatpush1.bf16.xpose.msra.mxu0 0
    %378 = vmatprep.subr.bf16.mxu0 0
    %379 = vmatpush1.bf16.xpose.msra.mxu0 0
    %380 = vmatprep.subr.bf16.mxu0 0
    %381 = vmatpush1.bf16.xpose.msra.mxu0 0
    %382 = vmatprep.subr.bf16.mxu0 0
    %383 = vmatpush1.bf16.xpose.msra.mxu0 0
    %384 = vmatprep.subr.bf16.mxu0 0
    %385 = vmatpush1.bf16.xpose.msra.mxu0 0
    %386 = vmatprep.subr.bf16.mxu0 0
    %387 = vmatpush1.bf16.xpose.msra.mxu0 %v370
    %388 = vmatprep.subr.bf16.mxu0 0
    %389 = vmatpush2.bf16.xpose.msra.mxu0 0
    %390 = vmatprep.subr.bf16.mxu0 0
    %391 = vmatpush2.bf16.xpose.msra.mxu0 0
    %392 = vmatprep.subr.bf16.mxu0 0
    %393 = vmatpush2.bf16.xpose.msra.mxu0 0
    %394 = vmatprep.subr.bf16.mxu0 0
    %395 = vmatpush2.bf16.xpose.msra.mxu0 0
    %396 = vmatprep.subr.bf16.mxu0 0
    %397 = vmatpush2.bf16.xpose.msra.mxu0 0
    %398 = vmatprep.subr.bf16.mxu0 0
    %399 = vmatpush2.bf16.xpose.msra.mxu0 0
    %400 = vmatprep.subr.bf16.mxu0 0
    %401 = vmatpush2.bf16.xpose.msra.mxu0 0
    %402 = vmatprep.subr.bf16.mxu0 0
    %403 = vmatpush2.bf16.xpose.msra.mxu0 0
    %404 = vmatprep.mubr.bf16.mxu0 0
    %405 = vmatmul.mubr.bf16.gmra.mxu0 %v367
    %v406 = vpop.f32.mrf.mxu0
    %v407 = vadd.f32 0.0, %v406
    %v408 = vpop.f32.mrf.mxu0
    %v409 = vpop.f32.mrf.mxu0
    %v410 = vpop.f32.mrf.mxu0
    %411 = vdwg.mxu0
    %v413 = vsel %vm365, %v362, 0
    %v416 = vsel %vm365, %v364, 0
    %418 = vmatprep.subr.bf16.mxu0 0
    %419 = vmatpush1.bf16.xpose.msra.mxu0 0
    %420 = vmatprep.subr.bf16.mxu0 0
    %421 = vmatpush1.bf16.xpose.msra.mxu0 0
    %422 = vmatprep.subr.bf16.mxu0 0
    %423 = vmatpush1.bf16.xpose.msra.mxu0 0
    %424 = vmatprep.subr.bf16.mxu0 0
    %425 = vmatpush1.bf16.xpose.msra.mxu0 0
    %426 = vmatprep.subr.bf16.mxu0 0
    %427 = vmatpush1.bf16.xpose.msra.mxu0 0
    %428 = vmatprep.subr.bf16.mxu0 0
    %429 = vmatpush1.bf16.xpose.msra.mxu0 0
    %430 = vmatprep.subr.bf16.mxu0 0
    %431 = vmatpush1.bf16.xpose.msra.mxu0 0
    %432 = vmatprep.subr.bf16.mxu0 0
    %433 = vmatpush1.bf16.xpose.msra.mxu0 %v416
    %434 = vmatprep.subr.bf16.mxu0 0
    %435 = vmatpush2.bf16.xpose.msra.mxu0 0
    %436 = vmatprep.subr.bf16.mxu0 0
    %437 = vmatpush2.bf16.xpose.msra.mxu0 0
    %438 = vmatprep.subr.bf16.mxu0 0
    %439 = vmatpush2.bf16.xpose.msra.mxu0 0
    %440 = vmatprep.subr.bf16.mxu0 0
    %441 = vmatpush2.bf16.xpose.msra.mxu0 0
    %442 = vmatprep.subr.bf16.mxu0 0
    %443 = vmatpush2.bf16.xpose.msra.mxu0 0
    %444 = vmatprep.subr.bf16.mxu0 0
    %445 = vmatpush2.bf16.xpose.msra.mxu0 0
    %446 = vmatprep.subr.bf16.mxu0 0
    %447 = vmatpush2.bf16.xpose.msra.mxu0 0
    %448 = vmatprep.subr.bf16.mxu0 0
    %449 = vmatpush2.bf16.xpose.msra.mxu0 0
    %450 = vmatprep.mubr.bf16.mxu0 0
    %451 = vmatmul.mubr.bf16.gmra.mxu0 %v413
    %v452 = vpop.f32.mrf.mxu0
    %v453 = vadd.f32 0.0, %v452
    %v454 = vpop.f32.mrf.mxu0
    %v455 = vpop.f32.mrf.mxu0
    %v456 = vpop.f32.mrf.mxu0
    %457 = vdwg.mxu0
    %v458 = vsel %vm365, %v407, -inf
    %459 = vmax.xlane.f32.xlu0 %v458
    %v460 = vpop.xlane.xlu0 %459
    %v461 = vsel %vm365, %v453, -inf
    %462 = vmax.xlane.f32.xlu0 %v461
    %v463 = vpop.xlane.xlu0 %462
    %v464 = vsub.f32 %v407, %v460
    %v465 = vsub.f32 %v453, %v463
    %v466 = vmul.f32 %v464, 1.442695
    %v467 = vpow.pop %v466
    %v468 = vmul.f32 %v465, 1.442695
    %v469 = vpow.pop %v468
    %v470 = vsel %vm365, %v467, 0.0
    %471 = vadd.xlane.f32.xlu0 %v470
    %v472 = vpop.xlane.xlu0 %471
    %v473 = vsel %vm365, %v469, 0.0
    %474 = vadd.xlane.f32.xlu0 %v473
    %v475 = vpop.xlane.xlu0 %474
    %v476 = vrcp.pop %v472
    %v477 = vmul.f32 %v467, %v476
    %v478 = vrcp.pop %v475
    %v479 = vmul.f32 %v469, %v478
    %v480 = vpack.c.bf16 %v477, %v477
    %v481 = vpack.c.bf16 %v479, %v479
    %v482 = vpack.c.bf16 %v355, %v355
    %v483 = vpack.c.bf16 %v358, %v358
    %v485 = vsel %vm365, %v480, 0
    %vm487 = vcmask 1043456
    %v489 = vsel %vm487, %v482, 0
    %491 = vmatprep.subr.bf16.mxu0 0
    %492 = vmatpush1.bf16.msra.mxu0 0
    %493 = vmatprep.subr.bf16.mxu0 0
    %494 = vmatpush1.bf16.msra.mxu0 0
    %495 = vmatprep.subr.bf16.mxu0 0
    %496 = vmatpush1.bf16.msra.mxu0 0
    %497 = vmatprep.subr.bf16.mxu0 0
    %498 = vmatpush1.bf16.msra.mxu0 0
    %499 = vmatprep.subr.bf16.mxu0 0
    %500 = vmatpush1.bf16.msra.mxu0 0
    %501 = vmatprep.subr.bf16.mxu0 0
    %502 = vmatpush1.bf16.msra.mxu0 0
    %503 = vmatprep.subr.bf16.mxu0 0
    %504 = vmatpush1.bf16.msra.mxu0 0
    %505 = vmatprep.subr.bf16.mxu0 0
    %506 = vmatpush1.bf16.msra.mxu0 %v489
    %507 = vmatprep.subr.bf16.mxu0 0
    %508 = vmatpush2.bf16.msra.mxu0 0
    %509 = vmatprep.subr.bf16.mxu0 0
    %510 = vmatpush2.bf16.msra.mxu0 0
    %511 = vmatprep.subr.bf16.mxu0 0
    %512 = vmatpush2.bf16.msra.mxu0 0
    %513 = vmatprep.subr.bf16.mxu0 0
    %514 = vmatpush2.bf16.msra.mxu0 0
    %515 = vmatprep.subr.bf16.mxu0 0
    %516 = vmatpush2.bf16.msra.mxu0 0
    %517 = vmatprep.subr.bf16.mxu0 0
    %518 = vmatpush2.bf16.msra.mxu0 0
    %519 = vmatprep.subr.bf16.mxu0 0
    %520 = vmatpush2.bf16.msra.mxu0 0
    %521 = vmatprep.subr.bf16.mxu0 0
    %522 = vmatpush2.bf16.msra.mxu0 0
    %523 = vmatprep.mubr.bf16.mxu0 0
    %524 = vmatmul.mubr.bf16.gmra.mxu0 %v485
    %v525 = vpop.f32.mrf.mxu0
    %v526 = vadd.f32 0.0, %v525
    %v527 = vpop.f32.mrf.mxu0
    %v528 = vpop.f32.mrf.mxu0
    %v529 = vpop.f32.mrf.mxu0
    %530 = vdwg.mxu0
    %v532 = vsel %vm365, %v481, 0
    %v535 = vsel %vm487, %v483, 0
    %537 = vmatprep.subr.bf16.mxu0 0
    %538 = vmatpush1.bf16.msra.mxu0 0
    %539 = vmatprep.subr.bf16.mxu0 0
    %540 = vmatpush1.bf16.msra.mxu0 0
    %541 = vmatprep.subr.bf16.mxu0 0
    %542 = vmatpush1.bf16.msra.mxu0 0
    %543 = vmatprep.subr.bf16.mxu0 0
    %544 = vmatpush1.bf16.msra.mxu0 0
    %545 = vmatprep.subr.bf16.mxu0 0
    %546 = vmatpush1.bf16.msra.mxu0 0
    %547 = vmatprep.subr.bf16.mxu0 0
    %548 = vmatpush1.bf16.msra.mxu0 0
    %549 = vmatprep.subr.bf16.mxu0 0
    %550 = vmatpush1.bf16.msra.mxu0 0
    %551 = vmatprep.subr.bf16.mxu0 0
    %552 = vmatpush1.bf16.msra.mxu0 %v535
    %553 = vmatprep.subr.bf16.mxu0 0
    %554 = vmatpush2.bf16.msra.mxu0 0
    %555 = vmatprep.subr.bf16.mxu0 0
    %556 = vmatpush2.bf16.msra.mxu0 0
    %557 = vmatprep.subr.bf16.mxu0 0
    %558 = vmatpush2.bf16.msra.mxu0 0
    %559 = vmatprep.subr.bf16.mxu0 0
    %560 = vmatpush2.bf16.msra.mxu0 0
    %561 = vmatprep.subr.bf16.mxu0 0
    %562 = vmatpush2.bf16.msra.mxu0 0
    %563 = vmatprep.subr.bf16.mxu0 0
    %564 = vmatpush2.bf16.msra.mxu0 0
    %565 = vmatprep.subr.bf16.mxu0 0
    %566 = vmatpush2.bf16.msra.mxu0 0
    %567 = vmatprep.subr.bf16.mxu0 0
    %568 = vmatpush2.bf16.msra.mxu0 0
    %569 = vmatprep.mubr.bf16.mxu0 0
    %570 = vmatmul.mubr.bf16.gmra.mxu0 %v532
    %v571 = vpop.f32.mrf.mxu0
    %v572 = vadd.f32 0.0, %v571
    %v573 = vpop.f32.mrf.mxu0
    %v574 = vpop.f32.mrf.mxu0
    %v575 = vpop.f32.mrf.mxu0
    %576 = vdwg.mxu0
    %v577 = vld [vmem:[%s10] sm:$0xf]
    %v578 = vpack.c.bf16 %v572, %v526
    %s579 = scalar_lea.vmem %s4, 16
    %v580 = vld [vmem:[%s579] sm:$0xf]
    %v581 = vld [vmem:[%s579 + $0x4] sm:$0xf]
    %v582 = vld [vmem:[%s579 + $0x8] sm:$0xf]
    %v583 = vld [vmem:[%s579 + $0xc] sm:$0xf]
    %s584 = scalar_lea.vmem %s5, 1
    %v585 = vld [vmem:[%s584] sm:$0x1]
    %v587 = vlaneseq
    %v588 = vshrl.u32 %v587, 7
    %v589 = vsub.s32 0, %v588
    %v590 = vrot.slane %v585, %v589
    %v596 = vunpack.c.l.b16 %v580
    %v597 = vunpack.c.l.b16 %v581
    %v598 = vunpack.c.l.b16 %v582
    %v599 = vunpack.c.l.b16 %v583
    %v600 = vpack.c.b16 %v597, %v596
    %v601 = vpack.c.b16 %v599, %v598
    %604 = vmatprep.subr.bf16.mxu0 0
    %605 = vmatpush1.bf16.msra.mxu0 0
    %606 = vmatprep.subr.bf16.mxu0 0
    %607 = vmatpush1.bf16.msra.mxu0 0
    %608 = vmatprep.subr.bf16.mxu0 0
    %609 = vmatpush1.bf16.msra.mxu0 0
    %610 = vmatprep.subr.bf16.mxu0 0
    %611 = vmatpush1.bf16.msra.mxu0 0
    %612 = vmatprep.subr.bf16.mxu0 0
    %613 = vmatpush1.bf16.msra.mxu0 0
    %614 = vmatprep.subr.bf16.mxu0 0
    %615 = vmatpush1.bf16.msra.mxu0 0
    %616 = vmatprep.subr.bf16.mxu0 0
    %617 = vmatpush1.bf16.msra.mxu0 %v601
    %618 = vmatprep.subr.bf16.mxu0 0
    %619 = vmatpush1.bf16.msra.mxu0 %v600
    %620 = vmatprep.subr.bf16.mxu0 0
    %621 = vmatpush2.bf16.msra.mxu0 0
    %622 = vmatprep.subr.bf16.mxu0 0
    %623 = vmatpush2.bf16.msra.mxu0 0
    %624 = vmatprep.subr.bf16.mxu0 0
    %625 = vmatpush2.bf16.msra.mxu0 0
    %626 = vmatprep.subr.bf16.mxu0 0
    %627 = vmatpush2.bf16.msra.mxu0 0
    %628 = vmatprep.subr.bf16.mxu0 0
    %629 = vmatpush2.bf16.msra.mxu0 0
    %630 = vmatprep.subr.bf16.mxu0 0
    %631 = vmatpush2.bf16.msra.mxu0 0
    %632 = vmatprep.subr.bf16.mxu0 0
    %633 = vmatpush2.bf16.msra.mxu0 0
    %634 = vmatprep.subr.bf16.mxu0 0
    %635 = vmatpush2.bf16.msra.mxu0 0
    %636 = vmatprep.mubr.bf16.mxu0 0
    %637 = vmatmul.mubr.bf16.gmra.mxu0 %v190
    %v638 = vpop.f32.mrf.mxu0
    %v639 = vadd.f32 %v590, %v638
    %v640 = vpop.f32.mrf.mxu0
    %v641 = vpop.f32.mrf.mxu0
    %v642 = vadd.f32 %v590, %v641
    %v643 = vpop.f32.mrf.mxu0
    %644 = vdwg.mxu0
    %s645 = scalar_lea.vmem %s6, 16
    %v646 = vld [vmem:[%s645] sm:$0xf]
    %v647 = vld [vmem:[%s645 + $0x4] sm:$0xf]
    %v648 = vld [vmem:[%s645 + $0x8] sm:$0xf]
    %v649 = vld [vmem:[%s645 + $0xc] sm:$0xf]
    %s650 = scalar_lea.vmem %s7, 1
    %v651 = vld [vmem:[%s650] sm:$0x1]
    %v653 = vlaneseq
    %v654 = vshrl.u32 %v653, 7
    %v655 = vsub.s32 0, %v654
    %v656 = vrot.slane %v651, %v655
    %v662 = vunpack.c.l.b16 %v646
    %v663 = vunpack.c.l.b16 %v647
    %v664 = vunpack.c.l.b16 %v648
    %v665 = vunpack.c.l.b16 %v649
    %v666 = vpack.c.b16 %v663, %v662
    %v667 = vpack.c.b16 %v665, %v664
    %670 = vmatprep.subr.bf16.mxu0 0
    %671 = vmatpush1.bf16.msra.mxu0 0
    %672 = vmatprep.subr.bf16.mxu0 0
    %673 = vmatpush1.bf16.msra.mxu0 0
    %674 = vmatprep.subr.bf16.mxu0 0
    %675 = vmatpush1.bf16.msra.mxu0 0
    %676 = vmatprep.subr.bf16.mxu0 0
    %677 = vmatpush1.bf16.msra.mxu0 0
    %678 = vmatprep.subr.bf16.mxu0 0
    %679 = vmatpush1.bf16.msra.mxu0 0
    %680 = vmatprep.subr.bf16.mxu0 0
    %681 = vmatpush1.bf16.msra.mxu0 0
    %682 = vmatprep.subr.bf16.mxu0 0
    %683 = vmatpush1.bf16.msra.mxu0 %v667
    %684 = vmatprep.subr.bf16.mxu0 0
    %685 = vmatpush1.bf16.msra.mxu0 %v666
    %686 = vmatprep.subr.bf16.mxu0 0
    %687 = vmatpush2.bf16.msra.mxu0 0
    %688 = vmatprep.subr.bf16.mxu0 0
    %689 = vmatpush2.bf16.msra.mxu0 0
    %690 = vmatprep.subr.bf16.mxu0 0
    %691 = vmatpush2.bf16.msra.mxu0 0
    %692 = vmatprep.subr.bf16.mxu0 0
    %693 = vmatpush2.bf16.msra.mxu0 0
    %694 = vmatprep.subr.bf16.mxu0 0
    %695 = vmatpush2.bf16.msra.mxu0 0
    %696 = vmatprep.subr.bf16.mxu0 0
    %697 = vmatpush2.bf16.msra.mxu0 0
    %698 = vmatprep.subr.bf16.mxu0 0
    %699 = vmatpush2.bf16.msra.mxu0 0
    %700 = vmatprep.subr.bf16.mxu0 0
    %701 = vmatpush2.bf16.msra.mxu0 0
    %702 = vmatprep.mubr.bf16.mxu0 0
    %703 = vmatmul.mubr.bf16.gmra.mxu0 %v190
    %v704 = vpop.f32.mrf.mxu0
    %v705 = vadd.f32 %v656, %v704
    %v706 = vpop.f32.mrf.mxu0
    %v707 = vpop.f32.mrf.mxu0
    %v708 = vadd.f32 %v656, %v707
    %v709 = vpop.f32.mrf.mxu0
    %710 = vdwg.mxu0
    %s711 = scalar_lea.vmem %s8, 16
    %v712 = vld [vmem:[%s711] sm:$0xf]
    %v713 = vld [vmem:[%s711 + $0x4] sm:$0xf]
    %v714 = vld [vmem:[%s711 + $0x8] sm:$0xf]
    %v715 = vld [vmem:[%s711 + $0xc] sm:$0xf]
    %s716 = scalar_lea.vmem %s9, 1
    %v717 = vld [vmem:[%s716] sm:$0x1]
    %v719 = vlaneseq
    %v720 = vshrl.u32 %v719, 7
    %v721 = vsub.s32 0, %v720
    %v722 = vrot.slane %v717, %v721
    %v728 = vunpack.c.l.b16 %v712
    %v729 = vunpack.c.l.b16 %v713
    %v730 = vunpack.c.l.b16 %v714
    %v731 = vunpack.c.l.b16 %v715
    %v732 = vpack.c.b16 %v729, %v728
    %v733 = vpack.c.b16 %v731, %v730
    %736 = vmatprep.subr.bf16.mxu0 0
    %737 = vmatpush1.bf16.msra.mxu0 0
    %738 = vmatprep.subr.bf16.mxu0 0
    %739 = vmatpush1.bf16.msra.mxu0 0
    %740 = vmatprep.subr.bf16.mxu0 0
    %741 = vmatpush1.bf16.msra.mxu0 0
    %742 = vmatprep.subr.bf16.mxu0 0
    %743 = vmatpush1.bf16.msra.mxu0 0
    %744 = vmatprep.subr.bf16.mxu0 0
    %745 = vmatpush1.bf16.msra.mxu0 0
    %746 = vmatprep.subr.bf16.mxu0 0
    %747 = vmatpush1.bf16.msra.mxu0 0
    %748 = vmatprep.subr.bf16.mxu0 0
    %749 = vmatpush1.bf16.msra.mxu0 %v733
    %750 = vmatprep.subr.bf16.mxu0 0
    %751 = vmatpush1.bf16.msra.mxu0 %v732
    %752 = vmatprep.subr.bf16.mxu0 0
    %753 = vmatpush2.bf16.msra.mxu0 0
    %754 = vmatprep.subr.bf16.mxu0 0
    %755 = vmatpush2.bf16.msra.mxu0 0
    %756 = vmatprep.subr.bf16.mxu0 0
    %757 = vmatpush2.bf16.msra.mxu0 0
    %758 = vmatprep.subr.bf16.mxu0 0
    %759 = vmatpush2.bf16.msra.mxu0 0
    %760 = vmatprep.subr.bf16.mxu0 0
    %761 = vmatpush2.bf16.msra.mxu0 0
    %762 = vmatprep.subr.bf16.mxu0 0
    %763 = vmatpush2.bf16.msra.mxu0 0
    %764 = vmatprep.subr.bf16.mxu0 0
    %765 = vmatpush2.bf16.msra.mxu0 0
    %766 = vmatprep.subr.bf16.mxu0 0
    %767 = vmatpush2.bf16.msra.mxu0 0
    %768 = vmatprep.mubr.bf16.mxu0 0
    %769 = vmatmul.mubr.bf16.gmra.mxu0 %v190
    %v770 = vpop.f32.mrf.mxu0
    %v771 = vadd.f32 %v722, %v770
    %v772 = vpop.f32.mrf.mxu0
    %v773 = vpop.f32.mrf.mxu0
    %v774 = vadd.f32 %v722, %v773
    %v775 = vpop.f32.mrf.mxu0
    %776 = vdwg.mxu0
    %v777 = vpack.c.bf16 %v639, %v639
    %v778 = vpack.c.bf16 %v642, %v642
    %v779 = vpack.c.bf16 %v705, %v705
    %v780 = vpack.c.bf16 %v708, %v708
    %v782 = vsel %vm365, %v777, 0
    %v785 = vsel %vm365, %v779, 0
    %787 = vmatprep.subr.bf16.mxu0 0
    %788 = vmatpush1.bf16.xpose.msra.mxu0 0
    %789 = vmatprep.subr.bf16.mxu0 0
    %790 = vmatpush1.bf16.xpose.msra.mxu0 0
    %791 = vmatprep.subr.bf16.mxu0 0
    %792 = vmatpush1.bf16.xpose.msra.mxu0 0
    %793 = vmatprep.subr.bf16.mxu0 0
    %794 = vmatpush1.bf16.xpose.msra.mxu0 0
    %795 = vmatprep.subr.bf16.mxu0 0
    %796 = vmatpush1.bf16.xpose.msra.mxu0 0
    %797 = vmatprep.subr.bf16.mxu0 0
    %798 = vmatpush1.bf16.xpose.msra.mxu0 0
    %799 = vmatprep.subr.bf16.mxu0 0
    %800 = vmatpush1.bf16.xpose.msra.mxu0 0
    %801 = vmatprep.subr.bf16.mxu0 0
    %802 = vmatpush1.bf16.xpose.msra.mxu0 %v785
    %803 = vmatprep.subr.bf16.mxu0 0
    %804 = vmatpush2.bf16.xpose.msra.mxu0 0
    %805 = vmatprep.subr.bf16.mxu0 0
    %806 = vmatpush2.bf16.xpose.msra.mxu0 0
    %807 = vmatprep.subr.bf16.mxu0 0
    %808 = vmatpush2.bf16.xpose.msra.mxu0 0
    %809 = vmatprep.subr.bf16.mxu0 0
    %810 = vmatpush2.bf16.xpose.msra.mxu0 0
    %811 = vmatprep.subr.bf16.mxu0 0
    %812 = vmatpush2.bf16.xpose.msra.mxu0 0
    %813 = vmatprep.subr.bf16.mxu0 0
    %814 = vmatpush2.bf16.xpose.msra.mxu0 0
    %815 = vmatprep.subr.bf16.mxu0 0
    %816 = vmatpush2.bf16.xpose.msra.mxu0 0
    %817 = vmatprep.subr.bf16.mxu0 0
    %818 = vmatpush2.bf16.xpose.msra.mxu0 0
    %819 = vmatprep.mubr.bf16.mxu0 0
    %820 = vmatmul.mubr.bf16.gmra.mxu0 %v782
    %v821 = vpop.f32.mrf.mxu0
    %v822 = vadd.f32 0.0, %v821
    %v823 = vpop.f32.mrf.mxu0
    %v824 = vpop.f32.mrf.mxu0
    %v825 = vpop.f32.mrf.mxu0
    %826 = vdwg.mxu0
    %v828 = vsel %vm365, %v778, 0
    %v831 = vsel %vm365, %v780, 0
    %833 = vmatprep.subr.bf16.mxu0 0
    %834 = vmatpush1.bf16.xpose.msra.mxu0 0
    %835 = vmatprep.subr.bf16.mxu0 0
    %836 = vmatpush1.bf16.xpose.msra.mxu0 0
    %837 = vmatprep.subr.bf16.mxu0 0
    %838 = vmatpush1.bf16.xpose.msra.mxu0 0
    %839 = vmatprep.subr.bf16.mxu0 0
    %840 = vmatpush1.bf16.xpose.msra.mxu0 0
    %841 = vmatprep.subr.bf16.mxu0 0
    %842 = vmatpush1.bf16.xpose.msra.mxu0 0
    %843 = vmatprep.subr.bf16.mxu0 0
    %844 = vmatpush1.bf16.xpose.msra.mxu0 0
    %845 = vmatprep.subr.bf16.mxu0 0
    %846 = vmatpush1.bf16.xpose.msra.mxu0 0
    %847 = vmatprep.subr.bf16.mxu0 0
    %848 = vmatpush1.bf16.xpose.msra.mxu0 %v831
    %849 = vmatprep.subr.bf16.mxu0 0
    %850 = vmatpush2.bf16.xpose.msra.mxu0 0
    %851 = vmatprep.subr.bf16.mxu0 0
    %852 = vmatpush2.bf16.xpose.msra.mxu0 0
    %853 = vmatprep.subr.bf16.mxu0 0
    %854 = vmatpush2.bf16.xpose.msra.mxu0 0
    %855 = vmatprep.subr.bf16.mxu0 0
    %856 = vmatpush2.bf16.xpose.msra.mxu0 0
    %857 = vmatprep.subr.bf16.mxu0 0
    %858 = vmatpush2.bf16.xpose.msra.mxu0 0
    %859 = vmatprep.subr.bf16.mxu0 0
    %860 = vmatpush2.bf16.xpose.msra.mxu0 0
    %861 = vmatprep.subr.bf16.mxu0 0
    %862 = vmatpush2.bf16.xpose.msra.mxu0 0
    %863 = vmatprep.subr.bf16.mxu0 0
    %864 = vmatpush2.bf16.xpose.msra.mxu0 0
    %865 = vmatprep.mubr.bf16.mxu0 0
    %866 = vmatmul.mubr.bf16.gmra.mxu0 %v828
    %v867 = vpop.f32.mrf.mxu0
    %v868 = vadd.f32 0.0, %v867
    %v869 = vpop.f32.mrf.mxu0
    %v870 = vpop.f32.mrf.mxu0
    %v871 = vpop.f32.mrf.mxu0
    %872 = vdwg.mxu0
    %v873 = vsel %vm365, %v822, -inf
    %874 = vmax.xlane.f32.xlu0 %v873
    %v875 = vpop.xlane.xlu0 %874
    %v876 = vsel %vm365, %v868, -inf
    %877 = vmax.xlane.f32.xlu0 %v876
    %v878 = vpop.xlane.xlu0 %877
    %v879 = vsub.f32 %v822, %v875
    %v880 = vsub.f32 %v868, %v878
    %v881 = vmul.f32 %v879, 1.442695
    %v882 = vpow.pop %v881
    %v883 = vmul.f32 %v880, 1.442695
    %v884 = vpow.pop %v883
    %v885 = vsel %vm365, %v882, 0.0
    %886 = vadd.xlane.f32.xlu0 %v885
    %v887 = vpop.xlane.xlu0 %886
    %v888 = vsel %vm365, %v884, 0.0
    %889 = vadd.xlane.f32.xlu0 %v888
    %v890 = vpop.xlane.xlu0 %889
    %v891 = vrcp.pop %v887
    %v892 = vmul.f32 %v882, %v891
    %v893 = vrcp.pop %v890
    %v894 = vmul.f32 %v884, %v893
    %v895 = vpack.c.bf16 %v892, %v892
    %v896 = vpack.c.bf16 %v894, %v894
    %v897 = vpack.c.bf16 %v771, %v771
    %v898 = vpack.c.bf16 %v774, %v774
    %v900 = vsel %vm365, %v895, 0
    %v903 = vsel %vm487, %v897, 0
    %905 = vmatprep.subr.bf16.mxu0 0
    %906 = vmatpush1.bf16.msra.mxu0 0
    %907 = vmatprep.subr.bf16.mxu0 0
    %908 = vmatpush1.bf16.msra.mxu0 0
    %909 = vmatprep.subr.bf16.mxu0 0
    %910 = vmatpush1.bf16.msra.mxu0 0
    %911 = vmatprep.subr.bf16.mxu0 0
    %912 = vmatpush1.bf16.msra.mxu0 0
    %913 = vmatprep.subr.bf16.mxu0 0
    %914 = vmatpush1.bf16.msra.mxu0 0
    %915 = vmatprep.subr.bf16.mxu0 0
    %916 = vmatpush1.bf16.msra.mxu0 0
    %917 = vmatprep.subr.bf16.mxu0 0
    %918 = vmatpush1.bf16.msra.mxu0 0
    %919 = vmatprep.subr.bf16.mxu0 0
    %920 = vmatpush1.bf16.msra.mxu0 %v903
    %921 = vmatprep.subr.bf16.mxu0 0
    %922 = vmatpush2.bf16.msra.mxu0 0
    %923 = vmatprep.subr.bf16.mxu0 0
    %924 = vmatpush2.bf16.msra.mxu0 0
    %925 = vmatprep.subr.bf16.mxu0 0
    %926 = vmatpush2.bf16.msra.mxu0 0
    %927 = vmatprep.subr.bf16.mxu0 0
    %928 = vmatpush2.bf16.msra.mxu0 0
    %929 = vmatprep.subr.bf16.mxu0 0
    %930 = vmatpush2.bf16.msra.mxu0 0
    %931 = vmatprep.subr.bf16.mxu0 0
    %932 = vmatpush2.bf16.msra.mxu0 0
    %933 = vmatprep.subr.bf16.mxu0 0
    %934 = vmatpush2.bf16.msra.mxu0 0
    %935 = vmatprep.subr.bf16.mxu0 0
    %936 = vmatpush2.bf16.msra.mxu0 0
    %937 = vmatprep.mubr.bf16.mxu0 0
    %938 = vmatmul.mubr.bf16.gmra.mxu0 %v900
    %v939 = vpop.f32.mrf.mxu0
    %v940 = vadd.f32 0.0, %v939
    %v941 = vpop.f32.mrf.mxu0
    %v942 = vpop.f32.mrf.mxu0
    %v943 = vpop.f32.mrf.mxu0
    %944 = vdwg.mxu0
    %v946 = vsel %vm365, %v896, 0
    %v949 = vsel %vm487, %v898, 0
    %951 = vmatprep.subr.bf16.mxu0 0
    %952 = vmatpush1.bf16.msra.mxu0 0
    %953 = vmatprep.subr.bf16.mxu0 0
    %954 = vmatpush1.bf16.msra.mxu0 0
    %955 = vmatprep.subr.bf16.mxu0 0
    %956 = vmatpush1.bf16.msra.mxu0 0
    %957 = vmatprep.subr.bf16.mxu0 0
    %958 = vmatpush1.bf16.msra.mxu0 0
    %959 = vmatprep.subr.bf16.mxu0 0
    %960 = vmatpush1.bf16.msra.mxu0 0
    %961 = vmatprep.subr.bf16.mxu0 0
    %962 = vmatpush1.bf16.msra.mxu0 0
    %963 = vmatprep.subr.bf16.mxu0 0
    %964 = vmatpush1.bf16.msra.mxu0 0
    %965 = vmatprep.subr.bf16.mxu0 0
    %966 = vmatpush1.bf16.msra.mxu0 %v949
    %967 = vmatprep.subr.bf16.mxu0 0
    %968 = vmatpush2.bf16.msra.mxu0 0
    %969 = vmatprep.subr.bf16.mxu0 0
    %970 = vmatpush2.bf16.msra.mxu0 0
    %971 = vmatprep.subr.bf16.mxu0 0
    %972 = vmatpush2.bf16.msra.mxu0 0
    %973 = vmatprep.subr.bf16.mxu0 0
    %974 = vmatpush2.bf16.msra.mxu0 0
    %975 = vmatprep.subr.bf16.mxu0 0
    %976 = vmatpush2.bf16.msra.mxu0 0
    %977 = vmatprep.subr.bf16.mxu0 0
    %978 = vmatpush2.bf16.msra.mxu0 0
    %979 = vmatprep.subr.bf16.mxu0 0
    %980 = vmatpush2.bf16.msra.mxu0 0
    %981 = vmatprep.subr.bf16.mxu0 0
    %982 = vmatpush2.bf16.msra.mxu0 0
    %983 = vmatprep.mubr.bf16.mxu0 0
    %984 = vmatmul.mubr.bf16.gmra.mxu0 %v946
    %v985 = vpop.f32.mrf.mxu0
    %v986 = vadd.f32 0.0, %v985
    %v987 = vpop.f32.mrf.mxu0
    %v988 = vpop.f32.mrf.mxu0
    %v989 = vpop.f32.mrf.mxu0
    %990 = vdwg.mxu0
    %s991 = scalar_lea.vmem %s10, 4
    %v992 = vld [vmem:[%s991] sm:$0xf]
    %v993 = vpack.c.bf16 %v986, %v940
    %v995 = vsel %vm365, %v993, 0
    %v998 = vsel %vm487, %v992, 0
    %1000 = vmatprep.subr.bf16.mxu0 0
    %1001 = vmatpush1.bf16.msra.mxu0 0
    %1002 = vmatprep.subr.bf16.mxu0 0
    %1003 = vmatpush1.bf16.msra.mxu0 0
    %1004 = vmatprep.subr.bf16.mxu0 0
    %1005 = vmatpush1.bf16.msra.mxu0 0
    %1006 = vmatprep.subr.bf16.mxu0 0
    %1007 = vmatpush1.bf16.msra.mxu0 0
    %1008 = vmatprep.subr.bf16.mxu0 0
    %1009 = vmatpush1.bf16.msra.mxu0 0
    %1010 = vmatprep.subr.bf16.mxu0 0
    %1011 = vmatpush1.bf16.msra.mxu0 0
    %1012 = vmatprep.subr.bf16.mxu0 0
    %1013 = vmatpush1.bf16.msra.mxu0 0
    %1014 = vmatprep.subr.bf16.mxu0 0
    %1015 = vmatpush1.bf16.msra.mxu0 %v998
    %1016 = vmatprep.subr.bf16.mxu0 0
    %1017 = vmatpush2.bf16.msra.mxu0 0
    %1018 = vmatprep.subr.bf16.mxu0 0
    %1019 = vmatpush2.bf16.msra.mxu0 0
    %1020 = vmatprep.subr.bf16.mxu0 0
    %1021 = vmatpush2.bf16.msra.mxu0 0
    %1022 = vmatprep.subr.bf16.mxu0 0
    %1023 = vmatpush2.bf16.msra.mxu0 0
    %1024 = vmatprep.subr.bf16.mxu0 0
    %1025 = vmatpush2.bf16.msra.mxu0 0
    %1026 = vmatprep.subr.bf16.mxu0 0
    %1027 = vmatpush2.bf16.msra.mxu0 0
    %1028 = vmatprep.subr.bf16.mxu0 0
    %1029 = vmatpush2.bf16.msra.mxu0 0
    %1030 = vmatprep.subr.bf16.mxu0 0
    %1031 = vmatpush2.bf16.msra.mxu0 0
    %1032 = vmatprep.mubr.bf16.mxu0 0
    %1033 = vmatmul.mubr.bf16.gmra.mxu0 %v995
    %v1034 = vpop.f32.mrf.mxu0
    %v1035 = vadd.f32 0.0, %v1034
    %v1036 = vpop.f32.mrf.mxu0
    %v1037 = vpop.f32.mrf.mxu0
    %v1038 = vadd.f32 0.0, %v1037
    %v1039 = vpop.f32.mrf.mxu0
    %1040 = vdwg.mxu0
    %v1042 = vsel %vm365, %v578, 0
    %v1045 = vsel %vm487, %v577, 0
    %1047 = vmatprep.subr.bf16.mxu0 0
    %1048 = vmatpush1.bf16.msra.mxu0 0
    %1049 = vmatprep.subr.bf16.mxu0 0
    %1050 = vmatpush1.bf16.msra.mxu0 0
    %1051 = vmatprep.subr.bf16.mxu0 0
    %1052 = vmatpush1.bf16.msra.mxu0 0
    %1053 = vmatprep.subr.bf16.mxu0 0
    %1054 = vmatpush1.bf16.msra.mxu0 0
    %1055 = vmatprep.subr.bf16.mxu0 0
    %1056 = vmatpush1.bf16.msra.mxu0 0
    %1057 = vmatprep.subr.bf16.mxu0 0
    %1058 = vmatpush1.bf16.msra.mxu0 0
    %1059 = vmatprep.subr.bf16.mxu0 0
    %1060 = vmatpush1.bf16.msra.mxu0 0
    %1061 = vmatprep.subr.bf16.mxu0 0
    %1062 = vmatpush1.bf16.msra.mxu0 %v1045
    %1063 = vmatprep.subr.bf16.mxu0 0
    %1064 = vmatpush2.bf16.msra.mxu0 0
    %1065 = vmatprep.subr.bf16.mxu0 0
    %1066 = vmatpush2.bf16.msra.mxu0 0
    %1067 = vmatprep.subr.bf16.mxu0 0
    %1068 = vmatpush2.bf16.msra.mxu0 0
    %1069 = vmatprep.subr.bf16.mxu0 0
    %1070 = vmatpush2.bf16.msra.mxu0 0
    %1071 = vmatprep.subr.bf16.mxu0 0
    %1072 = vmatpush2.bf16.msra.mxu0 0
    %1073 = vmatprep.subr.bf16.mxu0 0
    %1074 = vmatpush2.bf16.msra.mxu0 0
    %1075 = vmatprep.subr.bf16.mxu0 0
    %1076 = vmatpush2.bf16.msra.mxu0 0
    %1077 = vmatprep.subr.bf16.mxu0 0
    %1078 = vmatpush2.bf16.msra.mxu0 0
    %1079 = vmatprep.mubr.bf16.mxu0 0
    %1080 = vmatmul.mubr.bf16.gmra.mxu0 %v1042
    %v1081 = vpop.f32.mrf.mxu0
    %v1082 = vadd.f32 %v1035, %v1081
    %v1083 = vpop.f32.mrf.mxu0
    %v1084 = vpop.f32.mrf.mxu0
    %v1085 = vadd.f32 %v1038, %v1084
    %v1086 = vpop.f32.mrf.mxu0
    %1087 = vdwg.mxu0
    %s1088 = scalar_lea.vmem %s4, 32
    %v1089 = vld [vmem:[%s1088] sm:$0xf]
    %v1090 = vld [vmem:[%s1088 + $0x4] sm:$0xf]
    %v1091 = vld [vmem:[%s1088 + $0x8] sm:$0xf]
    %v1092 = vld [vmem:[%s1088 + $0xc] sm:$0xf]
    %s1093 = scalar_lea.vmem %s5, 2
    %v1094 = vld [vmem:[%s1093] sm:$0x1]
    %v1096 = vlaneseq
    %v1097 = vshrl.u32 %v1096, 7
    %v1098 = vsub.s32 0, %v1097
    %v1099 = vrot.slane %v1094, %v1098
    %v1105 = vunpack.c.l.b16 %v1089
    %v1106 = vunpack.c.l.b16 %v1090
    %v1107 = vunpack.c.l.b16 %v1091
    %v1108 = vunpack.c.l.b16 %v1092
    %v1109 = vpack.c.b16 %v1106, %v1105
    %v1110 = vpack.c.b16 %v1108, %v1107
    %1113 = vmatprep.subr.bf16.mxu0 0
    %1114 = vmatpush1.bf16.msra.mxu0 0
    %1115 = vmatprep.subr.bf16.mxu0 0
    %1116 = vmatpush1.bf16.msra.mxu0 0
    %1117 = vmatprep.subr.bf16.mxu0 0
    %1118 = vmatpush1.bf16.msra.mxu0 0
    %1119 = vmatprep.subr.bf16.mxu0 0
    %1120 = vmatpush1.bf16.msra.mxu0 0
    %1121 = vmatprep.subr.bf16.mxu0 0
    %1122 = vmatpush1.bf16.msra.mxu0 0
    %1123 = vmatprep.subr.bf16.mxu0 0
    %1124 = vmatpush1.bf16.msra.mxu0 0
    %1125 = vmatprep.subr.bf16.mxu0 0
    %1126 = vmatpush1.bf16.msra.mxu0 %v1110
    %1127 = vmatprep.subr.bf16.mxu0 0
    %1128 = vmatpush1.bf16.msra.mxu0 %v1109
    %1129 = vmatprep.subr.bf16.mxu0 0
    %1130 = vmatpush2.bf16.msra.mxu0 0
    %1131 = vmatprep.subr.bf16.mxu0 0
    %1132 = vmatpush2.bf16.msra.mxu0 0
    %1133 = vmatprep.subr.bf16.mxu0 0
    %1134 = vmatpush2.bf16.msra.mxu0 0
    %1135 = vmatprep.subr.bf16.mxu0 0
    %1136 = vmatpush2.bf16.msra.mxu0 0
    %1137 = vmatprep.subr.bf16.mxu0 0
    %1138 = vmatpush2.bf16.msra.mxu0 0
    %1139 = vmatprep.subr.bf16.mxu0 0
    %1140 = vmatpush2.bf16.msra.mxu0 0
    %1141 = vmatprep.subr.bf16.mxu0 0
    %1142 = vmatpush2.bf16.msra.mxu0 0
    %1143 = vmatprep.subr.bf16.mxu0 0
    %1144 = vmatpush2.bf16.msra.mxu0 0
    %1145 = vmatprep.mubr.bf16.mxu0 0
    %1146 = vmatmul.mubr.bf16.gmra.mxu0 %v190
    %v1147 = vpop.f32.mrf.mxu0
    %v1148 = vadd.f32 %v1099, %v1147
    %v1149 = vpop.f32.mrf.mxu0
    %v1150 = vpop.f32.mrf.mxu0
    %v1151 = vadd.f32 %v1099, %v1150
    %v1152 = vpop.f32.mrf.mxu0
    %1153 = vdwg.mxu0
    %s1154 = scalar_lea.vmem %s6, 32
    %v1155 = vld [vmem:[%s1154] sm:$0xf]
    %v1156 = vld [vmem:[%s1154 + $0x4] sm:$0xf]
    %v1157 = vld [vmem:[%s1154 + $0x8] sm:$0xf]
    %v1158 = vld [vmem:[%s1154 + $0xc] sm:$0xf]
    %s1159 = scalar_lea.vmem %s7, 2
    %v1160 = vld [vmem:[%s1159] sm:$0x1]
    %v1162 = vlaneseq
    %v1163 = vshrl.u32 %v1162, 7
    %v1164 = vsub.s32 0, %v1163
    %v1165 = vrot.slane %v1160, %v1164
    %v1171 = vunpack.c.l.b16 %v1155
    %v1172 = vunpack.c.l.b16 %v1156
    %v1173 = vunpack.c.l.b16 %v1157
    %v1174 = vunpack.c.l.b16 %v1158
    %v1175 = vpack.c.b16 %v1172, %v1171
    %v1176 = vpack.c.b16 %v1174, %v1173
    %1179 = vmatprep.subr.bf16.mxu0 0
    %1180 = vmatpush1.bf16.msra.mxu0 0
    %1181 = vmatprep.subr.bf16.mxu0 0
    %1182 = vmatpush1.bf16.msra.mxu0 0
    %1183 = vmatprep.subr.bf16.mxu0 0
    %1184 = vmatpush1.bf16.msra.mxu0 0
    %1185 = vmatprep.subr.bf16.mxu0 0
    %1186 = vmatpush1.bf16.msra.mxu0 0
    %1187 = vmatprep.subr.bf16.mxu0 0
    %1188 = vmatpush1.bf16.msra.mxu0 0
    %1189 = vmatprep.subr.bf16.mxu0 0
    %1190 = vmatpush1.bf16.msra.mxu0 0
    %1191 = vmatprep.subr.bf16.mxu0 0
    %1192 = vmatpush1.bf16.msra.mxu0 %v1176
    %1193 = vmatprep.subr.bf16.mxu0 0
    %1194 = vmatpush1.bf16.msra.mxu0 %v1175
    %1195 = vmatprep.subr.bf16.mxu0 0
    %1196 = vmatpush2.bf16.msra.mxu0 0
    %1197 = vmatprep.subr.bf16.mxu0 0
    %1198 = vmatpush2.bf16.msra.mxu0 0
    %1199 = vmatprep.subr.bf16.mxu0 0
    %1200 = vmatpush2.bf16.msra.mxu0 0
    %1201 = vmatprep.subr.bf16.mxu0 0
    %1202 = vmatpush2.bf16.msra.mxu0 0
    %1203 = vmatprep.subr.bf16.mxu0 0
    %1204 = vmatpush2.bf16.msra.mxu0 0
    %1205 = vmatprep.subr.bf16.mxu0 0
    %1206 = vmatpush2.bf16.msra.mxu0 0
    %1207 = vmatprep.subr.bf16.mxu0 0
    %1208 = vmatpush2.bf16.msra.mxu0 0
    %1209 = vmatprep.subr.bf16.mxu0 0
    %1210 = vmatpush2.bf16.msra.mxu0 0
    %1211 = vmatprep.mubr.bf16.mxu0 0
    %1212 = vmatmul.mubr.bf16.gmra.mxu0 %v190
    %v1213 = vpop.f32.mrf.mxu0
    %v1214 = vadd.f32 %v1165, %v1213
    %v1215 = vpop.f32.mrf.mxu0
    %v1216 = vpop.f32.mrf.mxu0
    %v1217 = vadd.f32 %v1165, %v1216
    %v1218 = vpop.f32.mrf.mxu0
    %1219 = vdwg.mxu0
    %s1220 = scalar_lea.vmem %s8, 32
    %v1221 = vld [vmem:[%s1220] sm:$0xf]
    %v1222 = vld [vmem:[%s1220 + $0x4] sm:$0xf]
    %v1223 = vld [vmem:[%s1220 + $0x8] sm:$0xf]
    %v1224 = vld [vmem:[%s1220 + $0xc] sm:$0xf]
    %s1225 = scalar_lea.vmem %s9, 2
    %v1226 = vld [vmem:[%s1225] sm:$0x1]
    %v1228 = vlaneseq
    %v1229 = vshrl.u32 %v1228, 7
    %v1230 = vsub.s32 0, %v1229
    %v1231 = vrot.slane %v1226, %v1230
    %v1237 = vunpack.c.l.b16 %v1221
    %v1238 = vunpack.c.l.b16 %v1222
    %v1239 = vunpack.c.l.b16 %v1223
    %v1240 = vunpack.c.l.b16 %v1224
    %v1241 = vpack.c.b16 %v1238, %v1237
    %v1242 = vpack.c.b16 %v1240, %v1239
    %1245 = vmatprep.subr.bf16.mxu0 0
    %1246 = vmatpush1.bf16.msra.mxu0 0
    %1247 = vmatprep.subr.bf16.mxu0 0
    %1248 = vmatpush1.bf16.msra.mxu0 0
    %1249 = vmatprep.subr.bf16.mxu0 0
    %1250 = vmatpush1.bf16.msra.mxu0 0
    %1251 = vmatprep.subr.bf16.mxu0 0
    %1252 = vmatpush1.bf16.msra.mxu0 0
    %1253 = vmatprep.subr.bf16.mxu0 0
    %1254 = vmatpush1.bf16.msra.mxu0 0
    %1255 = vmatprep.subr.bf16.mxu0 0
    %1256 = vmatpush1.bf16.msra.mxu0 0
    %1257 = vmatprep.subr.bf16.mxu0 0
    %1258 = vmatpush1.bf16.msra.mxu0 %v1242
    %1259 = vmatprep.subr.bf16.mxu0 0
    %1260 = vmatpush1.bf16.msra.mxu0 %v1241
    %1261 = vmatprep.subr.bf16.mxu0 0
    %1262 = vmatpush2.bf16.msra.mxu0 0
    %1263 = vmatprep.subr.bf16.mxu0 0
    %1264 = vmatpush2.bf16.msra.mxu0 0
    %1265 = vmatprep.subr.bf16.mxu0 0
    %1266 = vmatpush2.bf16.msra.mxu0 0
    %1267 = vmatprep.subr.bf16.mxu0 0
    %1268 = vmatpush2.bf16.msra.mxu0 0
    %1269 = vmatprep.subr.bf16.mxu0 0
    %1270 = vmatpush2.bf16.msra.mxu0 0
    %1271 = vmatprep.subr.bf16.mxu0 0
    %1272 = vmatpush2.bf16.msra.mxu0 0
    %1273 = vmatprep.subr.bf16.mxu0 0
    %1274 = vmatpush2.bf16.msra.mxu0 0
    %1275 = vmatprep.subr.bf16.mxu0 0
    %1276 = vmatpush2.bf16.msra.mxu0 0
    %1277 = vmatprep.mubr.bf16.mxu0 0
    %1278 = vmatmul.mubr.bf16.gmra.mxu0 %v190
    %v1279 = vpop.f32.mrf.mxu0
    %v1280 = vadd.f32 %v1231, %v1279
    %v1281 = vpop.f32.mrf.mxu0
    %v1282 = vpop.f32.mrf.mxu0
    %v1283 = vadd.f32 %v1231, %v1282
    %v1284 = vpop.f32.mrf.mxu0
    %1285 = vdwg.mxu0
    %v1286 = vpack.c.bf16 %v1148, %v1148
    %v1287 = vpack.c.bf16 %v1151, %v1151
    %v1288 = vpack.c.bf16 %v1214, %v1214
    %v1289 = vpack.c.bf16 %v1217, %v1217
    %v1291 = vsel %vm365, %v1286, 0
    %v1294 = vsel %vm365, %v1288, 0
    %1296 = vmatprep.subr.bf16.mxu0 0
    %1297 = vmatpush1.bf16.xpose.msra.mxu0 0
    %1298 = vmatprep.subr.bf16.mxu0 0
    %1299 = vmatpush1.bf16.xpose.msra.mxu0 0
    %1300 = vmatprep.subr.bf16.mxu0 0
    %1301 = vmatpush1.bf16.xpose.msra.mxu0 0
    %1302 = vmatprep.subr.bf16.mxu0 0
    %1303 = vmatpush1.bf16.xpose.msra.mxu0 0
    %1304 = vmatprep.subr.bf16.mxu0 0
    %1305 = vmatpush1.bf16.xpose.msra.mxu0 0
    %1306 = vmatprep.subr.bf16.mxu0 0
    %1307 = vmatpush1.bf16.xpose.msra.mxu0 0
    %1308 = vmatprep.subr.bf16.mxu0 0
    %1309 = vmatpush1.bf16.xpose.msra.mxu0 0
    %1310 = vmatprep.subr.bf16.mxu0 0
    %1311 = vmatpush1.bf16.xpose.msra.mxu0 %v1294
    %1312 = vmatprep.subr.bf16.mxu0 0
    %1313 = vmatpush2.bf16.xpose.msra.mxu0 0
    %1314 = vmatprep.subr.bf16.mxu0 0
    %1315 = vmatpush2.bf16.xpose.msra.mxu0 0
    %1316 = vmatprep.subr.bf16.mxu0 0
    %1317 = vmatpush2.bf16.xpose.msra.mxu0 0
    %1318 = vmatprep.subr.bf16.mxu0 0
    %1319 = vmatpush2.bf16.xpose.msra.mxu0 0
    %1320 = vmatprep.subr.bf16.mxu0 0
    %1321 = vmatpush2.bf16.xpose.msra.mxu0 0
    %1322 = vmatprep.subr.bf16.mxu0 0
    %1323 = vmatpush2.bf16.xpose.msra.mxu0 0
    %1324 = vmatprep.subr.bf16.mxu0 0
    %1325 = vmatpush2.bf16.xpose.msra.mxu0 0
    %1326 = vmatprep.subr.bf16.mxu0 0
    %1327 = vmatpush2.bf16.xpose.msra.mxu0 0
    %1328 = vmatprep.mubr.bf16.mxu0 0
    %1329 = vmatmul.mubr.bf16.gmra.mxu0 %v1291
    %v1330 = vpop.f32.mrf.mxu0
    %v1331 = vadd.f32 0.0, %v1330
    %v1332 = vpop.f32.mrf.mxu0
    %v1333 = vpop.f32.mrf.mxu0
    %v1334 = vpop.f32.mrf.mxu0
    %1335 = vdwg.mxu0
    %v1337 = vsel %vm365, %v1287, 0
    %v1340 = vsel %vm365, %v1289, 0
    %1342 = vmatprep.subr.bf16.mxu0 0
    %1343 = vmatpush1.bf16.xpose.msra.mxu0 0
    %1344 = vmatprep.subr.bf16.mxu0 0
    %1345 = vmatpush1.bf16.xpose.msra.mxu0 0
    %1346 = vmatprep.subr.bf16.mxu0 0
    %1347 = vmatpush1.bf16.xpose.msra.mxu0 0
    %1348 = vmatprep.subr.bf16.mxu0 0
    %1349 = vmatpush1.bf16.xpose.msra.mxu0 0
    %1350 = vmatprep.subr.bf16.mxu0 0
    %1351 = vmatpush1.bf16.xpose.msra.mxu0 0
    %1352 = vmatprep.subr.bf16.mxu0 0
    %1353 = vmatpush1.bf16.xpose.msra.mxu0 0
    %1354 = vmatprep.subr.bf16.mxu0 0
    %1355 = vmatpush1.bf16.xpose.msra.mxu0 0
    %1356 = vmatprep.subr.bf16.mxu0 0
    %1357 = vmatpush1.bf16.xpose.msra.mxu0 %v1340
    %1358 = vmatprep.subr.bf16.mxu0 0
    %1359 = vmatpush2.bf16.xpose.msra.mxu0 0
    %1360 = vmatprep.subr.bf16.mxu0 0
    %1361 = vmatpush2.bf16.xpose.msra.mxu0 0
    %1362 = vmatprep.subr.bf16.mxu0 0
    %1363 = vmatpush2.bf16.xpose.msra.mxu0 0
    %1364 = vmatprep.subr.bf16.mxu0 0
    %1365 = vmatpush2.bf16.xpose.msra.mxu0 0
    %1366 = vmatprep.subr.bf16.mxu0 0
    %1367 = vmatpush2.bf16.xpose.msra.mxu0 0
    %1368 = vmatprep.subr.bf16.mxu0 0
    %1369 = vmatpush2.bf16.xpose.msra.mxu0 0
    %1370 = vmatprep.subr.bf16.mxu0 0
    %1371 = vmatpush2.bf16.xpose.msra.mxu0 0
    %1372 = vmatprep.subr.bf16.mxu0 0
    %1373 = vmatpush2.bf16.xpose.msra.mxu0 0
    %1374 = vmatprep.mubr.bf16.mxu0 0
    %1375 = vmatmul.mubr.bf16.gmra.mxu0 %v1337
    %v1376 = vpop.f32.mrf.mxu0
    %v1377 = vadd.f32 0.0, %v1376
    %v1378 = vpop.f32.mrf.mxu0
    %v1379 = vpop.f32.mrf.mxu0
    %v1380 = vpop.f32.mrf.mxu0
    %1381 = vdwg.mxu0
    %v1382 = vsel %vm365, %v1331, -inf
    %1383 = vmax.xlane.f32.xlu0 %v1382
    %v1384 = vpop.xlane.xlu0 %1383
    %v1385 = vsel %vm365, %v1377, -inf
    %1386 = vmax.xlane.f32.xlu0 %v1385
    %v1387 = vpop.xlane.xlu0 %1386
    %v1388 = vsub.f32 %v1331, %v1384
    %v1389 = vsub.f32 %v1377, %v1387
    %v1390 = vmul.f32 %v1388, 1.442695
    %v1391 = vpow.pop %v1390
    %v1392 = vmul.f32 %v1389, 1.442695
    %v1393 = vpow.pop %v1392
    %v1394 = vsel %vm365, %v1391, 0.0
    %1395 = vadd.xlane.f32.xlu0 %v1394
    %v1396 = vpop.xlane.xlu0 %1395
    %v1397 = vsel %vm365, %v1393, 0.0
    %1398 = vadd.xlane.f32.xlu0 %v1397
    %v1399 = vpop.xlane.xlu0 %1398
    %v1400 = vrcp.pop %v1396
    %v1401 = vmul.f32 %v1391, %v1400
    %v1402 = vrcp.pop %v1399
    %v1403 = vmul.f32 %v1393, %v1402
    %v1404 = vpack.c.bf16 %v1401, %v1401
    %v1405 = vpack.c.bf16 %v1403, %v1403
    %v1406 = vpack.c.bf16 %v1280, %v1280
    %v1407 = vpack.c.bf16 %v1283, %v1283
    %v1409 = vsel %vm365, %v1404, 0
    %v1412 = vsel %vm487, %v1406, 0
    %1414 = vmatprep.subr.bf16.mxu0 0
    %1415 = vmatpush1.bf16.msra.mxu0 0
    %1416 = vmatprep.subr.bf16.mxu0 0
    %1417 = vmatpush1.bf16.msra.mxu0 0
    %1418 = vmatprep.subr.bf16.mxu0 0
    %1419 = vmatpush1.bf16.msra.mxu0 0
    %1420 = vmatprep.subr.bf16.mxu0 0
    %1421 = vmatpush1.bf16.msra.mxu0 0
    %1422 = vmatprep.subr.bf16.mxu0 0
    %1423 = vmatpush1.bf16.msra.mxu0 0
    %1424 = vmatprep.subr.bf16.mxu0 0
    %1425 = vmatpush1.bf16.msra.mxu0 0
    %1426 = vmatprep.subr.bf16.mxu0 0
    %1427 = vmatpush1.bf16.msra.mxu0 0
    %1428 = vmatprep.subr.bf16.mxu0 0
    %1429 = vmatpush1.bf16.msra.mxu0 %v1412
    %1430 = vmatprep.subr.bf16.mxu0 0
    %1431 = vmatpush2.bf16.msra.mxu0 0
    %1432 = vmatprep.subr.bf16.mxu0 0
    %1433 = vmatpush2.bf16.msra.mxu0 0
    %1434 = vmatprep.subr.bf16.mxu0 0
    %1435 = vmatpush2.bf16.msra.mxu0 0
    %1436 = vmatprep.subr.bf16.mxu0 0
    %1437 = vmatpush2.bf16.msra.mxu0 0
    %1438 = vmatprep.subr.bf16.mxu0 0
    %1439 = vmatpush2.bf16.msra.mxu0 0
    %1440 = vmatprep.subr.bf16.mxu0 0
    %1441 = vmatpush2.bf16.msra.mxu0 0
    %1442 = vmatprep.subr.bf16.mxu0 0
    %1443 = vmatpush2.bf16.msra.mxu0 0
    %1444 = vmatprep.subr.bf16.mxu0 0
    %1445 = vmatpush2.bf16.msra.mxu0 0
    %1446 = vmatprep.mubr.bf16.mxu0 0
    %1447 = vmatmul.mubr.bf16.gmra.mxu0 %v1409
    %v1448 = vpop.f32.mrf.mxu0
    %v1449 = vadd.f32 0.0, %v1448
    %v1450 = vpop.f32.mrf.mxu0
    %v1451 = vpop.f32.mrf.mxu0
    %v1452 = vpop.f32.mrf.mxu0
    %1453 = vdwg.mxu0
    %v1455 = vsel %vm365, %v1405, 0
    %v1458 = vsel %vm487, %v1407, 0
    %1460 = vmatprep.subr.bf16.mxu0 0
    %1461 = vmatpush1.bf16.msra.mxu0 0
    %1462 = vmatprep.subr.bf16.mxu0 0
    %1463 = vmatpush1.bf16.msra.mxu0 0
    %1464 = vmatprep.subr.bf16.mxu0 0
    %1465 = vmatpush1.bf16.msra.mxu0 0
    %1466 = vmatprep.subr.bf16.mxu0 0
    %1467 = vmatpush1.bf16.msra.mxu0 0
    %1468 = vmatprep.subr.bf16.mxu0 0
    %1469 = vmatpush1.bf16.msra.mxu0 0
    %1470 = vmatprep.subr.bf16.mxu0 0
    %1471 = vmatpush1.bf16.msra.mxu0 0
    %1472 = vmatprep.subr.bf16.mxu0 0
    %1473 = vmatpush1.bf16.msra.mxu0 0
    %1474 = vmatprep.subr.bf16.mxu0 0
    %1475 = vmatpush1.bf16.msra.mxu0 %v1458
    %1476 = vmatprep.subr.bf16.mxu0 0
    %1477 = vmatpush2.bf16.msra.mxu0 0
    %1478 = vmatprep.subr.bf16.mxu0 0
    %1479 = vmatpush2.bf16.msra.mxu0 0
    %1480 = vmatprep.subr.bf16.mxu0 0
    %1481 = vmatpush2.bf16.msra.mxu0 0
    %1482 = vmatprep.subr.bf16.mxu0 0
    %1483 = vmatpush2.bf16.msra.mxu0 0
    %1484 = vmatprep.subr.bf16.mxu0 0
    %1485 = vmatpush2.bf16.msra.mxu0 0
    %1486 = vmatprep.subr.bf16.mxu0 0
    %1487 = vmatpush2.bf16.msra.mxu0 0
    %1488 = vmatprep.subr.bf16.mxu0 0
    %1489 = vmatpush2.bf16.msra.mxu0 0
    %1490 = vmatprep.subr.bf16.mxu0 0
    %1491 = vmatpush2.bf16.msra.mxu0 0
    %1492 = vmatprep.mubr.bf16.mxu0 0
    %1493 = vmatmul.mubr.bf16.gmra.mxu0 %v1455
    %v1494 = vpop.f32.mrf.mxu0
    %v1495 = vadd.f32 0.0, %v1494
    %v1496 = vpop.f32.mrf.mxu0
    %v1497 = vpop.f32.mrf.mxu0
    %v1498 = vpop.f32.mrf.mxu0
    %1499 = vdwg.mxu0
    %s1500 = scalar_lea.vmem %s10, 8
    %v1501 = vld [vmem:[%s1500] sm:$0xf]
    %v1502 = vpack.c.bf16 %v1495, %v1449
    %v1504 = vsel %vm365, %v1502, 0
    %v1507 = vsel %vm487, %v1501, 0
    %1509 = vmatprep.subr.bf16.mxu0 0
    %1510 = vmatpush1.bf16.msra.mxu0 0
    %1511 = vmatprep.subr.bf16.mxu0 0
    %1512 = vmatpush1.bf16.msra.mxu0 0
    %1513 = vmatprep.subr.bf16.mxu0 0
    %1514 = vmatpush1.bf16.msra.mxu0 0
    %1515 = vmatprep.subr.bf16.mxu0 0
    %1516 = vmatpush1.bf16.msra.mxu0 0
    %1517 = vmatprep.subr.bf16.mxu0 0
    %1518 = vmatpush1.bf16.msra.mxu0 0
    %1519 = vmatprep.subr.bf16.mxu0 0
    %1520 = vmatpush1.bf16.msra.mxu0 0
    %1521 = vmatprep.subr.bf16.mxu0 0
    %1522 = vmatpush1.bf16.msra.mxu0 0
    %1523 = vmatprep.subr.bf16.mxu0 0
    %1524 = vmatpush1.bf16.msra.mxu0 %v1507
    %1525 = vmatprep.subr.bf16.mxu0 0
    %1526 = vmatpush2.bf16.msra.mxu0 0
    %1527 = vmatprep.subr.bf16.mxu0 0
    %1528 = vmatpush2.bf16.msra.mxu0 0
    %1529 = vmatprep.subr.bf16.mxu0 0
    %1530 = vmatpush2.bf16.msra.mxu0 0
    %1531 = vmatprep.subr.bf16.mxu0 0
    %1532 = vmatpush2.bf16.msra.mxu0 0
    %1533 = vmatprep.subr.bf16.mxu0 0
    %1534 = vmatpush2.bf16.msra.mxu0 0
    %1535 = vmatprep.subr.bf16.mxu0 0
    %1536 = vmatpush2.bf16.msra.mxu0 0
    %1537 = vmatprep.subr.bf16.mxu0 0
    %1538 = vmatpush2.bf16.msra.mxu0 0
    %1539 = vmatprep.subr.bf16.mxu0 0
    %1540 = vmatpush2.bf16.msra.mxu0 0
    %1541 = vmatprep.mubr.bf16.mxu0 0
    %1542 = vmatmul.mubr.bf16.gmra.mxu0 %v1504
    %v1543 = vpop.f32.mrf.mxu0
    %v1544 = vadd.f32 0.0, %v1543
    %v1545 = vpop.f32.mrf.mxu0
    %v1546 = vpop.f32.mrf.mxu0
    %v1547 = vadd.f32 0.0, %v1546
    %v1548 = vpop.f32.mrf.mxu0
    %1549 = vdwg.mxu0
    %v1550 = vadd.f32 %v1082, %v1544
    %v1551 = vadd.f32 %v1085, %v1547
    %s1552 = scalar_lea.vmem %s4, 48
    %v1553 = vld [vmem:[%s1552] sm:$0xf]
    %v1554 = vld [vmem:[%s1552 + $0x4] sm:$0xf]
    %v1555 = vld [vmem:[%s1552 + $0x8] sm:$0xf]
    %v1556 = vld [vmem:[%s1552 + $0xc] sm:$0xf]
    %s1557 = scalar_lea.vmem %s5, 3
    %v1558 = vld [vmem:[%s1557] sm:$0x1]
    %v1560 = vlaneseq
    %v1561 = vshrl.u32 %v1560, 7
    %v1562 = vsub.s32 0, %v1561
    %v1563 = vrot.slane %v1558, %v1562
    %v1569 = vunpack.c.l.b16 %v1553
    %v1570 = vunpack.c.l.b16 %v1554
    %v1571 = vunpack.c.l.b16 %v1555
    %v1572 = vunpack.c.l.b16 %v1556
    %v1573 = vpack.c.b16 %v1570, %v1569
    %v1574 = vpack.c.b16 %v1572, %v1571
    %1577 = vmatprep.subr.bf16.mxu0 0
    %1578 = vmatpush1.bf16.msra.mxu0 0
    %1579 = vmatprep.subr.bf16.mxu0 0
    %1580 = vmatpush1.bf16.msra.mxu0 0
    %1581 = vmatprep.subr.bf16.mxu0 0
    %1582 = vmatpush1.bf16.msra.mxu0 0
    %1583 = vmatprep.subr.bf16.mxu0 0
    %1584 = vmatpush1.bf16.msra.mxu0 0
    %1585 = vmatprep.subr.bf16.mxu0 0
    %1586 = vmatpush1.bf16.msra.mxu0 0
    %1587 = vmatprep.subr.bf16.mxu0 0
    %1588 = vmatpush1.bf16.msra.mxu0 0
    %1589 = vmatprep.subr.bf16.mxu0 0
    %1590 = vmatpush1.bf16.msra.mxu0 %v1574
    %1591 = vmatprep.subr.bf16.mxu0 0
    %1592 = vmatpush1.bf16.msra.mxu0 %v1573
    %1593 = vmatprep.subr.bf16.mxu0 0
    %1594 = vmatpush2.bf16.msra.mxu0 0
    %1595 = vmatprep.subr.bf16.mxu0 0
    %1596 = vmatpush2.bf16.msra.mxu0 0
    %1597 = vmatprep.subr.bf16.mxu0 0
    %1598 = vmatpush2.bf16.msra.mxu0 0
    %1599 = vmatprep.subr.bf16.mxu0 0
    %1600 = vmatpush2.bf16.msra.mxu0 0
    %1601 = vmatprep.subr.bf16.mxu0 0
    %1602 = vmatpush2.bf16.msra.mxu0 0
    %1603 = vmatprep.subr.bf16.mxu0 0
    %1604 = vmatpush2.bf16.msra.mxu0 0
    %1605 = vmatprep.subr.bf16.mxu0 0
    %1606 = vmatpush2.bf16.msra.mxu0 0
    %1607 = vmatprep.subr.bf16.mxu0 0
    %1608 = vmatpush2.bf16.msra.mxu0 0
    %1609 = vmatprep.mubr.bf16.mxu0 0
    %1610 = vmatmul.mubr.bf16.gmra.mxu0 %v190
    %v1611 = vpop.f32.mrf.mxu0
    %v1612 = vadd.f32 %v1563, %v1611
    %v1613 = vpop.f32.mrf.mxu0
    %v1614 = vpop.f32.mrf.mxu0
    %v1615 = vadd.f32 %v1563, %v1614
    %v1616 = vpop.f32.mrf.mxu0
    %1617 = vdwg.mxu0
    %s1618 = scalar_lea.vmem %s6, 48
    %v1619 = vld [vmem:[%s1618] sm:$0xf]
    %v1620 = vld [vmem:[%s1618 + $0x4] sm:$0xf]
    %v1621 = vld [vmem:[%s1618 + $0x8] sm:$0xf]
    %v1622 = vld [vmem:[%s1618 + $0xc] sm:$0xf]
    %s1623 = scalar_lea.vmem %s7, 3
    %v1624 = vld [vmem:[%s1623] sm:$0x1]
    %v1626 = vlaneseq
    %v1627 = vshrl.u32 %v1626, 7
    %v1628 = vsub.s32 0, %v1627
    %v1629 = vrot.slane %v1624, %v1628
    %v1635 = vunpack.c.l.b16 %v1619
    %v1636 = vunpack.c.l.b16 %v1620
    %v1637 = vunpack.c.l.b16 %v1621
    %v1638 = vunpack.c.l.b16 %v1622
    %v1639 = vpack.c.b16 %v1636, %v1635
    %v1640 = vpack.c.b16 %v1638, %v1637
    %1643 = vmatprep.subr.bf16.mxu0 0
    %1644 = vmatpush1.bf16.msra.mxu0 0
    %1645 = vmatprep.subr.bf16.mxu0 0
    %1646 = vmatpush1.bf16.msra.mxu0 0
    %1647 = vmatprep.subr.bf16.mxu0 0
    %1648 = vmatpush1.bf16.msra.mxu0 0
    %1649 = vmatprep.subr.bf16.mxu0 0
    %1650 = vmatpush1.bf16.msra.mxu0 0
    %1651 = vmatprep.subr.bf16.mxu0 0
    %1652 = vmatpush1.bf16.msra.mxu0 0
    %1653 = vmatprep.subr.bf16.mxu0 0
    %1654 = vmatpush1.bf16.msra.mxu0 0
    %1655 = vmatprep.subr.bf16.mxu0 0
    %1656 = vmatpush1.bf16.msra.mxu0 %v1640
    %1657 = vmatprep.subr.bf16.mxu0 0
    %1658 = vmatpush1.bf16.msra.mxu0 %v1639
    %1659 = vmatprep.subr.bf16.mxu0 0
    %1660 = vmatpush2.bf16.msra.mxu0 0
    %1661 = vmatprep.subr.bf16.mxu0 0
    %1662 = vmatpush2.bf16.msra.mxu0 0
    %1663 = vmatprep.subr.bf16.mxu0 0
    %1664 = vmatpush2.bf16.msra.mxu0 0
    %1665 = vmatprep.subr.bf16.mxu0 0
    %1666 = vmatpush2.bf16.msra.mxu0 0
    %1667 = vmatprep.subr.bf16.mxu0 0
    %1668 = vmatpush2.bf16.msra.mxu0 0
    %1669 = vmatprep.subr.bf16.mxu0 0
    %1670 = vmatpush2.bf16.msra.mxu0 0
    %1671 = vmatprep.subr.bf16.mxu0 0
    %1672 = vmatpush2.bf16.msra.mxu0 0
    %1673 = vmatprep.subr.bf16.mxu0 0
    %1674 = vmatpush2.bf16.msra.mxu0 0
    %1675 = vmatprep.mubr.bf16.mxu0 0
    %1676 = vmatmul.mubr.bf16.gmra.mxu0 %v190
    %v1677 = vpop.f32.mrf.mxu0
    %v1678 = vadd.f32 %v1629, %v1677
    %v1679 = vpop.f32.mrf.mxu0
    %v1680 = vpop.f32.mrf.mxu0
    %v1681 = vadd.f32 %v1629, %v1680
    %v1682 = vpop.f32.mrf.mxu0
    %1683 = vdwg.mxu0
    %s1684 = scalar_lea.vmem %s8, 48
    %v1685 = vld [vmem:[%s1684] sm:$0xf]
    %v1686 = vld [vmem:[%s1684 + $0x4] sm:$0xf]
    %v1687 = vld [vmem:[%s1684 + $0x8] sm:$0xf]
    %v1688 = vld [vmem:[%s1684 + $0xc] sm:$0xf]
    %s1689 = scalar_lea.vmem %s9, 3
    %v1690 = vld [vmem:[%s1689] sm:$0x1]
    %v1692 = vlaneseq
    %v1693 = vshrl.u32 %v1692, 7
    %v1694 = vsub.s32 0, %v1693
    %v1695 = vrot.slane %v1690, %v1694
    %v1701 = vunpack.c.l.b16 %v1685
    %v1702 = vunpack.c.l.b16 %v1686
    %v1703 = vunpack.c.l.b16 %v1687
    %v1704 = vunpack.c.l.b16 %v1688
    %v1705 = vpack.c.b16 %v1702, %v1701
    %v1706 = vpack.c.b16 %v1704, %v1703
    %1709 = vmatprep.subr.bf16.mxu0 0
    %1710 = vmatpush1.bf16.msra.mxu0 0
    %1711 = vmatprep.subr.bf16.mxu0 0
    %1712 = vmatpush1.bf16.msra.mxu0 0
    %1713 = vmatprep.subr.bf16.mxu0 0
    %1714 = vmatpush1.bf16.msra.mxu0 0
    %1715 = vmatprep.subr.bf16.mxu0 0
    %1716 = vmatpush1.bf16.msra.mxu0 0
    %1717 = vmatprep.subr.bf16.mxu0 0
    %1718 = vmatpush1.bf16.msra.mxu0 0
    %1719 = vmatprep.subr.bf16.mxu0 0
    %1720 = vmatpush1.bf16.msra.mxu0 0
    %1721 = vmatprep.subr.bf16.mxu0 0
    %1722 = vmatpush1.bf16.msra.mxu0 %v1706
    %1723 = vmatprep.subr.bf16.mxu0 0
    %1724 = vmatpush1.bf16.msra.mxu0 %v1705
    %1725 = vmatprep.subr.bf16.mxu0 0
    %1726 = vmatpush2.bf16.msra.mxu0 0
    %1727 = vmatprep.subr.bf16.mxu0 0
    %1728 = vmatpush2.bf16.msra.mxu0 0
    %1729 = vmatprep.subr.bf16.mxu0 0
    %1730 = vmatpush2.bf16.msra.mxu0 0
    %1731 = vmatprep.subr.bf16.mxu0 0
    %1732 = vmatpush2.bf16.msra.mxu0 0
    %1733 = vmatprep.subr.bf16.mxu0 0
    %1734 = vmatpush2.bf16.msra.mxu0 0
    %1735 = vmatprep.subr.bf16.mxu0 0
    %1736 = vmatpush2.bf16.msra.mxu0 0
    %1737 = vmatprep.subr.bf16.mxu0 0
    %1738 = vmatpush2.bf16.msra.mxu0 0
    %1739 = vmatprep.subr.bf16.mxu0 0
    %1740 = vmatpush2.bf16.msra.mxu0 0
    %1741 = vmatprep.mubr.bf16.mxu0 0
    %1742 = vmatmul.mubr.bf16.gmra.mxu0 %v190
    %v1743 = vpop.f32.mrf.mxu0
    %v1744 = vadd.f32 %v1695, %v1743
    %v1745 = vpop.f32.mrf.mxu0
    %v1746 = vpop.f32.mrf.mxu0
    %v1747 = vadd.f32 %v1695, %v1746
    %v1748 = vpop.f32.mrf.mxu0
    %1749 = vdwg.mxu0
    %v1750 = vpack.c.bf16 %v1612, %v1612
    %v1751 = vpack.c.bf16 %v1615, %v1615
    %v1752 = vpack.c.bf16 %v1678, %v1678
    %v1753 = vpack.c.bf16 %v1681, %v1681
    %v1755 = vsel %vm365, %v1750, 0
    %v1758 = vsel %vm365, %v1752, 0
    %1760 = vmatprep.subr.bf16.mxu0 0
    %1761 = vmatpush1.bf16.xpose.msra.mxu0 0
    %1762 = vmatprep.subr.bf16.mxu0 0
    %1763 = vmatpush1.bf16.xpose.msra.mxu0 0
    %1764 = vmatprep.subr.bf16.mxu0 0
    %1765 = vmatpush1.bf16.xpose.msra.mxu0 0
    %1766 = vmatprep.subr.bf16.mxu0 0
    %1767 = vmatpush1.bf16.xpose.msra.mxu0 0
    %1768 = vmatprep.subr.bf16.mxu0 0
    %1769 = vmatpush1.bf16.xpose.msra.mxu0 0
    %1770 = vmatprep.subr.bf16.mxu0 0
    %1771 = vmatpush1.bf16.xpose.msra.mxu0 0
    %1772 = vmatprep.subr.bf16.mxu0 0
    %1773 = vmatpush1.bf16.xpose.msra.mxu0 0
    %1774 = vmatprep.subr.bf16.mxu0 0
    %1775 = vmatpush1.bf16.xpose.msra.mxu0 %v1758
    %1776 = vmatprep.subr.bf16.mxu0 0
    %1777 = vmatpush2.bf16.xpose.msra.mxu0 0
    %1778 = vmatprep.subr.bf16.mxu0 0
    %1779 = vmatpush2.bf16.xpose.msra.mxu0 0
    %1780 = vmatprep.subr.bf16.mxu0 0
    %1781 = vmatpush2.bf16.xpose.msra.mxu0 0
    %1782 = vmatprep.subr.bf16.mxu0 0
    %1783 = vmatpush2.bf16.xpose.msra.mxu0 0
    %1784 = vmatprep.subr.bf16.mxu0 0
    %1785 = vmatpush2.bf16.xpose.msra.mxu0 0
    %1786 = vmatprep.subr.bf16.mxu0 0
    %1787 = vmatpush2.bf16.xpose.msra.mxu0 0
    %1788 = vmatprep.subr.bf16.mxu0 0
    %1789 = vmatpush2.bf16.xpose.msra.mxu0 0
    %1790 = vmatprep.subr.bf16.mxu0 0
    %1791 = vmatpush2.bf16.xpose.msra.mxu0 0
    %1792 = vmatprep.mubr.bf16.mxu0 0
    %1793 = vmatmul.mubr.bf16.gmra.mxu0 %v1755
    %v1794 = vpop.f32.mrf.mxu0
    %v1795 = vadd.f32 0.0, %v1794
    %v1796 = vpop.f32.mrf.mxu0
    %v1797 = vpop.f32.mrf.mxu0
    %v1798 = vpop.f32.mrf.mxu0
    %1799 = vdwg.mxu0
    %v1801 = vsel %vm365, %v1751, 0
    %v1804 = vsel %vm365, %v1753, 0
    %1806 = vmatprep.subr.bf16.mxu0 0
    %1807 = vmatpush1.bf16.xpose.msra.mxu0 0
    %1808 = vmatprep.subr.bf16.mxu0 0
    %1809 = vmatpush1.bf16.xpose.msra.mxu0 0
    %1810 = vmatprep.subr.bf16.mxu0 0
    %1811 = vmatpush1.bf16.xpose.msra.mxu0 0
    %1812 = vmatprep.subr.bf16.mxu0 0
    %1813 = vmatpush1.bf16.xpose.msra.mxu0 0
    %1814 = vmatprep.subr.bf16.mxu0 0
    %1815 = vmatpush1.bf16.xpose.msra.mxu0 0
    %1816 = vmatprep.subr.bf16.mxu0 0
    %1817 = vmatpush1.bf16.xpose.msra.mxu0 0
    %1818 = vmatprep.subr.bf16.mxu0 0
    %1819 = vmatpush1.bf16.xpose.msra.mxu0 0
    %1820 = vmatprep.subr.bf16.mxu0 0
    %1821 = vmatpush1.bf16.xpose.msra.mxu0 %v1804
    %1822 = vmatprep.subr.bf16.mxu0 0
    %1823 = vmatpush2.bf16.xpose.msra.mxu0 0
    %1824 = vmatprep.subr.bf16.mxu0 0
    %1825 = vmatpush2.bf16.xpose.msra.mxu0 0
    %1826 = vmatprep.subr.bf16.mxu0 0
    %1827 = vmatpush2.bf16.xpose.msra.mxu0 0
    %1828 = vmatprep.subr.bf16.mxu0 0
    %1829 = vmatpush2.bf16.xpose.msra.mxu0 0
    %1830 = vmatprep.subr.bf16.mxu0 0
    %1831 = vmatpush2.bf16.xpose.msra.mxu0 0
    %1832 = vmatprep.subr.bf16.mxu0 0
    %1833 = vmatpush2.bf16.xpose.msra.mxu0 0
    %1834 = vmatprep.subr.bf16.mxu0 0
    %1835 = vmatpush2.bf16.xpose.msra.mxu0 0
    %1836 = vmatprep.subr.bf16.mxu0 0
    %1837 = vmatpush2.bf16.xpose.msra.mxu0 0
    %1838 = vmatprep.mubr.bf16.mxu0 0
    %1839 = vmatmul.mubr.bf16.gmra.mxu0 %v1801
    %v1840 = vpop.f32.mrf.mxu0
    %v1841 = vadd.f32 0.0, %v1840
    %v1842 = vpop.f32.mrf.mxu0
    %v1843 = vpop.f32.mrf.mxu0
    %v1844 = vpop.f32.mrf.mxu0
    %1845 = vdwg.mxu0
    %v1846 = vsel %vm365, %v1795, -inf
    %1847 = vmax.xlane.f32.xlu0 %v1846
    %v1848 = vpop.xlane.xlu0 %1847
    %v1849 = vsel %vm365, %v1841, -inf
    %1850 = vmax.xlane.f32.xlu0 %v1849
    %v1851 = vpop.xlane.xlu0 %1850
    %v1852 = vsub.f32 %v1795, %v1848
    %v1853 = vsub.f32 %v1841, %v1851
    %v1854 = vmul.f32 %v1852, 1.442695
    %v1855 = vpow.pop %v1854
    %v1856 = vmul.f32 %v1853, 1.442695
    %v1857 = vpow.pop %v1856
    %v1858 = vsel %vm365, %v1855, 0.0
    %1859 = vadd.xlane.f32.xlu0 %v1858
    %v1860 = vpop.xlane.xlu0 %1859
    %v1861 = vsel %vm365, %v1857, 0.0
    %1862 = vadd.xlane.f32.xlu0 %v1861
    %v1863 = vpop.xlane.xlu0 %1862
    %v1864 = vrcp.pop %v1860
    %v1865 = vmul.f32 %v1855, %v1864
    %v1866 = vrcp.pop %v1863
    %v1867 = vmul.f32 %v1857, %v1866
    %v1868 = vpack.c.bf16 %v1865, %v1865
    %v1869 = vpack.c.bf16 %v1867, %v1867
    %v1870 = vpack.c.bf16 %v1744, %v1744
    %v1871 = vpack.c.bf16 %v1747, %v1747
    %v1873 = vsel %vm365, %v1868, 0
    %v1876 = vsel %vm487, %v1870, 0
    %1878 = vmatprep.subr.bf16.mxu0 0
    %1879 = vmatpush1.bf16.msra.mxu0 0
    %1880 = vmatprep.subr.bf16.mxu0 0
    %1881 = vmatpush1.bf16.msra.mxu0 0
    %1882 = vmatprep.subr.bf16.mxu0 0
    %1883 = vmatpush1.bf16.msra.mxu0 0
    %1884 = vmatprep.subr.bf16.mxu0 0
    %1885 = vmatpush1.bf16.msra.mxu0 0
    %1886 = vmatprep.subr.bf16.mxu0 0
    %1887 = vmatpush1.bf16.msra.mxu0 0
    %1888 = vmatprep.subr.bf16.mxu0 0
    %1889 = vmatpush1.bf16.msra.mxu0 0
    %1890 = vmatprep.subr.bf16.mxu0 0
    %1891 = vmatpush1.bf16.msra.mxu0 0
    %1892 = vmatprep.subr.bf16.mxu0 0
    %1893 = vmatpush1.bf16.msra.mxu0 %v1876
    %1894 = vmatprep.subr.bf16.mxu0 0
    %1895 = vmatpush2.bf16.msra.mxu0 0
    %1896 = vmatprep.subr.bf16.mxu0 0
    %1897 = vmatpush2.bf16.msra.mxu0 0
    %1898 = vmatprep.subr.bf16.mxu0 0
    %1899 = vmatpush2.bf16.msra.mxu0 0
    %1900 = vmatprep.subr.bf16.mxu0 0
    %1901 = vmatpush2.bf16.msra.mxu0 0
    %1902 = vmatprep.subr.bf16.mxu0 0
    %1903 = vmatpush2.bf16.msra.mxu0 0
    %1904 = vmatprep.subr.bf16.mxu0 0
    %1905 = vmatpush2.bf16.msra.mxu0 0
    %1906 = vmatprep.subr.bf16.mxu0 0
    %1907 = vmatpush2.bf16.msra.mxu0 0
    %1908 = vmatprep.subr.bf16.mxu0 0
    %1909 = vmatpush2.bf16.msra.mxu0 0
    %1910 = vmatprep.mubr.bf16.mxu0 0
    %1911 = vmatmul.mubr.bf16.gmra.mxu0 %v1873
    %v1912 = vpop.f32.mrf.mxu0
    %v1913 = vadd.f32 0.0, %v1912
    %v1914 = vpop.f32.mrf.mxu0
    %v1915 = vpop.f32.mrf.mxu0
    %v1916 = vpop.f32.mrf.mxu0
    %1917 = vdwg.mxu0
    %v1919 = vsel %vm365, %v1869, 0
    %v1922 = vsel %vm487, %v1871, 0
    %1924 = vmatprep.subr.bf16.mxu0 0
    %1925 = vmatpush1.bf16.msra.mxu0 0
    %1926 = vmatprep.subr.bf16.mxu0 0
    %1927 = vmatpush1.bf16.msra.mxu0 0
    %1928 = vmatprep.subr.bf16.mxu0 0
    %1929 = vmatpush1.bf16.msra.mxu0 0
    %1930 = vmatprep.subr.bf16.mxu0 0
    %1931 = vmatpush1.bf16.msra.mxu0 0
    %1932 = vmatprep.subr.bf16.mxu0 0
    %1933 = vmatpush1.bf16.msra.mxu0 0
    %1934 = vmatprep.subr.bf16.mxu0 0
    %1935 = vmatpush1.bf16.msra.mxu0 0
    %1936 = vmatprep.subr.bf16.mxu0 0
    %1937 = vmatpush1.bf16.msra.mxu0 0
    %1938 = vmatprep.subr.bf16.mxu0 0
    %1939 = vmatpush1.bf16.msra.mxu0 %v1922
    %1940 = vmatprep.subr.bf16.mxu0 0
    %1941 = vmatpush2.bf16.msra.mxu0 0
    %1942 = vmatprep.subr.bf16.mxu0 0
    %1943 = vmatpush2.bf16.msra.mxu0 0
    %1944 = vmatprep.subr.bf16.mxu0 0
    %1945 = vmatpush2.bf16.msra.mxu0 0
    %1946 = vmatprep.subr.bf16.mxu0 0
    %1947 = vmatpush2.bf16.msra.mxu0 0
    %1948 = vmatprep.subr.bf16.mxu0 0
    %1949 = vmatpush2.bf16.msra.mxu0 0
    %1950 = vmatprep.subr.bf16.mxu0 0
    %1951 = vmatpush2.bf16.msra.mxu0 0
    %1952 = vmatprep.subr.bf16.mxu0 0
    %1953 = vmatpush2.bf16.msra.mxu0 0
    %1954 = vmatprep.subr.bf16.mxu0 0
    %1955 = vmatpush2.bf16.msra.mxu0 0
    %1956 = vmatprep.mubr.bf16.mxu0 0
    %1957 = vmatmul.mubr.bf16.gmra.mxu0 %v1919
    %v1958 = vpop.f32.mrf.mxu0
    %v1959 = vadd.f32 0.0, %v1958
    %v1960 = vpop.f32.mrf.mxu0
    %v1961 = vpop.f32.mrf.mxu0
    %v1962 = vpop.f32.mrf.mxu0
    %1963 = vdwg.mxu0
    %s1964 = scalar_lea.vmem %s10, 12
    %v1965 = vld [vmem:[%s1964] sm:$0xf]
    %v1966 = vpack.c.bf16 %v1959, %v1913
    %v1968 = vsel %vm365, %v1966, 0
    %v1971 = vsel %vm487, %v1965, 0
    %1973 = vmatprep.subr.bf16.mxu0 0
    %1974 = vmatpush1.bf16.msra.mxu0 0
    %1975 = vmatprep.subr.bf16.mxu0 0
    %1976 = vmatpush1.bf16.msra.mxu0 0
    %1977 = vmatprep.subr.bf16.mxu0 0
    %1978 = vmatpush1.bf16.msra.mxu0 0
    %1979 = vmatprep.subr.bf16.mxu0 0
    %1980 = vmatpush1.bf16.msra.mxu0 0
    %1981 = vmatprep.subr.bf16.mxu0 0
    %1982 = vmatpush1.bf16.msra.mxu0 0
    %1983 = vmatprep.subr.bf16.mxu0 0
    %1984 = vmatpush1.bf16.msra.mxu0 0
    %1985 = vmatprep.subr.bf16.mxu0 0
    %1986 = vmatpush1.bf16.msra.mxu0 0
    %1987 = vmatprep.subr.bf16.mxu0 0
    %1988 = vmatpush1.bf16.msra.mxu0 %v1971
    %1989 = vmatprep.subr.bf16.mxu0 0
    %1990 = vmatpush2.bf16.msra.mxu0 0
    %1991 = vmatprep.subr.bf16.mxu0 0
    %1992 = vmatpush2.bf16.msra.mxu0 0
    %1993 = vmatprep.subr.bf16.mxu0 0
    %1994 = vmatpush2.bf16.msra.mxu0 0
    %1995 = vmatprep.subr.bf16.mxu0 0
    %1996 = vmatpush2.bf16.msra.mxu0 0
    %1997 = vmatprep.subr.bf16.mxu0 0
    %1998 = vmatpush2.bf16.msra.mxu0 0
    %1999 = vmatprep.subr.bf16.mxu0 0
    %2000 = vmatpush2.bf16.msra.mxu0 0
    %2001 = vmatprep.subr.bf16.mxu0 0
    %2002 = vmatpush2.bf16.msra.mxu0 0
    %2003 = vmatprep.subr.bf16.mxu0 0
    %2004 = vmatpush2.bf16.msra.mxu0 0
    %2005 = vmatprep.mubr.bf16.mxu0 0
    %2006 = vmatmul.mubr.bf16.gmra.mxu0 %v1968
    %v2007 = vpop.f32.mrf.mxu0
    %v2008 = vadd.f32 0.0, %v2007
    %v2009 = vpop.f32.mrf.mxu0
    %v2010 = vpop.f32.mrf.mxu0
    %v2011 = vadd.f32 0.0, %v2010
    %v2012 = vpop.f32.mrf.mxu0
    %2013 = vdwg.mxu0
    %v2014 = vadd.f32 %v1550, %v2008
    %v2015 = vadd.f32 %v1551, %v2011
    %v2016 = vld [vmem:[%s11] sm:$0x1]
    %v2018 = vlaneseq
    %v2019 = vshrl.u32 %v2018, 7
    %v2020 = vsub.s32 0, %v2019
    %v2021 = vrot.slane %v2016, %v2020
    %v2023 = vadd.f32 %v2014, %v2021
    %v2024 = vadd.f32 %v2015, %v2021
    %v2025 = vadd.f32 %v162, %v2023
    %v2026 = vadd.f32 %v163, %v2024
    %v2027 = vld [vmem:[%s12] sm:$0x1]
    %v2028 = vld [vmem:[%s13] sm:$0x1]
    %v2029 = vsel %vm188, %v2025, 0.0
    %2030 = vadd.xlane.f32.xlu0 %v2029
    %v2031 = vpop.xlane.xlu0 %2030
    %v2032 = vsel %vm188, %v2026, 0.0
    %2033 = vadd.xlane.f32.xlu0 %v2032
    %v2034 = vpop.xlane.xlu0 %2033
    %v2035 = vrcp.pop 32.0
    %v2036 = vmul.f32 %v2031, %v2035
    %v2037 = vmul.f32 %v2034, %v2035
    %v2038 = vsub.f32 %v2025, %v2036
    %v2039 = vsub.f32 %v2026, %v2037
    %v2040 = vmul.f32 %v2038, %v2038
    %v2041 = vmul.f32 %v2039, %v2039
    %v2042 = vsel %vm188, %v2040, 0.0
    %2043 = vadd.xlane.f32.xlu0 %v2042
    %v2044 = vpop.xlane.xlu0 %2043
    %v2045 = vsel %vm188, %v2041, 0.0
    %2046 = vadd.xlane.f32.xlu0 %v2045
    %v2047 = vpop.xlane.xlu0 %2046
    %v2048 = vmul.f32 %v2044, %v2035
    %v2049 = vmul.f32 %v2047, %v2035
    %v2050 = vadd.f32 %v2048, 1e-05
    %v2051 = vadd.f32 %v2049, 1e-05
    %v2052 = vrsqrt.pop %v2050
    %v2053 = vrsqrt.pop %v2051
    %v2054 = vmul.f32 %v2038, %v2052
    %v2055 = vmul.f32 %v2039, %v2053
    %v2057 = vlaneseq
    %v2058 = vshrl.u32 %v2057, 7
    %v2059 = vsub.s32 0, %v2058
    %v2060 = vrot.slane %v2027, %v2059
    %v2062 = vmul.f32 %v2054, %v2060
    %v2063 = vmul.f32 %v2055, %v2060
    %v2065 = vlaneseq
    %v2066 = vshrl.u32 %v2065, 7
    %v2067 = vsub.s32 0, %v2066
    %v2068 = vrot.slane %v2028, %v2067
    %v2070 = vadd.f32 %v2062, %v2068
    %v2071 = vadd.f32 %v2063, %v2068
    %v2072 = vld [vmem:[%s14] sm:$0xf]
    %v2073 = vld [vmem:[%s14 + $0x4] sm:$0xf]
    %v2074 = vld [vmem:[%s14 + $0x8] sm:$0xf]
    %v2075 = vld [vmem:[%s14 + $0xc] sm:$0xf]
    %v2076 = vpack.c.bf16 %v2071, %v2070
    %v2077 = vld [vmem:[%s15] sm:$0x1]
    %v2079 = vlaneseq
    %v2080 = vshrl.u32 %v2079, 7
    %v2081 = vsub.s32 0, %v2080
    %v2082 = vrot.slane %v2077, %v2081
    %v2088 = vunpack.c.l.b16 %v2072
    %v2089 = vunpack.c.l.b16 %v2073
    %v2090 = vunpack.c.l.b16 %v2074
    %v2091 = vunpack.c.l.b16 %v2075
    %v2092 = vpack.c.b16 %v2089, %v2088
    %v2093 = vpack.c.b16 %v2091, %v2090
    %v2097 = vsel %vm188, %v2076, 0
    %2099 = vmatprep.subr.bf16.mxu0 0
    %2100 = vmatpush1.bf16.msra.mxu0 0
    %2101 = vmatprep.subr.bf16.mxu0 0
    %2102 = vmatpush1.bf16.msra.mxu0 0
    %2103 = vmatprep.subr.bf16.mxu0 0
    %2104 = vmatpush1.bf16.msra.mxu0 0
    %2105 = vmatprep.subr.bf16.mxu0 0
    %2106 = vmatpush1.bf16.msra.mxu0 0
    %2107 = vmatprep.subr.bf16.mxu0 0
    %2108 = vmatpush1.bf16.msra.mxu0 0
    %2109 = vmatprep.subr.bf16.mxu0 0
    %2110 = vmatpush1.bf16.msra.mxu0 0
    %2111 = vmatprep.subr.bf16.mxu0 0
    %2112 = vmatpush1.bf16.msra.mxu0 %v2093
    %2113 = vmatprep.subr.bf16.mxu0 0
    %2114 = vmatpush1.bf16.msra.mxu0 %v2092
    %2115 = vmatprep.subr.bf16.mxu0 0
    %2116 = vmatpush2.bf16.msra.mxu0 0
    %2117 = vmatprep.subr.bf16.mxu0 0
    %2118 = vmatpush2.bf16.msra.mxu0 0
    %2119 = vmatprep.subr.bf16.mxu0 0
    %2120 = vmatpush2.bf16.msra.mxu0 0
    %2121 = vmatprep.subr.bf16.mxu0 0
    %2122 = vmatpush2.bf16.msra.mxu0 0
    %2123 = vmatprep.subr.bf16.mxu0 0
    %2124 = vmatpush2.bf16.msra.mxu0 0
    %2125 = vmatprep.subr.bf16.mxu0 0
    %2126 = vmatpush2.bf16.msra.mxu0 0
    %2127 = vmatprep.subr.bf16.mxu0 0
    %2128 = vmatpush2.bf16.msra.mxu0 0
    %2129 = vmatprep.subr.bf16.mxu0 0
    %2130 = vmatpush2.bf16.msra.mxu0 0
    %2131 = vmatprep.mubr.bf16.mxu0 0
    %2132 = vmatmul.mubr.bf16.gmra.mxu0 %v2097
    %v2133 = vpop.f32.mrf.mxu0
    %v2134 = vadd.f32 %v2082, %v2133
    %v2135 = vpop.f32.mrf.mxu0
    %v2136 = vpop.f32.mrf.mxu0
    %v2137 = vadd.f32 %v2082, %v2136
    %v2138 = vpop.f32.mrf.mxu0
    %2139 = vdwg.mxu0
    %v2140 = vmax.f32 %v2134, 0.0
    %v2141 = vmax.f32 %v2137, 0.0
    %v2142 = vld [vmem:[%s16] sm:$0xf]
    %v2143 = vld [vmem:[%s16 + $0x4] sm:$0xf]
    %v2144 = vld [vmem:[%s16 + $0x8] sm:$0xf]
    %v2145 = vld [vmem:[%s16 + $0xc] sm:$0xf]
    %v2146 = vld [vmem:[%s16 + $0x10] sm:$0xf]
    %v2147 = vld [vmem:[%s16 + $0x14] sm:$0xf]
    %v2148 = vld [vmem:[%s16 + $0x18] sm:$0xf]
    %v2149 = vld [vmem:[%s16 + $0x1c] sm:$0xf]
    %v2150 = vpack.c.bf16 %v2141, %v2140
    %v2151 = vld [vmem:[%s17] sm:$0x1]
    %v2153 = vlaneseq
    %v2154 = vshrl.u32 %v2153, 7
    %v2155 = vsub.s32 0, %v2154
    %v2156 = vrot.slane %v2151, %v2155
    %v2166 = vunpack.c.l.b16 %v2142
    %v2167 = vunpack.c.l.b16 %v2143
    %v2168 = vunpack.c.l.b16 %v2144
    %v2169 = vunpack.c.l.b16 %v2145
    %v2170 = vunpack.c.l.b16 %v2146
    %v2171 = vunpack.c.l.b16 %v2147
    %v2172 = vunpack.c.l.b16 %v2148
    %v2173 = vunpack.c.l.b16 %v2149
    %v2174 = vpack.c.b16 %v2167, %v2166
    %v2175 = vpack.c.b16 %v2169, %v2168
    %v2176 = vpack.c.b16 %v2171, %v2170
    %v2177 = vpack.c.b16 %v2173, %v2172
    %vm2182 = vcmask 523264
    %v2184 = vsel %vm2182, %v2150, 0
    %2186 = vmatprep.subr.bf16.mxu0 0
    %2187 = vmatpush1.bf16.msra.mxu0 0
    %2188 = vmatprep.subr.bf16.mxu0 0
    %2189 = vmatpush1.bf16.msra.mxu0 0
    %2190 = vmatprep.subr.bf16.mxu0 0
    %2191 = vmatpush1.bf16.msra.mxu0 0
    %2192 = vmatprep.subr.bf16.mxu0 0
    %2193 = vmatpush1.bf16.msra.mxu0 0
    %2194 = vmatprep.subr.bf16.mxu0 0
    %2195 = vmatpush1.bf16.msra.mxu0 %v2177
    %2196 = vmatprep.subr.bf16.mxu0 0
    %2197 = vmatpush1.bf16.msra.mxu0 %v2176
    %2198 = vmatprep.subr.bf16.mxu0 0
    %2199 = vmatpush1.bf16.msra.mxu0 %v2175
    %2200 = vmatprep.subr.bf16.mxu0 0
    %2201 = vmatpush1.bf16.msra.mxu0 %v2174
    %2202 = vmatprep.subr.bf16.mxu0 0
    %2203 = vmatpush2.bf16.msra.mxu0 0
    %2204 = vmatprep.subr.bf16.mxu0 0
    %2205 = vmatpush2.bf16.msra.mxu0 0
    %2206 = vmatprep.subr.bf16.mxu0 0
    %2207 = vmatpush2.bf16.msra.mxu0 0
    %2208 = vmatprep.subr.bf16.mxu0 0
    %2209 = vmatpush2.bf16.msra.mxu0 0
    %2210 = vmatprep.subr.bf16.mxu0 0
    %2211 = vmatpush2.bf16.msra.mxu0 0
    %2212 = vmatprep.subr.bf16.mxu0 0
    %2213 = vmatpush2.bf16.msra.mxu0 0
    %2214 = vmatprep.subr.bf16.mxu0 0
    %2215 = vmatpush2.bf16.msra.mxu0 0
    %2216 = vmatprep.subr.bf16.mxu0 0
    %2217 = vmatpush2.bf16.msra.mxu0 0
    %2218 = vmatprep.mubr.bf16.mxu0 0
    %2219 = vmatmul.mubr.bf16.gmra.mxu0 %v2184
    %v2220 = vpop.f32.mrf.mxu0
    %v2221 = vadd.f32 %v2156, %v2220
    %v2222 = vpop.f32.mrf.mxu0
    %v2223 = vpop.f32.mrf.mxu0
    %v2224 = vadd.f32 %v2156, %v2223
    %v2225 = vpop.f32.mrf.mxu0
    %2226 = vdwg.mxu0
    %v2227 = vadd.f32 %v2070, %v2221
    %v2228 = vadd.f32 %v2071, %v2224
    %v2229 = vld [vmem:[%s18] sm:$0x1]
    %v2230 = vld [vmem:[%s19] sm:$0x1]
    %v2231 = vsel %vm188, %v2227, 0.0
    %2232 = vadd.xlane.f32.xlu0 %v2231
    %v2233 = vpop.xlane.xlu0 %2232
    %v2234 = vsel %vm188, %v2228, 0.0
    %2235 = vadd.xlane.f32.xlu0 %v2234
    %v2236 = vpop.xlane.xlu0 %2235
    %v2237 = vmul.f32 %v2233, %v2035
    %v2238 = vmul.f32 %v2236, %v2035
    %v2239 = vsub.f32 %v2227, %v2237
    %v2240 = vsub.f32 %v2228, %v2238
    %v2241 = vmul.f32 %v2239, %v2239
    %v2242 = vmul.f32 %v2240, %v2240
    %v2243 = vsel %vm188, %v2241, 0.0
    %2244 = vadd.xlane.f32.xlu0 %v2243
    %v2245 = vpop.xlane.xlu0 %2244
    %v2246 = vsel %vm188, %v2242, 0.0
    %2247 = vadd.xlane.f32.xlu0 %v2246
    %v2248 = vpop.xlane.xlu0 %2247
    %v2249 = vmul.f32 %v2245, %v2035
    %v2250 = vmul.f32 %v2248, %v2035
    %v2251 = vadd.f32 %v2249, 1e-05
    %v2252 = vadd.f32 %v2250, 1e-05
    %v2253 = vrsqrt.pop %v2251
    %v2254 = vrsqrt.pop %v2252
    %v2255 = vmul.f32 %v2239, %v2253
    %v2256 = vmul.f32 %v2240, %v2254
    %v2258 = vlaneseq
    %v2259 = vshrl.u32 %v2258, 7
    %v2260 = vsub.s32 0, %v2259
    %v2261 = vrot.slane %v2229, %v2260
    %v2263 = vmul.f32 %v2255, %v2261
    %v2264 = vmul.f32 %v2256, %v2261
    %v2266 = vlaneseq
    %v2267 = vshrl.u32 %v2266, 7
    %v2268 = vsub.s32 0, %v2267
    %v2269 = vrot.slane %v2230, %v2268
    %v2271 = vadd.f32 %v2263, %v2269
    %v2272 = vadd.f32 %v2264, %v2269
    %s2273 = scalar_lea.vmem %s4, 64
    %v2274 = vld [vmem:[%s2273] sm:$0xf]
    %v2275 = vld [vmem:[%s2273 + $0x4] sm:$0xf]
    %v2276 = vld [vmem:[%s2273 + $0x8] sm:$0xf]
    %v2277 = vld [vmem:[%s2273 + $0xc] sm:$0xf]
    %v2278 = vpack.c.bf16 %v2272, %v2271
    %s2279 = scalar_lea.vmem %s5, 4
    %v2280 = vld [vmem:[%s2279] sm:$0x1]
    %v2282 = vlaneseq
    %v2283 = vshrl.u32 %v2282, 7
    %v2284 = vsub.s32 0, %v2283
    %v2285 = vrot.slane %v2280, %v2284
    %v2291 = vunpack.c.l.b16 %v2274
    %v2292 = vunpack.c.l.b16 %v2275
    %v2293 = vunpack.c.l.b16 %v2276
    %v2294 = vunpack.c.l.b16 %v2277
    %v2295 = vpack.c.b16 %v2292, %v2291
    %v2296 = vpack.c.b16 %v2294, %v2293
    %v2300 = vsel %vm188, %v2278, 0
    %2302 = vmatprep.subr.bf16.mxu0 0
    %2303 = vmatpush1.bf16.msra.mxu0 0
    %2304 = vmatprep.subr.bf16.mxu0 0
    %2305 = vmatpush1.bf16.msra.mxu0 0
    %2306 = vmatprep.subr.bf16.mxu0 0
    %2307 = vmatpush1.bf16.msra.mxu0 0
    %2308 = vmatprep.subr.bf16.mxu0 0
    %2309 = vmatpush1.bf16.msra.mxu0 0
    %2310 = vmatprep.subr.bf16.mxu0 0
    %2311 = vmatpush1.bf16.msra.mxu0 0
    %2312 = vmatprep.subr.bf16.mxu0 0
    %2313 = vmatpush1.bf16.msra.mxu0 0
    %2314 = vmatprep.subr.bf16.mxu0 0
    %2315 = vmatpush1.bf16.msra.mxu0 %v2296
    %2316 = vmatprep.subr.bf16.mxu0 0
    %2317 = vmatpush1.bf16.msra.mxu0 %v2295
    %2318 = vmatprep.subr.bf16.mxu0 0
    %2319 = vmatpush2.bf16.msra.mxu0 0
    %2320 = vmatprep.subr.bf16.mxu0 0
    %2321 = vmatpush2.bf16.msra.mxu0 0
    %2322 = vmatprep.subr.bf16.mxu0 0
    %2323 = vmatpush2.bf16.msra.mxu0 0
    %2324 = vmatprep.subr.bf16.mxu0 0
    %2325 = vmatpush2.bf16.msra.mxu0 0
    %2326 = vmatprep.subr.bf16.mxu0 0
    %2327 = vmatpush2.bf16.msra.mxu0 0
    %2328 = vmatprep.subr.bf16.mxu0 0
    %2329 = vmatpush2.bf16.msra.mxu0 0
    %2330 = vmatprep.subr.bf16.mxu0 0
    %2331 = vmatpush2.bf16.msra.mxu0 0
    %2332 = vmatprep.subr.bf16.mxu0 0
    %2333 = vmatpush2.bf16.msra.mxu0 0
    %2334 = vmatprep.mubr.bf16.mxu0 0
    %2335 = vmatmul.mubr.bf16.gmra.mxu0 %v2300
    %v2336 = vpop.f32.mrf.mxu0
    %v2337 = vadd.f32 %v2285, %v2336
    %v2338 = vpop.f32.mrf.mxu0
    %v2339 = vpop.f32.mrf.mxu0
    %v2340 = vadd.f32 %v2285, %v2339
    %v2341 = vpop.f32.mrf.mxu0
    %2342 = vdwg.mxu0
    %s2343 = scalar_lea.vmem %s6, 64
    %v2344 = vld [vmem:[%s2343] sm:$0xf]
    %v2345 = vld [vmem:[%s2343 + $0x4] sm:$0xf]
    %v2346 = vld [vmem:[%s2343 + $0x8] sm:$0xf]
    %v2347 = vld [vmem:[%s2343 + $0xc] sm:$0xf]
    %s2348 = scalar_lea.vmem %s7, 4
    %v2349 = vld [vmem:[%s2348] sm:$0x1]
    %v2351 = vlaneseq
    %v2352 = vshrl.u32 %v2351, 7
    %v2353 = vsub.s32 0, %v2352
    %v2354 = vrot.slane %v2349, %v2353
    %v2360 = vunpack.c.l.b16 %v2344
    %v2361 = vunpack.c.l.b16 %v2345
    %v2362 = vunpack.c.l.b16 %v2346
    %v2363 = vunpack.c.l.b16 %v2347
    %v2364 = vpack.c.b16 %v2361, %v2360
    %v2365 = vpack.c.b16 %v2363, %v2362
    %2368 = vmatprep.subr.bf16.mxu0 0
    %2369 = vmatpush1.bf16.msra.mxu0 0
    %2370 = vmatprep.subr.bf16.mxu0 0
    %2371 = vmatpush1.bf16.msra.mxu0 0
    %2372 = vmatprep.subr.bf16.mxu0 0
    %2373 = vmatpush1.bf16.msra.mxu0 0
    %2374 = vmatprep.subr.bf16.mxu0 0
    %2375 = vmatpush1.bf16.msra.mxu0 0
    %2376 = vmatprep.subr.bf16.mxu0 0
    %2377 = vmatpush1.bf16.msra.mxu0 0
    %2378 = vmatprep.subr.bf16.mxu0 0
    %2379 = vmatpush1.bf16.msra.mxu0 0
    %2380 = vmatprep.subr.bf16.mxu0 0
    %2381 = vmatpush1.bf16.msra.mxu0 %v2365
    %2382 = vmatprep.subr.bf16.mxu0 0
    %2383 = vmatpush1.bf16.msra.mxu0 %v2364
    %2384 = vmatprep.subr.bf16.mxu0 0
    %2385 = vmatpush2.bf16.msra.mxu0 0
    %2386 = vmatprep.subr.bf16.mxu0 0
    %2387 = vmatpush2.bf16.msra.mxu0 0
    %2388 = vmatprep.subr.bf16.mxu0 0
    %2389 = vmatpush2.bf16.msra.mxu0 0
    %2390 = vmatprep.subr.bf16.mxu0 0
    %2391 = vmatpush2.bf16.msra.mxu0 0
    %2392 = vmatprep.subr.bf16.mxu0 0
    %2393 = vmatpush2.bf16.msra.mxu0 0
    %2394 = vmatprep.subr.bf16.mxu0 0
    %2395 = vmatpush2.bf16.msra.mxu0 0
    %2396 = vmatprep.subr.bf16.mxu0 0
    %2397 = vmatpush2.bf16.msra.mxu0 0
    %2398 = vmatprep.subr.bf16.mxu0 0
    %2399 = vmatpush2.bf16.msra.mxu0 0
    %2400 = vmatprep.mubr.bf16.mxu0 0
    %2401 = vmatmul.mubr.bf16.gmra.mxu0 %v2300
    %v2402 = vpop.f32.mrf.mxu0
    %v2403 = vadd.f32 %v2354, %v2402
    %v2404 = vpop.f32.mrf.mxu0
    %v2405 = vpop.f32.mrf.mxu0
    %v2406 = vadd.f32 %v2354, %v2405
    %v2407 = vpop.f32.mrf.mxu0
    %2408 = vdwg.mxu0
    %s2409 = scalar_lea.vmem %s8, 64
    %v2410 = vld [vmem:[%s2409] sm:$0xf]
    %v2411 = vld [vmem:[%s2409 + $0x4] sm:$0xf]
    %v2412 = vld [vmem:[%s2409 + $0x8] sm:$0xf]
    %v2413 = vld [vmem:[%s2409 + $0xc] sm:$0xf]
    %s2414 = scalar_lea.vmem %s9, 4
    %v2415 = vld [vmem:[%s2414] sm:$0x1]
    %v2417 = vlaneseq
    %v2418 = vshrl.u32 %v2417, 7
    %v2419 = vsub.s32 0, %v2418
    %v2420 = vrot.slane %v2415, %v2419
    %v2426 = vunpack.c.l.b16 %v2410
    %v2427 = vunpack.c.l.b16 %v2411
    %v2428 = vunpack.c.l.b16 %v2412
    %v2429 = vunpack.c.l.b16 %v2413
    %v2430 = vpack.c.b16 %v2427, %v2426
    %v2431 = vpack.c.b16 %v2429, %v2428
    %2434 = vmatprep.subr.bf16.mxu0 0
    %2435 = vmatpush1.bf16.msra.mxu0 0
    %2436 = vmatprep.subr.bf16.mxu0 0
    %2437 = vmatpush1.bf16.msra.mxu0 0
    %2438 = vmatprep.subr.bf16.mxu0 0
    %2439 = vmatpush1.bf16.msra.mxu0 0
    %2440 = vmatprep.subr.bf16.mxu0 0
    %2441 = vmatpush1.bf16.msra.mxu0 0
    %2442 = vmatprep.subr.bf16.mxu0 0
    %2443 = vmatpush1.bf16.msra.mxu0 0
    %2444 = vmatprep.subr.bf16.mxu0 0
    %2445 = vmatpush1.bf16.msra.mxu0 0
    %2446 = vmatprep.subr.bf16.mxu0 0
    %2447 = vmatpush1.bf16.msra.mxu0 %v2431
    %2448 = vmatprep.subr.bf16.mxu0 0
    %2449 = vmatpush1.bf16.msra.mxu0 %v2430
    %2450 = vmatprep.subr.bf16.mxu0 0
    %2451 = vmatpush2.bf16.msra.mxu0 0
    %2452 = vmatprep.subr.bf16.mxu0 0
    %2453 = vmatpush2.bf16.msra.mxu0 0
    %2454 = vmatprep.subr.bf16.mxu0 0
    %2455 = vmatpush2.bf16.msra.mxu0 0
    %2456 = vmatprep.subr.bf16.mxu0 0
    %2457 = vmatpush2.bf16.msra.mxu0 0
    %2458 = vmatprep.subr.bf16.mxu0 0
    %2459 = vmatpush2.bf16.msra.mxu0 0
    %2460 = vmatprep.subr.bf16.mxu0 0
    %2461 = vmatpush2.bf16.msra.mxu0 0
    %2462 = vmatprep.subr.bf16.mxu0 0
    %2463 = vmatpush2.bf16.msra.mxu0 0
    %2464 = vmatprep.subr.bf16.mxu0 0
    %2465 = vmatpush2.bf16.msra.mxu0 0
    %2466 = vmatprep.mubr.bf16.mxu0 0
    %2467 = vmatmul.mubr.bf16.gmra.mxu0 %v2300
    %v2468 = vpop.f32.mrf.mxu0
    %v2469 = vadd.f32 %v2420, %v2468
    %v2470 = vpop.f32.mrf.mxu0
    %v2471 = vpop.f32.mrf.mxu0
    %v2472 = vadd.f32 %v2420, %v2471
    %v2473 = vpop.f32.mrf.mxu0
    %2474 = vdwg.mxu0
    %v2475 = vpack.c.bf16 %v2337, %v2337
    %v2476 = vpack.c.bf16 %v2340, %v2340
    %v2477 = vpack.c.bf16 %v2403, %v2403
    %v2478 = vpack.c.bf16 %v2406, %v2406
    %v2480 = vsel %vm365, %v2475, 0
    %v2483 = vsel %vm365, %v2477, 0
    %2485 = vmatprep.subr.bf16.mxu0 0
    %2486 = vmatpush1.bf16.xpose.msra.mxu0 0
    %2487 = vmatprep.subr.bf16.mxu0 0
    %2488 = vmatpush1.bf16.xpose.msra.mxu0 0
    %2489 = vmatprep.subr.bf16.mxu0 0
    %2490 = vmatpush1.bf16.xpose.msra.mxu0 0
    %2491 = vmatprep.subr.bf16.mxu0 0
    %2492 = vmatpush1.bf16.xpose.msra.mxu0 0
    %2493 = vmatprep.subr.bf16.mxu0 0
    %2494 = vmatpush1.bf16.xpose.msra.mxu0 0
    %2495 = vmatprep.subr.bf16.mxu0 0
    %2496 = vmatpush1.bf16.xpose.msra.mxu0 0
    %2497 = vmatprep.subr.bf16.mxu0 0
    %2498 = vmatpush1.bf16.xpose.msra.mxu0 0
    %2499 = vmatprep.subr.bf16.mxu0 0
    %2500 = vmatpush1.bf16.xpose.msra.mxu0 %v2483
    %2501 = vmatprep.subr.bf16.mxu0 0
    %2502 = vmatpush2.bf16.xpose.msra.mxu0 0
    %2503 = vmatprep.subr.bf16.mxu0 0
    %2504 = vmatpush2.bf16.xpose.msra.mxu0 0
    %2505 = vmatprep.subr.bf16.mxu0 0
    %2506 = vmatpush2.bf16.xpose.msra.mxu0 0
    %2507 = vmatprep.subr.bf16.mxu0 0
    %2508 = vmatpush2.bf16.xpose.msra.mxu0 0
    %2509 = vmatprep.subr.bf16.mxu0 0
    %2510 = vmatpush2.bf16.xpose.msra.mxu0 0
    %2511 = vmatprep.subr.bf16.mxu0 0
    %2512 = vmatpush2.bf16.xpose.msra.mxu0 0
    %2513 = vmatprep.subr.bf16.mxu0 0
    %2514 = vmatpush2.bf16.xpose.msra.mxu0 0
    %2515 = vmatprep.subr.bf16.mxu0 0
    %2516 = vmatpush2.bf16.xpose.msra.mxu0 0
    %2517 = vmatprep.mubr.bf16.mxu0 0
    %2518 = vmatmul.mubr.bf16.gmra.mxu0 %v2480
    %v2519 = vpop.f32.mrf.mxu0
    %v2520 = vadd.f32 0.0, %v2519
    %v2521 = vpop.f32.mrf.mxu0
    %v2522 = vpop.f32.mrf.mxu0
    %v2523 = vpop.f32.mrf.mxu0
    %2524 = vdwg.mxu0
    %v2526 = vsel %vm365, %v2476, 0
    %v2529 = vsel %vm365, %v2478, 0
    %2531 = vmatprep.subr.bf16.mxu0 0
    %2532 = vmatpush1.bf16.xpose.msra.mxu0 0
    %2533 = vmatprep.subr.bf16.mxu0 0
    %2534 = vmatpush1.bf16.xpose.msra.mxu0 0
    %2535 = vmatprep.subr.bf16.mxu0 0
    %2536 = vmatpush1.bf16.xpose.msra.mxu0 0
    %2537 = vmatprep.subr.bf16.mxu0 0
    %2538 = vmatpush1.bf16.xpose.msra.mxu0 0
    %2539 = vmatprep.subr.bf16.mxu0 0
    %2540 = vmatpush1.bf16.xpose.msra.mxu0 0
    %2541 = vmatprep.subr.bf16.mxu0 0
    %2542 = vmatpush1.bf16.xpose.msra.mxu0 0
    %2543 = vmatprep.subr.bf16.mxu0 0
    %2544 = vmatpush1.bf16.xpose.msra.mxu0 0
    %2545 = vmatprep.subr.bf16.mxu0 0
    %2546 = vmatpush1.bf16.xpose.msra.mxu0 %v2529
    %2547 = vmatprep.subr.bf16.mxu0 0
    %2548 = vmatpush2.bf16.xpose.msra.mxu0 0
    %2549 = vmatprep.subr.bf16.mxu0 0
    %2550 = vmatpush2.bf16.xpose.msra.mxu0 0
    %2551 = vmatprep.subr.bf16.mxu0 0
    %2552 = vmatpush2.bf16.xpose.msra.mxu0 0
    %2553 = vmatprep.subr.bf16.mxu0 0
    %2554 = vmatpush2.bf16.xpose.msra.mxu0 0
    %2555 = vmatprep.subr.bf16.mxu0 0
    %2556 = vmatpush2.bf16.xpose.msra.mxu0 0
    %2557 = vmatprep.subr.bf16.mxu0 0
    %2558 = vmatpush2.bf16.xpose.msra.mxu0 0
    %2559 = vmatprep.subr.bf16.mxu0 0
    %2560 = vmatpush2.bf16.xpose.msra.mxu0 0
    %2561 = vmatprep.subr.bf16.mxu0 0
    %2562 = vmatpush2.bf16.xpose.msra.mxu0 0
    %2563 = vmatprep.mubr.bf16.mxu0 0
    %2564 = vmatmul.mubr.bf16.gmra.mxu0 %v2526
    %v2565 = vpop.f32.mrf.mxu0
    %v2566 = vadd.f32 0.0, %v2565
    %v2567 = vpop.f32.mrf.mxu0
    %v2568 = vpop.f32.mrf.mxu0
    %v2569 = vpop.f32.mrf.mxu0
    %2570 = vdwg.mxu0
    %v2571 = vsel %vm365, %v2520, -inf
    %2572 = vmax.xlane.f32.xlu0 %v2571
    %v2573 = vpop.xlane.xlu0 %2572
    %v2574 = vsel %vm365, %v2566, -inf
    %2575 = vmax.xlane.f32.xlu0 %v2574
    %v2576 = vpop.xlane.xlu0 %2575
    %v2577 = vsub.f32 %v2520, %v2573
    %v2578 = vsub.f32 %v2566, %v2576
    %v2579 = vmul.f32 %v2577, 1.442695
    %v2580 = vpow.pop %v2579
    %v2581 = vmul.f32 %v2578, 1.442695
    %v2582 = vpow.pop %v2581
    %v2583 = vsel %vm365, %v2580, 0.0
    %2584 = vadd.xlane.f32.xlu0 %v2583
    %v2585 = vpop.xlane.xlu0 %2584
    %v2586 = vsel %vm365, %v2582, 0.0
    %2587 = vadd.xlane.f32.xlu0 %v2586
    %v2588 = vpop.xlane.xlu0 %2587
    %v2589 = vrcp.pop %v2585
    %v2590 = vmul.f32 %v2580, %v2589
    %v2591 = vrcp.pop %v2588
    %v2592 = vmul.f32 %v2582, %v2591
    %v2593 = vpack.c.bf16 %v2590, %v2590
    %v2594 = vpack.c.bf16 %v2592, %v2592
    %v2595 = vpack.c.bf16 %v2469, %v2469
    %v2596 = vpack.c.bf16 %v2472, %v2472
    %v2598 = vsel %vm365, %v2593, 0
    %v2601 = vsel %vm487, %v2595, 0
    %2603 = vmatprep.subr.bf16.mxu0 0
    %2604 = vmatpush1.bf16.msra.mxu0 0
    %2605 = vmatprep.subr.bf16.mxu0 0
    %2606 = vmatpush1.bf16.msra.mxu0 0
    %2607 = vmatprep.subr.bf16.mxu0 0
    %2608 = vmatpush1.bf16.msra.mxu0 0
    %2609 = vmatprep.subr.bf16.mxu0 0
    %2610 = vmatpush1.bf16.msra.mxu0 0
    %2611 = vmatprep.subr.bf16.mxu0 0
    %2612 = vmatpush1.bf16.msra.mxu0 0
    %2613 = vmatprep.subr.bf16.mxu0 0
    %2614 = vmatpush1.bf16.msra.mxu0 0
    %2615 = vmatprep.subr.bf16.mxu0 0
    %2616 = vmatpush1.bf16.msra.mxu0 0
    %2617 = vmatprep.subr.bf16.mxu0 0
    %2618 = vmatpush1.bf16.msra.mxu0 %v2601
    %2619 = vmatprep.subr.bf16.mxu0 0
    %2620 = vmatpush2.bf16.msra.mxu0 0
    %2621 = vmatprep.subr.bf16.mxu0 0
    %2622 = vmatpush2.bf16.msra.mxu0 0
    %2623 = vmatprep.subr.bf16.mxu0 0
    %2624 = vmatpush2.bf16.msra.mxu0 0
    %2625 = vmatprep.subr.bf16.mxu0 0
    %2626 = vmatpush2.bf16.msra.mxu0 0
    %2627 = vmatprep.subr.bf16.mxu0 0
    %2628 = vmatpush2.bf16.msra.mxu0 0
    %2629 = vmatprep.subr.bf16.mxu0 0
    %2630 = vmatpush2.bf16.msra.mxu0 0
    %2631 = vmatprep.subr.bf16.mxu0 0
    %2632 = vmatpush2.bf16.msra.mxu0 0
    %2633 = vmatprep.subr.bf16.mxu0 0
    %2634 = vmatpush2.bf16.msra.mxu0 0
    %2635 = vmatprep.mubr.bf16.mxu0 0
    %2636 = vmatmul.mubr.bf16.gmra.mxu0 %v2598
    %v2637 = vpop.f32.mrf.mxu0
    %v2638 = vadd.f32 0.0, %v2637
    %v2639 = vpop.f32.mrf.mxu0
    %v2640 = vpop.f32.mrf.mxu0
    %v2641 = vpop.f32.mrf.mxu0
    %2642 = vdwg.mxu0
    %v2644 = vsel %vm365, %v2594, 0
    %v2647 = vsel %vm487, %v2596, 0
    %2649 = vmatprep.subr.bf16.mxu0 0
    %2650 = vmatpush1.bf16.msra.mxu0 0
    %2651 = vmatprep.subr.bf16.mxu0 0
    %2652 = vmatpush1.bf16.msra.mxu0 0
    %2653 = vmatprep.subr.bf16.mxu0 0
    %2654 = vmatpush1.bf16.msra.mxu0 0
    %2655 = vmatprep.subr.bf16.mxu0 0
    %2656 = vmatpush1.bf16.msra.mxu0 0
    %2657 = vmatprep.subr.bf16.mxu0 0
    %2658 = vmatpush1.bf16.msra.mxu0 0
    %2659 = vmatprep.subr.bf16.mxu0 0
    %2660 = vmatpush1.bf16.msra.mxu0 0
    %2661 = vmatprep.subr.bf16.mxu0 0
    %2662 = vmatpush1.bf16.msra.mxu0 0
    %2663 = vmatprep.subr.bf16.mxu0 0
    %2664 = vmatpush1.bf16.msra.mxu0 %v2647
    %2665 = vmatprep.subr.bf16.mxu0 0
    %2666 = vmatpush2.bf16.msra.mxu0 0
    %2667 = vmatprep.subr.bf16.mxu0 0
    %2668 = vmatpush2.bf16.msra.mxu0 0
    %2669 = vmatprep.subr.bf16.mxu0 0
    %2670 = vmatpush2.bf16.msra.mxu0 0
    %2671 = vmatprep.subr.bf16.mxu0 0
    %2672 = vmatpush2.bf16.msra.mxu0 0
    %2673 = vmatprep.subr.bf16.mxu0 0
    %2674 = vmatpush2.bf16.msra.mxu0 0
    %2675 = vmatprep.subr.bf16.mxu0 0
    %2676 = vmatpush2.bf16.msra.mxu0 0
    %2677 = vmatprep.subr.bf16.mxu0 0
    %2678 = vmatpush2.bf16.msra.mxu0 0
    %2679 = vmatprep.subr.bf16.mxu0 0
    %2680 = vmatpush2.bf16.msra.mxu0 0
    %2681 = vmatprep.mubr.bf16.mxu0 0
    %2682 = vmatmul.mubr.bf16.gmra.mxu0 %v2644
    %v2683 = vpop.f32.mrf.mxu0
    %v2684 = vadd.f32 0.0, %v2683
    %v2685 = vpop.f32.mrf.mxu0
    %v2686 = vpop.f32.mrf.mxu0
    %v2687 = vpop.f32.mrf.mxu0
    %2688 = vdwg.mxu0
    %s2689 = scalar_lea.vmem %s10, 16
    %v2690 = vld [vmem:[%s2689] sm:$0xf]
    %v2691 = vpack.c.bf16 %v2684, %v2638
    %s2692 = scalar_lea.vmem %s4, 80
    %v2693 = vld [vmem:[%s2692] sm:$0xf]
    %v2694 = vld [vmem:[%s2692 + $0x4] sm:$0xf]
    %v2695 = vld [vmem:[%s2692 + $0x8] sm:$0xf]
    %v2696 = vld [vmem:[%s2692 + $0xc] sm:$0xf]
    %s2697 = scalar_lea.vmem %s5, 5
    %v2698 = vld [vmem:[%s2697] sm:$0x1]
    %v2700 = vlaneseq
    %v2701 = vshrl.u32 %v2700, 7
    %v2702 = vsub.s32 0, %v2701
    %v2703 = vrot.slane %v2698, %v2702
    %v2709 = vunpack.c.l.b16 %v2693
    %v2710 = vunpack.c.l.b16 %v2694
    %v2711 = vunpack.c.l.b16 %v2695
    %v2712 = vunpack.c.l.b16 %v2696
    %v2713 = vpack.c.b16 %v2710, %v2709
    %v2714 = vpack.c.b16 %v2712, %v2711
    %2717 = vmatprep.subr.bf16.mxu0 0
    %2718 = vmatpush1.bf16.msra.mxu0 0
    %2719 = vmatprep.subr.bf16.mxu0 0
    %2720 = vmatpush1.bf16.msra.mxu0 0
    %2721 = vmatprep.subr.bf16.mxu0 0
    %2722 = vmatpush1.bf16.msra.mxu0 0
    %2723 = vmatprep.subr.bf16.mxu0 0
    %2724 = vmatpush1.bf16.msra.mxu0 0
    %2725 = vmatprep.subr.bf16.mxu0 0
    %2726 = vmatpush1.bf16.msra.mxu0 0
    %2727 = vmatprep.subr.bf16.mxu0 0
    %2728 = vmatpush1.bf16.msra.mxu0 0
    %2729 = vmatprep.subr.bf16.mxu0 0
    %2730 = vmatpush1.bf16.msra.mxu0 %v2714
    %2731 = vmatprep.subr.bf16.mxu0 0
    %2732 = vmatpush1.bf16.msra.mxu0 %v2713
    %2733 = vmatprep.subr.bf16.mxu0 0
    %2734 = vmatpush2.bf16.msra.mxu0 0
    %2735 = vmatprep.subr.bf16.mxu0 0
    %2736 = vmatpush2.bf16.msra.mxu0 0
    %2737 = vmatprep.subr.bf16.mxu0 0
    %2738 = vmatpush2.bf16.msra.mxu0 0
    %2739 = vmatprep.subr.bf16.mxu0 0
    %2740 = vmatpush2.bf16.msra.mxu0 0
    %2741 = vmatprep.subr.bf16.mxu0 0
    %2742 = vmatpush2.bf16.msra.mxu0 0
    %2743 = vmatprep.subr.bf16.mxu0 0
    %2744 = vmatpush2.bf16.msra.mxu0 0
    %2745 = vmatprep.subr.bf16.mxu0 0
    %2746 = vmatpush2.bf16.msra.mxu0 0
    %2747 = vmatprep.subr.bf16.mxu0 0
    %2748 = vmatpush2.bf16.msra.mxu0 0
    %2749 = vmatprep.mubr.bf16.mxu0 0
    %2750 = vmatmul.mubr.bf16.gmra.mxu0 %v2300
    %v2751 = vpop.f32.mrf.mxu0
    %v2752 = vadd.f32 %v2703, %v2751
    %v2753 = vpop.f32.mrf.mxu0
    %v2754 = vpop.f32.mrf.mxu0
    %v2755 = vadd.f32 %v2703, %v2754
    %v2756 = vpop.f32.mrf.mxu0
    %2757 = vdwg.mxu0
    %s2758 = scalar_lea.vmem %s6, 80
    %v2759 = vld [vmem:[%s2758] sm:$0xf]
    %v2760 = vld [vmem:[%s2758 + $0x4] sm:$0xf]
    %v2761 = vld [vmem:[%s2758 + $0x8] sm:$0xf]
    %v2762 = vld [vmem:[%s2758 + $0xc] sm:$0xf]
    %s2763 = scalar_lea.vmem %s7, 5
    %v2764 = vld [vmem:[%s2763] sm:$0x1]
    %v2766 = vlaneseq
    %v2767 = vshrl.u32 %v2766, 7
    %v2768 = vsub.s32 0, %v2767
    %v2769 = vrot.slane %v2764, %v2768
    %v2775 = vunpack.c.l.b16 %v2759
    %v2776 = vunpack.c.l.b16 %v2760
    %v2777 = vunpack.c.l.b16 %v2761
    %v2778 = vunpack.c.l.b16 %v2762
    %v2779 = vpack.c.b16 %v2776, %v2775
    %v2780 = vpack.c.b16 %v2778, %v2777
    %2783 = vmatprep.subr.bf16.mxu0 0
    %2784 = vmatpush1.bf16.msra.mxu0 0
    %2785 = vmatprep.subr.bf16.mxu0 0
    %2786 = vmatpush1.bf16.msra.mxu0 0
    %2787 = vmatprep.subr.bf16.mxu0 0
    %2788 = vmatpush1.bf16.msra.mxu0 0
    %2789 = vmatprep.subr.bf16.mxu0 0
    %2790 = vmatpush1.bf16.msra.mxu0 0
    %2791 = vmatprep.subr.bf16.mxu0 0
    %2792 = vmatpush1.bf16.msra.mxu0 0
    %2793 = vmatprep.subr.bf16.mxu0 0
    %2794 = vmatpush1.bf16.msra.mxu0 0
    %2795 = vmatprep.subr.bf16.mxu0 0
    %2796 = vmatpush1.bf16.msra.mxu0 %v2780
    %2797 = vmatprep.subr.bf16.mxu0 0
    %2798 = vmatpush1.bf16.msra.mxu0 %v2779
    %2799 = vmatprep.subr.bf16.mxu0 0
    %2800 = vmatpush2.bf16.msra.mxu0 0
    %2801 = vmatprep.subr.bf16.mxu0 0
    %2802 = vmatpush2.bf16.msra.mxu0 0
    %2803 = vmatprep.subr.bf16.mxu0 0
    %2804 = vmatpush2.bf16.msra.mxu0 0
    %2805 = vmatprep.subr.bf16.mxu0 0
    %2806 = vmatpush2.bf16.msra.mxu0 0
    %2807 = vmatprep.subr.bf16.mxu0 0
    %2808 = vmatpush2.bf16.msra.mxu0 0
    %2809 = vmatprep.subr.bf16.mxu0 0
    %2810 = vmatpush2.bf16.msra.mxu0 0
    %2811 = vmatprep.subr.bf16.mxu0 0
    %2812 = vmatpush2.bf16.msra.mxu0 0
    %2813 = vmatprep.subr.bf16.mxu0 0
    %2814 = vmatpush2.bf16.msra.mxu0 0
    %2815 = vmatprep.mubr.bf16.mxu0 0
    %2816 = vmatmul.mubr.bf16.gmra.mxu0 %v2300
    %v2817 = vpop.f32.mrf.mxu0
    %v2818 = vadd.f32 %v2769, %v2817
    %v2819 = vpop.f32.mrf.mxu0
    %v2820 = vpop.f32.mrf.mxu0
    %v2821 = vadd.f32 %v2769, %v2820
    %v2822 = vpop.f32.mrf.mxu0
    %2823 = vdwg.mxu0
    %s2824 = scalar_lea.vmem %s8, 80
    %v2825 = vld [vmem:[%s2824] sm:$0xf]
    %v2826 = vld [vmem:[%s2824 + $0x4] sm:$0xf]
    %v2827 = vld [vmem:[%s2824 + $0x8] sm:$0xf]
    %v2828 = vld [vmem:[%s2824 + $0xc] sm:$0xf]
    %s2829 = scalar_lea.vmem %s9, 5
    %v2830 = vld [vmem:[%s2829] sm:$0x1]
    %v2832 = vlaneseq
    %v2833 = vshrl.u32 %v2832, 7
    %v2834 = vsub.s32 0, %v2833
    %v2835 = vrot.slane %v2830, %v2834
    %v2841 = vunpack.c.l.b16 %v2825
    %v2842 = vunpack.c.l.b16 %v2826
    %v2843 = vunpack.c.l.b16 %v2827
    %v2844 = vunpack.c.l.b16 %v2828
    %v2845 = vpack.c.b16 %v2842, %v2841
    %v2846 = vpack.c.b16 %v2844, %v2843
    %2849 = vmatprep.subr.bf16.mxu0 0
    %2850 = vmatpush1.bf16.msra.mxu0 0
    %2851 = vmatprep.subr.bf16.mxu0 0
    %2852 = vmatpush1.bf16.msra.mxu0 0
    %2853 = vmatprep.subr.bf16.mxu0 0
    %2854 = vmatpush1.bf16.msra.mxu0 0
    %2855 = vmatprep.subr.bf16.mxu0 0
    %2856 = vmatpush1.bf16.msra.mxu0 0
    %2857 = vmatprep.subr.bf16.mxu0 0
    %2858 = vmatpush1.bf16.msra.mxu0 0
    %2859 = vmatprep.subr.bf16.mxu0 0
    %2860 = vmatpush1.bf16.msra.mxu0 0
    %2861 = vmatprep.subr.bf16.mxu0 0
    %2862 = vmatpush1.bf16.msra.mxu0 %v2846
    %2863 = vmatprep.subr.bf16.mxu0 0
    %2864 = vmatpush1.bf16.msra.mxu0 %v2845
    %2865 = vmatprep.subr.bf16.mxu0 0
    %2866 = vmatpush2.bf16.msra.mxu0 0
    %2867 = vmatprep.subr.bf16.mxu0 0
    %2868 = vmatpush2.bf16.msra.mxu0 0
    %2869 = vmatprep.subr.bf16.mxu0 0
    %2870 = vmatpush2.bf16.msra.mxu0 0
    %2871 = vmatprep.subr.bf16.mxu0 0
    %2872 = vmatpush2.bf16.msra.mxu0 0
    %2873 = vmatprep.subr.bf16.mxu0 0
    %2874 = vmatpush2.bf16.msra.mxu0 0
    %2875 = vmatprep.subr.bf16.mxu0 0
    %2876 = vmatpush2.bf16.msra.mxu0 0
    %2877 = vmatprep.subr.bf16.mxu0 0
    %2878 = vmatpush2.bf16.msra.mxu0 0
    %2879 = vmatprep.subr.bf16.mxu0 0
    %2880 = vmatpush2.bf16.msra.mxu0 0
    %2881 = vmatprep.mubr.bf16.mxu0 0
    %2882 = vmatmul.mubr.bf16.gmra.mxu0 %v2300
    %v2883 = vpop.f32.mrf.mxu0
    %v2884 = vadd.f32 %v2835, %v2883
    %v2885 = vpop.f32.mrf.mxu0
    %v2886 = vpop.f32.mrf.mxu0
    %v2887 = vadd.f32 %v2835, %v2886
    %v2888 = vpop.f32.mrf.mxu0
    %2889 = vdwg.mxu0
    %v2890 = vpack.c.bf16 %v2752, %v2752
    %v2891 = vpack.c.bf16 %v2755, %v2755
    %v2892 = vpack.c.bf16 %v2818, %v2818
    %v2893 = vpack.c.bf16 %v2821, %v2821
    %v2895 = vsel %vm365, %v2890, 0
    %v2898 = vsel %vm365, %v2892, 0
    %2900 = vmatprep.subr.bf16.mxu0 0
    %2901 = vmatpush1.bf16.xpose.msra.mxu0 0
    %2902 = vmatprep.subr.bf16.mxu0 0
    %2903 = vmatpush1.bf16.xpose.msra.mxu0 0
    %2904 = vmatprep.subr.bf16.mxu0 0
    %2905 = vmatpush1.bf16.xpose.msra.mxu0 0
    %2906 = vmatprep.subr.bf16.mxu0 0
    %2907 = vmatpush1.bf16.xpose.msra.mxu0 0
    %2908 = vmatprep.subr.bf16.mxu0 0
    %2909 = vmatpush1.bf16.xpose.msra.mxu0 0
    %2910 = vmatprep.subr.bf16.mxu0 0
    %2911 = vmatpush1.bf16.xpose.msra.mxu0 0
    %2912 = vmatprep.subr.bf16.mxu0 0
    %2913 = vmatpush1.bf16.xpose.msra.mxu0 0
    %2914 = vmatprep.subr.bf16.mxu0 0
    %2915 = vmatpush1.bf16.xpose.msra.mxu0 %v2898
    %2916 = vmatprep.subr.bf16.mxu0 0
    %2917 = vmatpush2.bf16.xpose.msra.mxu0 0
    %2918 = vmatprep.subr.bf16.mxu0 0
    %2919 = vmatpush2.bf16.xpose.msra.mxu0 0
    %2920 = vmatprep.subr.bf16.mxu0 0
    %2921 = vmatpush2.bf16.xpose.msra.mxu0 0
    %2922 = vmatprep.subr.bf16.mxu0 0
    %2923 = vmatpush2.bf16.xpose.msra.mxu0 0
    %2924 = vmatprep.subr.bf16.mxu0 0
    %2925 = vmatpush2.bf16.xpose.msra.mxu0 0
    %2926 = vmatprep.subr.bf16.mxu0 0
    %2927 = vmatpush2.bf16.xpose.msra.mxu0 0
    %2928 = vmatprep.subr.bf16.mxu0 0
    %2929 = vmatpush2.bf16.xpose.msra.mxu0 0
    %2930 = vmatprep.subr.bf16.mxu0 0
    %2931 = vmatpush2.bf16.xpose.msra.mxu0 0
    %2932 = vmatprep.mubr.bf16.mxu0 0
    %2933 = vmatmul.mubr.bf16.gmra.mxu0 %v2895
    %v2934 = vpop.f32.mrf.mxu0
    %v2935 = vadd.f32 0.0, %v2934
    %v2936 = vpop.f32.mrf.mxu0
    %v2937 = vpop.f32.mrf.mxu0
    %v2938 = vpop.f32.mrf.mxu0
    %2939 = vdwg.mxu0
    %v2941 = vsel %vm365, %v2891, 0
    %v2944 = vsel %vm365, %v2893, 0
    %2946 = vmatprep.subr.bf16.mxu0 0
    %2947 = vmatpush1.bf16.xpose.msra.mxu0 0
    %2948 = vmatprep.subr.bf16.mxu0 0
    %2949 = vmatpush1.bf16.xpose.msra.mxu0 0
    %2950 = vmatprep.subr.bf16.mxu0 0
    %2951 = vmatpush1.bf16.xpose.msra.mxu0 0
    %2952 = vmatprep.subr.bf16.mxu0 0
    %2953 = vmatpush1.bf16.xpose.msra.mxu0 0
    %2954 = vmatprep.subr.bf16.mxu0 0
    %2955 = vmatpush1.bf16.xpose.msra.mxu0 0
    %2956 = vmatprep.subr.bf16.mxu0 0
    %2957 = vmatpush1.bf16.xpose.msra.mxu0 0
    %2958 = vmatprep.subr.bf16.mxu0 0
    %2959 = vmatpush1.bf16.xpose.msra.mxu0 0
    %2960 = vmatprep.subr.bf16.mxu0 0
    %2961 = vmatpush1.bf16.xpose.msra.mxu0 %v2944
    %2962 = vmatprep.subr.bf16.mxu0 0
    %2963 = vmatpush2.bf16.xpose.msra.mxu0 0
    %2964 = vmatprep.subr.bf16.mxu0 0
    %2965 = vmatpush2.bf16.xpose.msra.mxu0 0
    %2966 = vmatprep.subr.bf16.mxu0 0
    %2967 = vmatpush2.bf16.xpose.msra.mxu0 0
    %2968 = vmatprep.subr.bf16.mxu0 0
    %2969 = vmatpush2.bf16.xpose.msra.mxu0 0
    %2970 = vmatprep.subr.bf16.mxu0 0
    %2971 = vmatpush2.bf16.xpose.msra.mxu0 0
    %2972 = vmatprep.subr.bf16.mxu0 0
    %2973 = vmatpush2.bf16.xpose.msra.mxu0 0
    %2974 = vmatprep.subr.bf16.mxu0 0
    %2975 = vmatpush2.bf16.xpose.msra.mxu0 0
    %2976 = vmatprep.subr.bf16.mxu0 0
    %2977 = vmatpush2.bf16.xpose.msra.mxu0 0
    %2978 = vmatprep.mubr.bf16.mxu0 0
    %2979 = vmatmul.mubr.bf16.gmra.mxu0 %v2941
    %v2980 = vpop.f32.mrf.mxu0
    %v2981 = vadd.f32 0.0, %v2980
    %v2982 = vpop.f32.mrf.mxu0
    %v2983 = vpop.f32.mrf.mxu0
    %v2984 = vpop.f32.mrf.mxu0
    %2985 = vdwg.mxu0
    %v2986 = vsel %vm365, %v2935, -inf
    %2987 = vmax.xlane.f32.xlu0 %v2986
    %v2988 = vpop.xlane.xlu0 %2987
    %v2989 = vsel %vm365, %v2981, -inf
    %2990 = vmax.xlane.f32.xlu0 %v2989
    %v2991 = vpop.xlane.xlu0 %2990
    %v2992 = vsub.f32 %v2935, %v2988
    %v2993 = vsub.f32 %v2981, %v2991
    %v2994 = vmul.f32 %v2992, 1.442695
    %v2995 = vpow.pop %v2994
    %v2996 = vmul.f32 %v2993, 1.442695
    %v2997 = vpow.pop %v2996
    %v2998 = vsel %vm365, %v2995, 0.0
    %2999 = vadd.xlane.f32.xlu0 %v2998
    %v3000 = vpop.xlane.xlu0 %2999
    %v3001 = vsel %vm365, %v2997, 0.0
    %3002 = vadd.xlane.f32.xlu0 %v3001
    %v3003 = vpop.xlane.xlu0 %3002
    %v3004 = vrcp.pop %v3000
    %v3005 = vmul.f32 %v2995, %v3004
    %v3006 = vrcp.pop %v3003
    %v3007 = vmul.f32 %v2997, %v3006
    %v3008 = vpack.c.bf16 %v3005, %v3005
    %v3009 = vpack.c.bf16 %v3007, %v3007
    %v3010 = vpack.c.bf16 %v2884, %v2884
    %v3011 = vpack.c.bf16 %v2887, %v2887
    %v3013 = vsel %vm365, %v3008, 0
    %v3016 = vsel %vm487, %v3010, 0
    %3018 = vmatprep.subr.bf16.mxu0 0
    %3019 = vmatpush1.bf16.msra.mxu0 0
    %3020 = vmatprep.subr.bf16.mxu0 0
    %3021 = vmatpush1.bf16.msra.mxu0 0
    %3022 = vmatprep.subr.bf16.mxu0 0
    %3023 = vmatpush1.bf16.msra.mxu0 0
    %3024 = vmatprep.subr.bf16.mxu0 0
    %3025 = vmatpush1.bf16.msra.mxu0 0
    %3026 = vmatprep.subr.bf16.mxu0 0
    %3027 = vmatpush1.bf16.msra.mxu0 0
    %3028 = vmatprep.subr.bf16.mxu0 0
    %3029 = vmatpush1.bf16.msra.mxu0 0
    %3030 = vmatprep.subr.bf16.mxu0 0
    %3031 = vmatpush1.bf16.msra.mxu0 0
    %3032 = vmatprep.subr.bf16.mxu0 0
    %3033 = vmatpush1.bf16.msra.mxu0 %v3016
    %3034 = vmatprep.subr.bf16.mxu0 0
    %3035 = vmatpush2.bf16.msra.mxu0 0
    %3036 = vmatprep.subr.bf16.mxu0 0
    %3037 = vmatpush2.bf16.msra.mxu0 0
    %3038 = vmatprep.subr.bf16.mxu0 0
    %3039 = vmatpush2.bf16.msra.mxu0 0
    %3040 = vmatprep.subr.bf16.mxu0 0
    %3041 = vmatpush2.bf16.msra.mxu0 0
    %3042 = vmatprep.subr.bf16.mxu0 0
    %3043 = vmatpush2.bf16.msra.mxu0 0
    %3044 = vmatprep.subr.bf16.mxu0 0
    %3045 = vmatpush2.bf16.msra.mxu0 0
    %3046 = vmatprep.subr.bf16.mxu0 0
    %3047 = vmatpush2.bf16.msra.mxu0 0
    %3048 = vmatprep.subr.bf16.mxu0 0
    %3049 = vmatpush2.bf16.msra.mxu0 0
    %3050 = vmatprep.mubr.bf16.mxu0 0
    %3051 = vmatmul.mubr.bf16.gmra.mxu0 %v3013
    %v3052 = vpop.f32.mrf.mxu0
    %v3053 = vadd.f32 0.0, %v3052
    %v3054 = vpop.f32.mrf.mxu0
    %v3055 = vpop.f32.mrf.mxu0
    %v3056 = vpop.f32.mrf.mxu0
    %3057 = vdwg.mxu0
    %v3059 = vsel %vm365, %v3009, 0
    %v3062 = vsel %vm487, %v3011, 0
    %3064 = vmatprep.subr.bf16.mxu0 0
    %3065 = vmatpush1.bf16.msra.mxu0 0
    %3066 = vmatprep.subr.bf16.mxu0 0
    %3067 = vmatpush1.bf16.msra.mxu0 0
    %3068 = vmatprep.subr.bf16.mxu0 0
    %3069 = vmatpush1.bf16.msra.mxu0 0
    %3070 = vmatprep.subr.bf16.mxu0 0
    %3071 = vmatpush1.bf16.msra.mxu0 0
    %3072 = vmatprep.subr.bf16.mxu0 0
    %3073 = vmatpush1.bf16.msra.mxu0 0
    %3074 = vmatprep.subr.bf16.mxu0 0
    %3075 = vmatpush1.bf16.msra.mxu0 0
    %3076 = vmatprep.subr.bf16.mxu0 0
    %3077 = vmatpush1.bf16.msra.mxu0 0
    %3078 = vmatprep.subr.bf16.mxu0 0
    %3079 = vmatpush1.bf16.msra.mxu0 %v3062
    %3080 = vmatprep.subr.bf16.mxu0 0
    %3081 = vmatpush2.bf16.msra.mxu0 0
    %3082 = vmatprep.subr.bf16.mxu0 0
    %3083 = vmatpush2.bf16.msra.mxu0 0
    %3084 = vmatprep.subr.bf16.mxu0 0
    %3085 = vmatpush2.bf16.msra.mxu0 0
    %3086 = vmatprep.subr.bf16.mxu0 0
    %3087 = vmatpush2.bf16.msra.mxu0 0
    %3088 = vmatprep.subr.bf16.mxu0 0
    %3089 = vmatpush2.bf16.msra.mxu0 0
    %3090 = vmatprep.subr.bf16.mxu0 0
    %3091 = vmatpush2.bf16.msra.mxu0 0
    %3092 = vmatprep.subr.bf16.mxu0 0
    %3093 = vmatpush2.bf16.msra.mxu0 0
    %3094 = vmatprep.subr.bf16.mxu0 0
    %3095 = vmatpush2.bf16.msra.mxu0 0
    %3096 = vmatprep.mubr.bf16.mxu0 0
    %3097 = vmatmul.mubr.bf16.gmra.mxu0 %v3059
    %v3098 = vpop.f32.mrf.mxu0
    %v3099 = vadd.f32 0.0, %v3098
    %v3100 = vpop.f32.mrf.mxu0
    %v3101 = vpop.f32.mrf.mxu0
    %v3102 = vpop.f32.mrf.mxu0
    %3103 = vdwg.mxu0
    %s3104 = scalar_lea.vmem %s10, 20
    %v3105 = vld [vmem:[%s3104] sm:$0xf]
    %v3106 = vpack.c.bf16 %v3099, %v3053
    %v3108 = vsel %vm365, %v3106, 0
    %v3111 = vsel %vm487, %v3105, 0
    %3113 = vmatprep.subr.bf16.mxu0 0
    %3114 = vmatpush1.bf16.msra.mxu0 0
    %3115 = vmatprep.subr.bf16.mxu0 0
    %3116 = vmatpush1.bf16.msra.mxu0 0
    %3117 = vmatprep.subr.bf16.mxu0 0
    %3118 = vmatpush1.bf16.msra.mxu0 0
    %3119 = vmatprep.subr.bf16.mxu0 0
    %3120 = vmatpush1.bf16.msra.mxu0 0
    %3121 = vmatprep.subr.bf16.mxu0 0
    %3122 = vmatpush1.bf16.msra.mxu0 0
    %3123 = vmatprep.subr.bf16.mxu0 0
    %3124 = vmatpush1.bf16.msra.mxu0 0
    %3125 = vmatprep.subr.bf16.mxu0 0
    %3126 = vmatpush1.bf16.msra.mxu0 0
    %3127 = vmatprep.subr.bf16.mxu0 0
    %3128 = vmatpush1.bf16.msra.mxu0 %v3111
    %3129 = vmatprep.subr.bf16.mxu0 0
    %3130 = vmatpush2.bf16.msra.mxu0 0
    %3131 = vmatprep.subr.bf16.mxu0 0
    %3132 = vmatpush2.bf16.msra.mxu0 0
    %3133 = vmatprep.subr.bf16.mxu0 0
    %3134 = vmatpush2.bf16.msra.mxu0 0
    %3135 = vmatprep.subr.bf16.mxu0 0
    %3136 = vmatpush2.bf16.msra.mxu0 0
    %3137 = vmatprep.subr.bf16.mxu0 0
    %3138 = vmatpush2.bf16.msra.mxu0 0
    %3139 = vmatprep.subr.bf16.mxu0 0
    %3140 = vmatpush2.bf16.msra.mxu0 0
    %3141 = vmatprep.subr.bf16.mxu0 0
    %3142 = vmatpush2.bf16.msra.mxu0 0
    %3143 = vmatprep.subr.bf16.mxu0 0
    %3144 = vmatpush2.bf16.msra.mxu0 0
    %3145 = vmatprep.mubr.bf16.mxu0 0
    %3146 = vmatmul.mubr.bf16.gmra.mxu0 %v3108
    %v3147 = vpop.f32.mrf.mxu0
    %v3148 = vadd.f32 0.0, %v3147
    %v3149 = vpop.f32.mrf.mxu0
    %v3150 = vpop.f32.mrf.mxu0
    %v3151 = vadd.f32 0.0, %v3150
    %v3152 = vpop.f32.mrf.mxu0
    %3153 = vdwg.mxu0
    %v3155 = vsel %vm365, %v2691, 0
    %v3158 = vsel %vm487, %v2690, 0
    %3160 = vmatprep.subr.bf16.mxu0 0
    %3161 = vmatpush1.bf16.msra.mxu0 0
    %3162 = vmatprep.subr.bf16.mxu0 0
    %3163 = vmatpush1.bf16.msra.mxu0 0
    %3164 = vmatprep.subr.bf16.mxu0 0
    %3165 = vmatpush1.bf16.msra.mxu0 0
    %3166 = vmatprep.subr.bf16.mxu0 0
    %3167 = vmatpush1.bf16.msra.mxu0 0
    %3168 = vmatprep.subr.bf16.mxu0 0
    %3169 = vmatpush1.bf16.msra.mxu0 0
    %3170 = vmatprep.subr.bf16.mxu0 0
    %3171 = vmatpush1.bf16.msra.mxu0 0
    %3172 = vmatprep.subr.bf16.mxu0 0
    %3173 = vmatpush1.bf16.msra.mxu0 0
    %3174 = vmatprep.subr.bf16.mxu0 0
    %3175 = vmatpush1.bf16.msra.mxu0 %v3158
    %3176 = vmatprep.subr.bf16.mxu0 0
    %3177 = vmatpush2.bf16.msra.mxu0 0
    %3178 = vmatprep.subr.bf16.mxu0 0
    %3179 = vmatpush2.bf16.msra.mxu0 0
    %3180 = vmatprep.subr.bf16.mxu0 0
    %3181 = vmatpush2.bf16.msra.mxu0 0
    %3182 = vmatprep.subr.bf16.mxu0 0
    %3183 = vmatpush2.bf16.msra.mxu0 0
    %3184 = vmatprep.subr.bf16.mxu0 0
    %3185 = vmatpush2.bf16.msra.mxu0 0
    %3186 = vmatprep.subr.bf16.mxu0 0
    %3187 = vmatpush2.bf16.msra.mxu0 0
    %3188 = vmatprep.subr.bf16.mxu0 0
    %3189 = vmatpush2.bf16.msra.mxu0 0
    %3190 = vmatprep.subr.bf16.mxu0 0
    %3191 = vmatpush2.bf16.msra.mxu0 0
    %3192 = vmatprep.mubr.bf16.mxu0 0
    %3193 = vmatmul.mubr.bf16.gmra.mxu0 %v3155
    %v3194 = vpop.f32.mrf.mxu0
    %v3195 = vadd.f32 %v3148, %v3194
    %v3196 = vpop.f32.mrf.mxu0
    %v3197 = vpop.f32.mrf.mxu0
    %v3198 = vadd.f32 %v3151, %v3197
    %v3199 = vpop.f32.mrf.mxu0
    %3200 = vdwg.mxu0
    %s3201 = scalar_lea.vmem %s4, 96
    %v3202 = vld [vmem:[%s3201] sm:$0xf]
    %v3203 = vld [vmem:[%s3201 + $0x4] sm:$0xf]
    %v3204 = vld [vmem:[%s3201 + $0x8] sm:$0xf]
    %v3205 = vld [vmem:[%s3201 + $0xc] sm:$0xf]
    %s3206 = scalar_lea.vmem %s5, 6
    %v3207 = vld [vmem:[%s3206] sm:$0x1]
    %v3209 = vlaneseq
    %v3210 = vshrl.u32 %v3209, 7
    %v3211 = vsub.s32 0, %v3210
    %v3212 = vrot.slane %v3207, %v3211
    %v3218 = vunpack.c.l.b16 %v3202
    %v3219 = vunpack.c.l.b16 %v3203
    %v3220 = vunpack.c.l.b16 %v3204
    %v3221 = vunpack.c.l.b16 %v3205
    %v3222 = vpack.c.b16 %v3219, %v3218
    %v3223 = vpack.c.b16 %v3221, %v3220
    %3226 = vmatprep.subr.bf16.mxu0 0
    %3227 = vmatpush1.bf16.msra.mxu0 0
    %3228 = vmatprep.subr.bf16.mxu0 0
    %3229 = vmatpush1.bf16.msra.mxu0 0
    %3230 = vmatprep.subr.bf16.mxu0 0
    %3231 = vmatpush1.bf16.msra.mxu0 0
    %3232 = vmatprep.subr.bf16.mxu0 0
    %3233 = vmatpush1.bf16.msra.mxu0 0
    %3234 = vmatprep.subr.bf16.mxu0 0
    %3235 = vmatpush1.bf16.msra.mxu0 0
    %3236 = vmatprep.subr.bf16.mxu0 0
    %3237 = vmatpush1.bf16.msra.mxu0 0
    %3238 = vmatprep.subr.bf16.mxu0 0
    %3239 = vmatpush1.bf16.msra.mxu0 %v3223
    %3240 = vmatprep.subr.bf16.mxu0 0
    %3241 = vmatpush1.bf16.msra.mxu0 %v3222
    %3242 = vmatprep.subr.bf16.mxu0 0
    %3243 = vmatpush2.bf16.msra.mxu0 0
    %3244 = vmatprep.subr.bf16.mxu0 0
    %3245 = vmatpush2.bf16.msra.mxu0 0
    %3246 = vmatprep.subr.bf16.mxu0 0
    %3247 = vmatpush2.bf16.msra.mxu0 0
    %3248 = vmatprep.subr.bf16.mxu0 0
    %3249 = vmatpush2.bf16.msra.mxu0 0
    %3250 = vmatprep.subr.bf16.mxu0 0
    %3251 = vmatpush2.bf16.msra.mxu0 0
    %3252 = vmatprep.subr.bf16.mxu0 0
    %3253 = vmatpush2.bf16.msra.mxu0 0
    %3254 = vmatprep.subr.bf16.mxu0 0
    %3255 = vmatpush2.bf16.msra.mxu0 0
    %3256 = vmatprep.subr.bf16.mxu0 0
    %3257 = vmatpush2.bf16.msra.mxu0 0
    %3258 = vmatprep.mubr.bf16.mxu0 0
    %3259 = vmatmul.mubr.bf16.gmra.mxu0 %v2300
    %v3260 = vpop.f32.mrf.mxu0
    %v3261 = vadd.f32 %v3212, %v3260
    %v3262 = vpop.f32.mrf.mxu0
    %v3263 = vpop.f32.mrf.mxu0
    %v3264 = vadd.f32 %v3212, %v3263
    %v3265 = vpop.f32.mrf.mxu0
    %3266 = vdwg.mxu0
    %s3267 = scalar_lea.vmem %s6, 96
    %v3268 = vld [vmem:[%s3267] sm:$0xf]
    %v3269 = vld [vmem:[%s3267 + $0x4] sm:$0xf]
    %v3270 = vld [vmem:[%s3267 + $0x8] sm:$0xf]
    %v3271 = vld [vmem:[%s3267 + $0xc] sm:$0xf]
    %s3272 = scalar_lea.vmem %s7, 6
    %v3273 = vld [vmem:[%s3272] sm:$0x1]
    %v3275 = vlaneseq
    %v3276 = vshrl.u32 %v3275, 7
    %v3277 = vsub.s32 0, %v3276
    %v3278 = vrot.slane %v3273, %v3277
    %v3284 = vunpack.c.l.b16 %v3268
    %v3285 = vunpack.c.l.b16 %v3269
    %v3286 = vunpack.c.l.b16 %v3270
    %v3287 = vunpack.c.l.b16 %v3271
    %v3288 = vpack.c.b16 %v3285, %v3284
    %v3289 = vpack.c.b16 %v3287, %v3286
    %3292 = vmatprep.subr.bf16.mxu0 0
    %3293 = vmatpush1.bf16.msra.mxu0 0
    %3294 = vmatprep.subr.bf16.mxu0 0
    %3295 = vmatpush1.bf16.msra.mxu0 0
    %3296 = vmatprep.subr.bf16.mxu0 0
    %3297 = vmatpush1.bf16.msra.mxu0 0
    %3298 = vmatprep.subr.bf16.mxu0 0
    %3299 = vmatpush1.bf16.msra.mxu0 0
    %3300 = vmatprep.subr.bf16.mxu0 0
    %3301 = vmatpush1.bf16.msra.mxu0 0
    %3302 = vmatprep.subr.bf16.mxu0 0
    %3303 = vmatpush1.bf16.msra.mxu0 0
    %3304 = vmatprep.subr.bf16.mxu0 0
    %3305 = vmatpush1.bf16.msra.mxu0 %v3289
    %3306 = vmatprep.subr.bf16.mxu0 0
    %3307 = vmatpush1.bf16.msra.mxu0 %v3288
    %3308 = vmatprep.subr.bf16.mxu0 0
    %3309 = vmatpush2.bf16.msra.mxu0 0
    %3310 = vmatprep.subr.bf16.mxu0 0
    %3311 = vmatpush2.bf16.msra.mxu0 0
    %3312 = vmatprep.subr.bf16.mxu0 0
    %3313 = vmatpush2.bf16.msra.mxu0 0
    %3314 = vmatprep.subr.bf16.mxu0 0
    %3315 = vmatpush2.bf16.msra.mxu0 0
    %3316 = vmatprep.subr.bf16.mxu0 0
    %3317 = vmatpush2.bf16.msra.mxu0 0
    %3318 = vmatprep.subr.bf16.mxu0 0
    %3319 = vmatpush2.bf16.msra.mxu0 0
    %3320 = vmatprep.subr.bf16.mxu0 0
    %3321 = vmatpush2.bf16.msra.mxu0 0
    %3322 = vmatprep.subr.bf16.mxu0 0
    %3323 = vmatpush2.bf16.msra.mxu0 0
    %3324 = vmatprep.mubr.bf16.mxu0 0
    %3325 = vmatmul.mubr.bf16.gmra.mxu0 %v2300
    %v3326 = vpop.f32.mrf.mxu0
    %v3327 = vadd.f32 %v3278, %v3326
    %v3328 = vpop.f32.mrf.mxu0
    %v3329 = vpop.f32.mrf.mxu0
    %v3330 = vadd.f32 %v3278, %v3329
    %v3331 = vpop.f32.mrf.mxu0
    %3332 = vdwg.mxu0
    %s3333 = scalar_lea.vmem %s8, 96
    %v3334 = vld [vmem:[%s3333] sm:$0xf]
    %v3335 = vld [vmem:[%s3333 + $0x4] sm:$0xf]
    %v3336 = vld [vmem:[%s3333 + $0x8] sm:$0xf]
    %v3337 = vld [vmem:[%s3333 + $0xc] sm:$0xf]
    %s3338 = scalar_lea.vmem %s9, 6
    %v3339 = vld [vmem:[%s3338] sm:$0x1]
    %v3341 = vlaneseq
    %v3342 = vshrl.u32 %v3341, 7
    %v3343 = vsub.s32 0, %v3342
    %v3344 = vrot.slane %v3339, %v3343
    %v3350 = vunpack.c.l.b16 %v3334
    %v3351 = vunpack.c.l.b16 %v3335
    %v3352 = vunpack.c.l.b16 %v3336
    %v3353 = vunpack.c.l.b16 %v3337
    %v3354 = vpack.c.b16 %v3351, %v3350
    %v3355 = vpack.c.b16 %v3353, %v3352
    %3358 = vmatprep.subr.bf16.mxu0 0
    %3359 = vmatpush1.bf16.msra.mxu0 0
    %3360 = vmatprep.subr.bf16.mxu0 0
    %3361 = vmatpush1.bf16.msra.mxu0 0
    %3362 = vmatprep.subr.bf16.mxu0 0
    %3363 = vmatpush1.bf16.msra.mxu0 0
    %3364 = vmatprep.subr.bf16.mxu0 0
    %3365 = vmatpush1.bf16.msra.mxu0 0
    %3366 = vmatprep.subr.bf16.mxu0 0
    %3367 = vmatpush1.bf16.msra.mxu0 0
    %3368 = vmatprep.subr.bf16.mxu0 0
    %3369 = vmatpush1.bf16.msra.mxu0 0
    %3370 = vmatprep.subr.bf16.mxu0 0
    %3371 = vmatpush1.bf16.msra.mxu0 %v3355
    %3372 = vmatprep.subr.bf16.mxu0 0
    %3373 = vmatpush1.bf16.msra.mxu0 %v3354
    %3374 = vmatprep.subr.bf16.mxu0 0
    %3375 = vmatpush2.bf16.msra.mxu0 0
    %3376 = vmatprep.subr.bf16.mxu0 0
    %3377 = vmatpush2.bf16.msra.mxu0 0
    %3378 = vmatprep.subr.bf16.mxu0 0
    %3379 = vmatpush2.bf16.msra.mxu0 0
    %3380 = vmatprep.subr.bf16.mxu0 0
    %3381 = vmatpush2.bf16.msra.mxu0 0
    %3382 = vmatprep.subr.bf16.mxu0 0
    %3383 = vmatpush2.bf16.msra.mxu0 0
    %3384 = vmatprep.subr.bf16.mxu0 0
    %3385 = vmatpush2.bf16.msra.mxu0 0
    %3386 = vmatprep.subr.bf16.mxu0 0
    %3387 = vmatpush2.bf16.msra.mxu0 0
    %3388 = vmatprep.subr.bf16.mxu0 0
    %3389 = vmatpush2.bf16.msra.mxu0 0
    %3390 = vmatprep.mubr.bf16.mxu0 0
    %3391 = vmatmul.mubr.bf16.gmra.mxu0 %v2300
    %v3392 = vpop.f32.mrf.mxu0
    %v3393 = vadd.f32 %v3344, %v3392
    %v3394 = vpop.f32.mrf.mxu0
    %v3395 = vpop.f32.mrf.mxu0
    %v3396 = vadd.f32 %v3344, %v3395
    %v3397 = vpop.f32.mrf.mxu0
    %3398 = vdwg.mxu0
    %v3399 = vpack.c.bf16 %v3261, %v3261
    %v3400 = vpack.c.bf16 %v3264, %v3264
    %v3401 = vpack.c.bf16 %v3327, %v3327
    %v3402 = vpack.c.bf16 %v3330, %v3330
    %v3404 = vsel %vm365, %v3399, 0
    %v3407 = vsel %vm365, %v3401, 0
    %3409 = vmatprep.subr.bf16.mxu0 0
    %3410 = vmatpush1.bf16.xpose.msra.mxu0 0
    %3411 = vmatprep.subr.bf16.mxu0 0
    %3412 = vmatpush1.bf16.xpose.msra.mxu0 0
    %3413 = vmatprep.subr.bf16.mxu0 0
    %3414 = vmatpush1.bf16.xpose.msra.mxu0 0
    %3415 = vmatprep.subr.bf16.mxu0 0
    %3416 = vmatpush1.bf16.xpose.msra.mxu0 0
    %3417 = vmatprep.subr.bf16.mxu0 0
    %3418 = vmatpush1.bf16.xpose.msra.mxu0 0
    %3419 = vmatprep.subr.bf16.mxu0 0
    %3420 = vmatpush1.bf16.xpose.msra.mxu0 0
    %3421 = vmatprep.subr.bf16.mxu0 0
    %3422 = vmatpush1.bf16.xpose.msra.mxu0 0
    %3423 = vmatprep.subr.bf16.mxu0 0
    %3424 = vmatpush1.bf16.xpose.msra.mxu0 %v3407
    %3425 = vmatprep.subr.bf16.mxu0 0
    %3426 = vmatpush2.bf16.xpose.msra.mxu0 0
    %3427 = vmatprep.subr.bf16.mxu0 0
    %3428 = vmatpush2.bf16.xpose.msra.mxu0 0
    %3429 = vmatprep.subr.bf16.mxu0 0
    %3430 = vmatpush2.bf16.xpose.msra.mxu0 0
    %3431 = vmatprep.subr.bf16.mxu0 0
    %3432 = vmatpush2.bf16.xpose.msra.mxu0 0
    %3433 = vmatprep.subr.bf16.mxu0 0
    %3434 = vmatpush2.bf16.xpose.msra.mxu0 0
    %3435 = vmatprep.subr.bf16.mxu0 0
    %3436 = vmatpush2.bf16.xpose.msra.mxu0 0
    %3437 = vmatprep.subr.bf16.mxu0 0
    %3438 = vmatpush2.bf16.xpose.msra.mxu0 0
    %3439 = vmatprep.subr.bf16.mxu0 0
    %3440 = vmatpush2.bf16.xpose.msra.mxu0 0
    %3441 = vmatprep.mubr.bf16.mxu0 0
    %3442 = vmatmul.mubr.bf16.gmra.mxu0 %v3404
    %v3443 = vpop.f32.mrf.mxu0
    %v3444 = vadd.f32 0.0, %v3443
    %v3445 = vpop.f32.mrf.mxu0
    %v3446 = vpop.f32.mrf.mxu0
    %v3447 = vpop.f32.mrf.mxu0
    %3448 = vdwg.mxu0
    %v3450 = vsel %vm365, %v3400, 0
    %v3453 = vsel %vm365, %v3402, 0
    %3455 = vmatprep.subr.bf16.mxu0 0
    %3456 = vmatpush1.bf16.xpose.msra.mxu0 0
    %3457 = vmatprep.subr.bf16.mxu0 0
    %3458 = vmatpush1.bf16.xpose.msra.mxu0 0
    %3459 = vmatprep.subr.bf16.mxu0 0
    %3460 = vmatpush1.bf16.xpose.msra.mxu0 0
    %3461 = vmatprep.subr.bf16.mxu0 0
    %3462 = vmatpush1.bf16.xpose.msra.mxu0 0
    %3463 = vmatprep.subr.bf16.mxu0 0
    %3464 = vmatpush1.bf16.xpose.msra.mxu0 0
    %3465 = vmatprep.subr.bf16.mxu0 0
    %3466 = vmatpush1.bf16.xpose.msra.mxu0 0
    %3467 = vmatprep.subr.bf16.mxu0 0
    %3468 = vmatpush1.bf16.xpose.msra.mxu0 0
    %3469 = vmatprep.subr.bf16.mxu0 0
    %3470 = vmatpush1.bf16.xpose.msra.mxu0 %v3453
    %3471 = vmatprep.subr.bf16.mxu0 0
    %3472 = vmatpush2.bf16.xpose.msra.mxu0 0
    %3473 = vmatprep.subr.bf16.mxu0 0
    %3474 = vmatpush2.bf16.xpose.msra.mxu0 0
    %3475 = vmatprep.subr.bf16.mxu0 0
    %3476 = vmatpush2.bf16.xpose.msra.mxu0 0
    %3477 = vmatprep.subr.bf16.mxu0 0
    %3478 = vmatpush2.bf16.xpose.msra.mxu0 0
    %3479 = vmatprep.subr.bf16.mxu0 0
    %3480 = vmatpush2.bf16.xpose.msra.mxu0 0
    %3481 = vmatprep.subr.bf16.mxu0 0
    %3482 = vmatpush2.bf16.xpose.msra.mxu0 0
    %3483 = vmatprep.subr.bf16.mxu0 0
    %3484 = vmatpush2.bf16.xpose.msra.mxu0 0
    %3485 = vmatprep.subr.bf16.mxu0 0
    %3486 = vmatpush2.bf16.xpose.msra.mxu0 0
    %3487 = vmatprep.mubr.bf16.mxu0 0
    %3488 = vmatmul.mubr.bf16.gmra.mxu0 %v3450
    %v3489 = vpop.f32.mrf.mxu0
    %v3490 = vadd.f32 0.0, %v3489
    %v3491 = vpop.f32.mrf.mxu0
    %v3492 = vpop.f32.mrf.mxu0
    %v3493 = vpop.f32.mrf.mxu0
    %3494 = vdwg.mxu0
    %v3495 = vsel %vm365, %v3444, -inf
    %3496 = vmax.xlane.f32.xlu0 %v3495
    %v3497 = vpop.xlane.xlu0 %3496
    %v3498 = vsel %vm365, %v3490, -inf
    %3499 = vmax.xlane.f32.xlu0 %v3498
    %v3500 = vpop.xlane.xlu0 %3499
    %v3501 = vsub.f32 %v3444, %v3497
    %v3502 = vsub.f32 %v3490, %v3500
    %v3503 = vmul.f32 %v3501, 1.442695
    %v3504 = vpow.pop %v3503
    %v3505 = vmul.f32 %v3502, 1.442695
    %v3506 = vpow.pop %v3505
    %v3507 = vsel %vm365, %v3504, 0.0
    %3508 = vadd.xlane.f32.xlu0 %v3507
    %v3509 = vpop.xlane.xlu0 %3508
    %v3510 = vsel %vm365, %v3506, 0.0
    %3511 = vadd.xlane.f32.xlu0 %v3510
    %v3512 = vpop.xlane.xlu0 %3511
    %v3513 = vrcp.pop %v3509
    %v3514 = vmul.f32 %v3504, %v3513
    %v3515 = vrcp.pop %v3512
    %v3516 = vmul.f32 %v3506, %v3515
    %v3517 = vpack.c.bf16 %v3514, %v3514
    %v3518 = vpack.c.bf16 %v3516, %v3516
    %v3519 = vpack.c.bf16 %v3393, %v3393
    %v3520 = vpack.c.bf16 %v3396, %v3396
    %v3522 = vsel %vm365, %v3517, 0
    %v3525 = vsel %vm487, %v3519, 0
    %3527 = vmatprep.subr.bf16.mxu0 0
    %3528 = vmatpush1.bf16.msra.mxu0 0
    %3529 = vmatprep.subr.bf16.mxu0 0
    %3530 = vmatpush1.bf16.msra.mxu0 0
    %3531 = vmatprep.subr.bf16.mxu0 0
    %3532 = vmatpush1.bf16.msra.mxu0 0
    %3533 = vmatprep.subr.bf16.mxu0 0
    %3534 = vmatpush1.bf16.msra.mxu0 0
    %3535 = vmatprep.subr.bf16.mxu0 0
    %3536 = vmatpush1.bf16.msra.mxu0 0
    %3537 = vmatprep.subr.bf16.mxu0 0
    %3538 = vmatpush1.bf16.msra.mxu0 0
    %3539 = vmatprep.subr.bf16.mxu0 0
    %3540 = vmatpush1.bf16.msra.mxu0 0
    %3541 = vmatprep.subr.bf16.mxu0 0
    %3542 = vmatpush1.bf16.msra.mxu0 %v3525
    %3543 = vmatprep.subr.bf16.mxu0 0
    %3544 = vmatpush2.bf16.msra.mxu0 0
    %3545 = vmatprep.subr.bf16.mxu0 0
    %3546 = vmatpush2.bf16.msra.mxu0 0
    %3547 = vmatprep.subr.bf16.mxu0 0
    %3548 = vmatpush2.bf16.msra.mxu0 0
    %3549 = vmatprep.subr.bf16.mxu0 0
    %3550 = vmatpush2.bf16.msra.mxu0 0
    %3551 = vmatprep.subr.bf16.mxu0 0
    %3552 = vmatpush2.bf16.msra.mxu0 0
    %3553 = vmatprep.subr.bf16.mxu0 0
    %3554 = vmatpush2.bf16.msra.mxu0 0
    %3555 = vmatprep.subr.bf16.mxu0 0
    %3556 = vmatpush2.bf16.msra.mxu0 0
    %3557 = vmatprep.subr.bf16.mxu0 0
    %3558 = vmatpush2.bf16.msra.mxu0 0
    %3559 = vmatprep.mubr.bf16.mxu0 0
    %3560 = vmatmul.mubr.bf16.gmra.mxu0 %v3522
    %v3561 = vpop.f32.mrf.mxu0
    %v3562 = vadd.f32 0.0, %v3561
    %v3563 = vpop.f32.mrf.mxu0
    %v3564 = vpop.f32.mrf.mxu0
    %v3565 = vpop.f32.mrf.mxu0
    %3566 = vdwg.mxu0
    %v3568 = vsel %vm365, %v3518, 0
    %v3571 = vsel %vm487, %v3520, 0
    %3573 = vmatprep.subr.bf16.mxu0 0
    %3574 = vmatpush1.bf16.msra.mxu0 0
    %3575 = vmatprep.subr.bf16.mxu0 0
    %3576 = vmatpush1.bf16.msra.mxu0 0
    %3577 = vmatprep.subr.bf16.mxu0 0
    %3578 = vmatpush1.bf16.msra.mxu0 0
    %3579 = vmatprep.subr.bf16.mxu0 0
    %3580 = vmatpush1.bf16.msra.mxu0 0
    %3581 = vmatprep.subr.bf16.mxu0 0
    %3582 = vmatpush1.bf16.msra.mxu0 0
    %3583 = vmatprep.subr.bf16.mxu0 0
    %3584 = vmatpush1.bf16.msra.mxu0 0
    %3585 = vmatprep.subr.bf16.mxu0 0
    %3586 = vmatpush1.bf16.msra.mxu0 0
    %3587 = vmatprep.subr.bf16.mxu0 0
    %3588 = vmatpush1.bf16.msra.mxu0 %v3571
    %3589 = vmatprep.subr.bf16.mxu0 0
    %3590 = vmatpush2.bf16.msra.mxu0 0
    %3591 = vmatprep.subr.bf16.mxu0 0
    %3592 = vmatpush2.bf16.msra.mxu0 0
    %3593 = vmatprep.subr.bf16.mxu0 0
    %3594 = vmatpush2.bf16.msra.mxu0 0
    %3595 = vmatprep.subr.bf16.mxu0 0
    %3596 = vmatpush2.bf16.msra.mxu0 0
    %3597 = vmatprep.subr.bf16.mxu0 0
    %3598 = vmatpush2.bf16.msra.mxu0 0
    %3599 = vmatprep.subr.bf16.mxu0 0
    %3600 = vmatpush2.bf16.msra.mxu0 0
    %3601 = vmatprep.subr.bf16.mxu0 0
    %3602 = vmatpush2.bf16.msra.mxu0 0
    %3603 = vmatprep.subr.bf16.mxu0 0
    %3604 = vmatpush2.bf16.msra.mxu0 0
    %3605 = vmatprep.mubr.bf16.mxu0 0
    %3606 = vmatmul.mubr.bf16.gmra.mxu0 %v3568
    %v3607 = vpop.f32.mrf.mxu0
    %v3608 = vadd.f32 0.0, %v3607
    %v3609 = vpop.f32.mrf.mxu0
    %v3610 = vpop.f32.mrf.mxu0
    %v3611 = vpop.f32.mrf.mxu0
    %3612 = vdwg.mxu0
    %s3613 = scalar_lea.vmem %s10, 24
    %v3614 = vld [vmem:[%s3613] sm:$0xf]
    %v3615 = vpack.c.bf16 %v3608, %v3562
    %v3617 = vsel %vm365, %v3615, 0
    %v3620 = vsel %vm487, %v3614, 0
    %3622 = vmatprep.subr.bf16.mxu0 0
    %3623 = vmatpush1.bf16.msra.mxu0 0
    %3624 = vmatprep.subr.bf16.mxu0 0
    %3625 = vmatpush1.bf16.msra.mxu0 0
    %3626 = vmatprep.subr.bf16.mxu0 0
    %3627 = vmatpush1.bf16.msra.mxu0 0
    %3628 = vmatprep.subr.bf16.mxu0 0
    %3629 = vmatpush1.bf16.msra.mxu0 0
    %3630 = vmatprep.subr.bf16.mxu0 0
    %3631 = vmatpush1.bf16.msra.mxu0 0
    %3632 = vmatprep.subr.bf16.mxu0 0
    %3633 = vmatpush1.bf16.msra.mxu0 0
    %3634 = vmatprep.subr.bf16.mxu0 0
    %3635 = vmatpush1.bf16.msra.mxu0 0
    %3636 = vmatprep.subr.bf16.mxu0 0
    %3637 = vmatpush1.bf16.msra.mxu0 %v3620
    %3638 = vmatprep.subr.bf16.mxu0 0
    %3639 = vmatpush2.bf16.msra.mxu0 0
    %3640 = vmatprep.subr.bf16.mxu0 0
    %3641 = vmatpush2.bf16.msra.mxu0 0
    %3642 = vmatprep.subr.bf16.mxu0 0
    %3643 = vmatpush2.bf16.msra.mxu0 0
    %3644 = vmatprep.subr.bf16.mxu0 0
    %3645 = vmatpush2.bf16.msra.mxu0 0
    %3646 = vmatprep.subr.bf16.mxu0 0
    %3647 = vmatpush2.bf16.msra.mxu0 0
    %3648 = vmatprep.subr.bf16.mxu0 0
    %3649 = vmatpush2.bf16.msra.mxu0 0
    %3650 = vmatprep.subr.bf16.mxu0 0
    %3651 = vmatpush2.bf16.msra.mxu0 0
    %3652 = vmatprep.subr.bf16.mxu0 0
    %3653 = vmatpush2.bf16.msra.mxu0 0
    %3654 = vmatprep.mubr.bf16.mxu0 0
    %3655 = vmatmul.mubr.bf16.gmra.mxu0 %v3617
    %v3656 = vpop.f32.mrf.mxu0
    %v3657 = vadd.f32 0.0, %v3656
    %v3658 = vpop.f32.mrf.mxu0
    %v3659 = vpop.f32.mrf.mxu0
    %v3660 = vadd.f32 0.0, %v3659
    %v3661 = vpop.f32.mrf.mxu0
    %3662 = vdwg.mxu0
    %v3663 = vadd.f32 %v3195, %v3657
    %v3664 = vadd.f32 %v3198, %v3660
    %s3665 = scalar_lea.vmem %s4, 112
    %v3666 = vld [vmem:[%s3665] sm:$0xf]
    %v3667 = vld [vmem:[%s3665 + $0x4] sm:$0xf]
    %v3668 = vld [vmem:[%s3665 + $0x8] sm:$0xf]
    %v3669 = vld [vmem:[%s3665 + $0xc] sm:$0xf]
    %s3670 = scalar_lea.vmem %s5, 7
    %v3671 = vld [vmem:[%s3670] sm:$0x1]
    %v3673 = vlaneseq
    %v3674 = vshrl.u32 %v3673, 7
    %v3675 = vsub.s32 0, %v3674
    %v3676 = vrot.slane %v3671, %v3675
    %v3682 = vunpack.c.l.b16 %v3666
    %v3683 = vunpack.c.l.b16 %v3667
    %v3684 = vunpack.c.l.b16 %v3668
    %v3685 = vunpack.c.l.b16 %v3669
    %v3686 = vpack.c.b16 %v3683, %v3682
    %v3687 = vpack.c.b16 %v3685, %v3684
    %3690 = vmatprep.subr.bf16.mxu0 0
    %3691 = vmatpush1.bf16.msra.mxu0 0
    %3692 = vmatprep.subr.bf16.mxu0 0
    %3693 = vmatpush1.bf16.msra.mxu0 0
    %3694 = vmatprep.subr.bf16.mxu0 0
    %3695 = vmatpush1.bf16.msra.mxu0 0
    %3696 = vmatprep.subr.bf16.mxu0 0
    %3697 = vmatpush1.bf16.msra.mxu0 0
    %3698 = vmatprep.subr.bf16.mxu0 0
    %3699 = vmatpush1.bf16.msra.mxu0 0
    %3700 = vmatprep.subr.bf16.mxu0 0
    %3701 = vmatpush1.bf16.msra.mxu0 0
    %3702 = vmatprep.subr.bf16.mxu0 0
    %3703 = vmatpush1.bf16.msra.mxu0 %v3687
    %3704 = vmatprep.subr.bf16.mxu0 0
    %3705 = vmatpush1.bf16.msra.mxu0 %v3686
    %3706 = vmatprep.subr.bf16.mxu0 0
    %3707 = vmatpush2.bf16.msra.mxu0 0
    %3708 = vmatprep.subr.bf16.mxu0 0
    %3709 = vmatpush2.bf16.msra.mxu0 0
    %3710 = vmatprep.subr.bf16.mxu0 0
    %3711 = vmatpush2.bf16.msra.mxu0 0
    %3712 = vmatprep.subr.bf16.mxu0 0
    %3713 = vmatpush2.bf16.msra.mxu0 0
    %3714 = vmatprep.subr.bf16.mxu0 0
    %3715 = vmatpush2.bf16.msra.mxu0 0
    %3716 = vmatprep.subr.bf16.mxu0 0
    %3717 = vmatpush2.bf16.msra.mxu0 0
    %3718 = vmatprep.subr.bf16.mxu0 0
    %3719 = vmatpush2.bf16.msra.mxu0 0
    %3720 = vmatprep.subr.bf16.mxu0 0
    %3721 = vmatpush2.bf16.msra.mxu0 0
    %3722 = vmatprep.mubr.bf16.mxu0 0
    %3723 = vmatmul.mubr.bf16.gmra.mxu0 %v2300
    %v3724 = vpop.f32.mrf.mxu0
    %v3725 = vadd.f32 %v3676, %v3724
    %v3726 = vpop.f32.mrf.mxu0
    %v3727 = vpop.f32.mrf.mxu0
    %v3728 = vadd.f32 %v3676, %v3727
    %v3729 = vpop.f32.mrf.mxu0
    %3730 = vdwg.mxu0
    %s3731 = scalar_lea.vmem %s6, 112
    %v3732 = vld [vmem:[%s3731] sm:$0xf]
    %v3733 = vld [vmem:[%s3731 + $0x4] sm:$0xf]
    %v3734 = vld [vmem:[%s3731 + $0x8] sm:$0xf]
    %v3735 = vld [vmem:[%s3731 + $0xc] sm:$0xf]
    %s3736 = scalar_lea.vmem %s7, 7
    %v3737 = vld [vmem:[%s3736] sm:$0x1]
    %v3739 = vlaneseq
    %v3740 = vshrl.u32 %v3739, 7
    %v3741 = vsub.s32 0, %v3740
    %v3742 = vrot.slane %v3737, %v3741
    %v3748 = vunpack.c.l.b16 %v3732
    %v3749 = vunpack.c.l.b16 %v3733
    %v3750 = vunpack.c.l.b16 %v3734
    %v3751 = vunpack.c.l.b16 %v3735
    %v3752 = vpack.c.b16 %v3749, %v3748
    %v3753 = vpack.c.b16 %v3751, %v3750
    %3756 = vmatprep.subr.bf16.mxu0 0
    %3757 = vmatpush1.bf16.msra.mxu0 0
    %3758 = vmatprep.subr.bf16.mxu0 0
    %3759 = vmatpush1.bf16.msra.mxu0 0
    %3760 = vmatprep.subr.bf16.mxu0 0
    %3761 = vmatpush1.bf16.msra.mxu0 0
    %3762 = vmatprep.subr.bf16.mxu0 0
    %3763 = vmatpush1.bf16.msra.mxu0 0
    %3764 = vmatprep.subr.bf16.mxu0 0
    %3765 = vmatpush1.bf16.msra.mxu0 0
    %3766 = vmatprep.subr.bf16.mxu0 0
    %3767 = vmatpush1.bf16.msra.mxu0 0
    %3768 = vmatprep.subr.bf16.mxu0 0
    %3769 = vmatpush1.bf16.msra.mxu0 %v3753
    %3770 = vmatprep.subr.bf16.mxu0 0
    %3771 = vmatpush1.bf16.msra.mxu0 %v3752
    %3772 = vmatprep.subr.bf16.mxu0 0
    %3773 = vmatpush2.bf16.msra.mxu0 0
    %3774 = vmatprep.subr.bf16.mxu0 0
    %3775 = vmatpush2.bf16.msra.mxu0 0
    %3776 = vmatprep.subr.bf16.mxu0 0
    %3777 = vmatpush2.bf16.msra.mxu0 0
    %3778 = vmatprep.subr.bf16.mxu0 0
    %3779 = vmatpush2.bf16.msra.mxu0 0
    %3780 = vmatprep.subr.bf16.mxu0 0
    %3781 = vmatpush2.bf16.msra.mxu0 0
    %3782 = vmatprep.subr.bf16.mxu0 0
    %3783 = vmatpush2.bf16.msra.mxu0 0
    %3784 = vmatprep.subr.bf16.mxu0 0
    %3785 = vmatpush2.bf16.msra.mxu0 0
    %3786 = vmatprep.subr.bf16.mxu0 0
    %3787 = vmatpush2.bf16.msra.mxu0 0
    %3788 = vmatprep.mubr.bf16.mxu0 0
    %3789 = vmatmul.mubr.bf16.gmra.mxu0 %v2300
    %v3790 = vpop.f32.mrf.mxu0
    %v3791 = vadd.f32 %v3742, %v3790
    %v3792 = vpop.f32.mrf.mxu0
    %v3793 = vpop.f32.mrf.mxu0
    %v3794 = vadd.f32 %v3742, %v3793
    %v3795 = vpop.f32.mrf.mxu0
    %3796 = vdwg.mxu0
    %s3797 = scalar_lea.vmem %s8, 112
    %v3798 = vld [vmem:[%s3797] sm:$0xf]
    %v3799 = vld [vmem:[%s3797 + $0x4] sm:$0xf]
    %v3800 = vld [vmem:[%s3797 + $0x8] sm:$0xf]
    %v3801 = vld [vmem:[%s3797 + $0xc] sm:$0xf]
    %s3802 = scalar_lea.vmem %s9, 7
    %v3803 = vld [vmem:[%s3802] sm:$0x1]
    %v3805 = vlaneseq
    %v3806 = vshrl.u32 %v3805, 7
    %v3807 = vsub.s32 0, %v3806
    %v3808 = vrot.slane %v3803, %v3807
    %v3814 = vunpack.c.l.b16 %v3798
    %v3815 = vunpack.c.l.b16 %v3799
    %v3816 = vunpack.c.l.b16 %v3800
    %v3817 = vunpack.c.l.b16 %v3801
    %v3818 = vpack.c.b16 %v3815, %v3814
    %v3819 = vpack.c.b16 %v3817, %v3816
    %3822 = vmatprep.subr.bf16.mxu0 0
    %3823 = vmatpush1.bf16.msra.mxu0 0
    %3824 = vmatprep.subr.bf16.mxu0 0
    %3825 = vmatpush1.bf16.msra.mxu0 0
    %3826 = vmatprep.subr.bf16.mxu0 0
    %3827 = vmatpush1.bf16.msra.mxu0 0
    %3828 = vmatprep.subr.bf16.mxu0 0
    %3829 = vmatpush1.bf16.msra.mxu0 0
    %3830 = vmatprep.subr.bf16.mxu0 0
    %3831 = vmatpush1.bf16.msra.mxu0 0
    %3832 = vmatprep.subr.bf16.mxu0 0
    %3833 = vmatpush1.bf16.msra.mxu0 0
    %3834 = vmatprep.subr.bf16.mxu0 0
    %3835 = vmatpush1.bf16.msra.mxu0 %v3819
    %3836 = vmatprep.subr.bf16.mxu0 0
    %3837 = vmatpush1.bf16.msra.mxu0 %v3818
    %3838 = vmatprep.subr.bf16.mxu0 0
    %3839 = vmatpush2.bf16.msra.mxu0 0
    %3840 = vmatprep.subr.bf16.mxu0 0
    %3841 = vmatpush2.bf16.msra.mxu0 0
    %3842 = vmatprep.subr.bf16.mxu0 0
    %3843 = vmatpush2.bf16.msra.mxu0 0
    %3844 = vmatprep.subr.bf16.mxu0 0
    %3845 = vmatpush2.bf16.msra.mxu0 0
    %3846 = vmatprep.subr.bf16.mxu0 0
    %3847 = vmatpush2.bf16.msra.mxu0 0
    %3848 = vmatprep.subr.bf16.mxu0 0
    %3849 = vmatpush2.bf16.msra.mxu0 0
    %3850 = vmatprep.subr.bf16.mxu0 0
    %3851 = vmatpush2.bf16.msra.mxu0 0
    %3852 = vmatprep.subr.bf16.mxu0 0
    %3853 = vmatpush2.bf16.msra.mxu0 0
    %3854 = vmatprep.mubr.bf16.mxu0 0
    %3855 = vmatmul.mubr.bf16.gmra.mxu0 %v2300
    %v3856 = vpop.f32.mrf.mxu0
    %v3857 = vadd.f32 %v3808, %v3856
    %v3858 = vpop.f32.mrf.mxu0
    %v3859 = vpop.f32.mrf.mxu0
    %v3860 = vadd.f32 %v3808, %v3859
    %v3861 = vpop.f32.mrf.mxu0
    %3862 = vdwg.mxu0
    %v3863 = vpack.c.bf16 %v3725, %v3725
    %v3864 = vpack.c.bf16 %v3728, %v3728
    %v3865 = vpack.c.bf16 %v3791, %v3791
    %v3866 = vpack.c.bf16 %v3794, %v3794
    %v3868 = vsel %vm365, %v3863, 0
    %v3871 = vsel %vm365, %v3865, 0
    %3873 = vmatprep.subr.bf16.mxu0 0
    %3874 = vmatpush1.bf16.xpose.msra.mxu0 0
    %3875 = vmatprep.subr.bf16.mxu0 0
    %3876 = vmatpush1.bf16.xpose.msra.mxu0 0
    %3877 = vmatprep.subr.bf16.mxu0 0
    %3878 = vmatpush1.bf16.xpose.msra.mxu0 0
    %3879 = vmatprep.subr.bf16.mxu0 0
    %3880 = vmatpush1.bf16.xpose.msra.mxu0 0
    %3881 = vmatprep.subr.bf16.mxu0 0
    %3882 = vmatpush1.bf16.xpose.msra.mxu0 0
    %3883 = vmatprep.subr.bf16.mxu0 0
    %3884 = vmatpush1.bf16.xpose.msra.mxu0 0
    %3885 = vmatprep.subr.bf16.mxu0 0
    %3886 = vmatpush1.bf16.xpose.msra.mxu0 0
    %3887 = vmatprep.subr.bf16.mxu0 0
    %3888 = vmatpush1.bf16.xpose.msra.mxu0 %v3871
    %3889 = vmatprep.subr.bf16.mxu0 0
    %3890 = vmatpush2.bf16.xpose.msra.mxu0 0
    %3891 = vmatprep.subr.bf16.mxu0 0
    %3892 = vmatpush2.bf16.xpose.msra.mxu0 0
    %3893 = vmatprep.subr.bf16.mxu0 0
    %3894 = vmatpush2.bf16.xpose.msra.mxu0 0
    %3895 = vmatprep.subr.bf16.mxu0 0
    %3896 = vmatpush2.bf16.xpose.msra.mxu0 0
    %3897 = vmatprep.subr.bf16.mxu0 0
    %3898 = vmatpush2.bf16.xpose.msra.mxu0 0
    %3899 = vmatprep.subr.bf16.mxu0 0
    %3900 = vmatpush2.bf16.xpose.msra.mxu0 0
    %3901 = vmatprep.subr.bf16.mxu0 0
    %3902 = vmatpush2.bf16.xpose.msra.mxu0 0
    %3903 = vmatprep.subr.bf16.mxu0 0
    %3904 = vmatpush2.bf16.xpose.msra.mxu0 0
    %3905 = vmatprep.mubr.bf16.mxu0 0
    %3906 = vmatmul.mubr.bf16.gmra.mxu0 %v3868
    %v3907 = vpop.f32.mrf.mxu0
    %v3908 = vadd.f32 0.0, %v3907
    %v3909 = vpop.f32.mrf.mxu0
    %v3910 = vpop.f32.mrf.mxu0
    %v3911 = vpop.f32.mrf.mxu0
    %3912 = vdwg.mxu0
    %v3914 = vsel %vm365, %v3864, 0
    %v3917 = vsel %vm365, %v3866, 0
    %3919 = vmatprep.subr.bf16.mxu0 0
    %3920 = vmatpush1.bf16.xpose.msra.mxu0 0
    %3921 = vmatprep.subr.bf16.mxu0 0
    %3922 = vmatpush1.bf16.xpose.msra.mxu0 0
    %3923 = vmatprep.subr.bf16.mxu0 0
    %3924 = vmatpush1.bf16.xpose.msra.mxu0 0
    %3925 = vmatprep.subr.bf16.mxu0 0
    %3926 = vmatpush1.bf16.xpose.msra.mxu0 0
    %3927 = vmatprep.subr.bf16.mxu0 0
    %3928 = vmatpush1.bf16.xpose.msra.mxu0 0
    %3929 = vmatprep.subr.bf16.mxu0 0
    %3930 = vmatpush1.bf16.xpose.msra.mxu0 0
    %3931 = vmatprep.subr.bf16.mxu0 0
    %3932 = vmatpush1.bf16.xpose.msra.mxu0 0
    %3933 = vmatprep.subr.bf16.mxu0 0
    %3934 = vmatpush1.bf16.xpose.msra.mxu0 %v3917
    %3935 = vmatprep.subr.bf16.mxu0 0
    %3936 = vmatpush2.bf16.xpose.msra.mxu0 0
    %3937 = vmatprep.subr.bf16.mxu0 0
    %3938 = vmatpush2.bf16.xpose.msra.mxu0 0
    %3939 = vmatprep.subr.bf16.mxu0 0
    %3940 = vmatpush2.bf16.xpose.msra.mxu0 0
    %3941 = vmatprep.subr.bf16.mxu0 0
    %3942 = vmatpush2.bf16.xpose.msra.mxu0 0
    %3943 = vmatprep.subr.bf16.mxu0 0
    %3944 = vmatpush2.bf16.xpose.msra.mxu0 0
    %3945 = vmatprep.subr.bf16.mxu0 0
    %3946 = vmatpush2.bf16.xpose.msra.mxu0 0
    %3947 = vmatprep.subr.bf16.mxu0 0
    %3948 = vmatpush2.bf16.xpose.msra.mxu0 0
    %3949 = vmatprep.subr.bf16.mxu0 0
    %3950 = vmatpush2.bf16.xpose.msra.mxu0 0
    %3951 = vmatprep.mubr.bf16.mxu0 0
    %3952 = vmatmul.mubr.bf16.gmra.mxu0 %v3914
    %v3953 = vpop.f32.mrf.mxu0
    %v3954 = vadd.f32 0.0, %v3953
    %v3955 = vpop.f32.mrf.mxu0
    %v3956 = vpop.f32.mrf.mxu0
    %v3957 = vpop.f32.mrf.mxu0
    %3958 = vdwg.mxu0
    %v3959 = vsel %vm365, %v3908, -inf
    %3960 = vmax.xlane.f32.xlu0 %v3959
    %v3961 = vpop.xlane.xlu0 %3960
    %v3962 = vsel %vm365, %v3954, -inf
    %3963 = vmax.xlane.f32.xlu0 %v3962
    %v3964 = vpop.xlane.xlu0 %3963
    %v3965 = vsub.f32 %v3908, %v3961
    %v3966 = vsub.f32 %v3954, %v3964
    %v3967 = vmul.f32 %v3965, 1.442695
    %v3968 = vpow.pop %v3967
    %v3969 = vmul.f32 %v3966, 1.442695
    %v3970 = vpow.pop %v3969
    %v3971 = vsel %vm365, %v3968, 0.0
    %3972 = vadd.xlane.f32.xlu0 %v3971
    %v3973 = vpop.xlane.xlu0 %3972
    %v3974 = vsel %vm365, %v3970, 0.0
    %3975 = vadd.xlane.f32.xlu0 %v3974
    %v3976 = vpop.xlane.xlu0 %3975
    %v3977 = vrcp.pop %v3973
    %v3978 = vmul.f32 %v3968, %v3977
    %v3979 = vrcp.pop %v3976
    %v3980 = vmul.f32 %v3970, %v3979
    %v3981 = vpack.c.bf16 %v3978, %v3978
    %v3982 = vpack.c.bf16 %v3980, %v3980
    %v3983 = vpack.c.bf16 %v3857, %v3857
    %v3984 = vpack.c.bf16 %v3860, %v3860
    %v3986 = vsel %vm365, %v3981, 0
    %v3989 = vsel %vm487, %v3983, 0
    %3991 = vmatprep.subr.bf16.mxu0 0
    %3992 = vmatpush1.bf16.msra.mxu0 0
    %3993 = vmatprep.subr.bf16.mxu0 0
    %3994 = vmatpush1.bf16.msra.mxu0 0
    %3995 = vmatprep.subr.bf16.mxu0 0
    %3996 = vmatpush1.bf16.msra.mxu0 0
    %3997 = vmatprep.subr.bf16.mxu0 0
    %3998 = vmatpush1.bf16.msra.mxu0 0
    %3999 = vmatprep.subr.bf16.mxu0 0
    %4000 = vmatpush1.bf16.msra.mxu0 0
    %4001 = vmatprep.subr.bf16.mxu0 0
    %4002 = vmatpush1.bf16.msra.mxu0 0
    %4003 = vmatprep.subr.bf16.mxu0 0
    %4004 = vmatpush1.bf16.msra.mxu0 0
    %4005 = vmatprep.subr.bf16.mxu0 0
    %4006 = vmatpush1.bf16.msra.mxu0 %v3989
    %4007 = vmatprep.subr.bf16.mxu0 0
    %4008 = vmatpush2.bf16.msra.mxu0 0
    %4009 = vmatprep.subr.bf16.mxu0 0
    %4010 = vmatpush2.bf16.msra.mxu0 0
    %4011 = vmatprep.subr.bf16.mxu0 0
    %4012 = vmatpush2.bf16.msra.mxu0 0
    %4013 = vmatprep.subr.bf16.mxu0 0
    %4014 = vmatpush2.bf16.msra.mxu0 0
    %4015 = vmatprep.subr.bf16.mxu0 0
    %4016 = vmatpush2.bf16.msra.mxu0 0
    %4017 = vmatprep.subr.bf16.mxu0 0
    %4018 = vmatpush2.bf16.msra.mxu0 0
    %4019 = vmatprep.subr.bf16.mxu0 0
    %4020 = vmatpush2.bf16.msra.mxu0 0
    %4021 = vmatprep.subr.bf16.mxu0 0
    %4022 = vmatpush2.bf16.msra.mxu0 0
    %4023 = vmatprep.mubr.bf16.mxu0 0
    %4024 = vmatmul.mubr.bf16.gmra.mxu0 %v3986
    %v4025 = vpop.f32.mrf.mxu0
    %v4026 = vadd.f32 0.0, %v4025
    %v4027 = vpop.f32.mrf.mxu0
    %v4028 = vpop.f32.mrf.mxu0
    %v4029 = vpop.f32.mrf.mxu0
    %4030 = vdwg.mxu0
    %v4032 = vsel %vm365, %v3982, 0
    %v4035 = vsel %vm487, %v3984, 0
    %4037 = vmatprep.subr.bf16.mxu0 0
    %4038 = vmatpush1.bf16.msra.mxu0 0
    %4039 = vmatprep.subr.bf16.mxu0 0
    %4040 = vmatpush1.bf16.msra.mxu0 0
    %4041 = vmatprep.subr.bf16.mxu0 0
    %4042 = vmatpush1.bf16.msra.mxu0 0
    %4043 = vmatprep.subr.bf16.mxu0 0
    %4044 = vmatpush1.bf16.msra.mxu0 0
    %4045 = vmatprep.subr.bf16.mxu0 0
    %4046 = vmatpush1.bf16.msra.mxu0 0
    %4047 = vmatprep.subr.bf16.mxu0 0
    %4048 = vmatpush1.bf16.msra.mxu0 0
    %4049 = vmatprep.subr.bf16.mxu0 0
    %4050 = vmatpush1.bf16.msra.mxu0 0
    %4051 = vmatprep.subr.bf16.mxu0 0
    %4052 = vmatpush1.bf16.msra.mxu0 %v4035
    %4053 = vmatprep.subr.bf16.mxu0 0
    %4054 = vmatpush2.bf16.msra.mxu0 0
    %4055 = vmatprep.subr.bf16.mxu0 0
    %4056 = vmatpush2.bf16.msra.mxu0 0
    %4057 = vmatprep.subr.bf16.mxu0 0
    %4058 = vmatpush2.bf16.msra.mxu0 0
    %4059 = vmatprep.subr.bf16.mxu0 0
    %4060 = vmatpush2.bf16.msra.mxu0 0
    %4061 = vmatprep.subr.bf16.mxu0 0
    %4062 = vmatpush2.bf16.msra.mxu0 0
    %4063 = vmatprep.subr.bf16.mxu0 0
    %4064 = vmatpush2.bf16.msra.mxu0 0
    %4065 = vmatprep.subr.bf16.mxu0 0
    %4066 = vmatpush2.bf16.msra.mxu0 0
    %4067 = vmatprep.subr.bf16.mxu0 0
    %4068 = vmatpush2.bf16.msra.mxu0 0
    %4069 = vmatprep.mubr.bf16.mxu0 0
    %4070 = vmatmul.mubr.bf16.gmra.mxu0 %v4032
    %v4071 = vpop.f32.mrf.mxu0
    %v4072 = vadd.f32 0.0, %v4071
    %v4073 = vpop.f32.mrf.mxu0
    %v4074 = vpop.f32.mrf.mxu0
    %v4075 = vpop.f32.mrf.mxu0
    %4076 = vdwg.mxu0
    %s4077 = scalar_lea.vmem %s10, 28
    %v4078 = vld [vmem:[%s4077] sm:$0xf]
    %v4079 = vpack.c.bf16 %v4072, %v4026
    %v4081 = vsel %vm365, %v4079, 0
    %v4084 = vsel %vm487, %v4078, 0
    %4086 = vmatprep.subr.bf16.mxu0 0
    %4087 = vmatpush1.bf16.msra.mxu0 0
    %4088 = vmatprep.subr.bf16.mxu0 0
    %4089 = vmatpush1.bf16.msra.mxu0 0
    %4090 = vmatprep.subr.bf16.mxu0 0
    %4091 = vmatpush1.bf16.msra.mxu0 0
    %4092 = vmatprep.subr.bf16.mxu0 0
    %4093 = vmatpush1.bf16.msra.mxu0 0
    %4094 = vmatprep.subr.bf16.mxu0 0
    %4095 = vmatpush1.bf16.msra.mxu0 0
    %4096 = vmatprep.subr.bf16.mxu0 0
    %4097 = vmatpush1.bf16.msra.mxu0 0
    %4098 = vmatprep.subr.bf16.mxu0 0
    %4099 = vmatpush1.bf16.msra.mxu0 0
    %4100 = vmatprep.subr.bf16.mxu0 0
    %4101 = vmatpush1.bf16.msra.mxu0 %v4084
    %4102 = vmatprep.subr.bf16.mxu0 0
    %4103 = vmatpush2.bf16.msra.mxu0 0
    %4104 = vmatprep.subr.bf16.mxu0 0
    %4105 = vmatpush2.bf16.msra.mxu0 0
    %4106 = vmatprep.subr.bf16.mxu0 0
    %4107 = vmatpush2.bf16.msra.mxu0 0
    %4108 = vmatprep.subr.bf16.mxu0 0
    %4109 = vmatpush2.bf16.msra.mxu0 0
    %4110 = vmatprep.subr.bf16.mxu0 0
    %4111 = vmatpush2.bf16.msra.mxu0 0
    %4112 = vmatprep.subr.bf16.mxu0 0
    %4113 = vmatpush2.bf16.msra.mxu0 0
    %4114 = vmatprep.subr.bf16.mxu0 0
    %4115 = vmatpush2.bf16.msra.mxu0 0
    %4116 = vmatprep.subr.bf16.mxu0 0
    %4117 = vmatpush2.bf16.msra.mxu0 0
    %4118 = vmatprep.mubr.bf16.mxu0 0
    %4119 = vmatmul.mubr.bf16.gmra.mxu0 %v4081
    %v4120 = vpop.f32.mrf.mxu0
    %v4121 = vadd.f32 0.0, %v4120
    %v4122 = vpop.f32.mrf.mxu0
    %v4123 = vpop.f32.mrf.mxu0
    %v4124 = vadd.f32 0.0, %v4123
    %v4125 = vpop.f32.mrf.mxu0
    %4126 = vdwg.mxu0
    %v4127 = vadd.f32 %v3663, %v4121
    %v4128 = vadd.f32 %v3664, %v4124
    %s4129 = scalar_lea.vmem %s11, 1
    %v4130 = vld [vmem:[%s4129] sm:$0x1]
    %v4132 = vlaneseq
    %v4133 = vshrl.u32 %v4132, 7
    %v4134 = vsub.s32 0, %v4133
    %v4135 = vrot.slane %v4130, %v4134
    %v4137 = vadd.f32 %v4127, %v4135
    %v4138 = vadd.f32 %v4128, %v4135
    %v4139 = vadd.f32 %v2271, %v4137
    %v4140 = vadd.f32 %v2272, %v4138
    %s4141 = scalar_lea.vmem %s12, 1
    %v4142 = vld [vmem:[%s4141] sm:$0x1]
    %s4143 = scalar_lea.vmem %s13, 1
    %v4144 = vld [vmem:[%s4143] sm:$0x1]
    %v4145 = vsel %vm188, %v4139, 0.0
    %4146 = vadd.xlane.f32.xlu0 %v4145
    %v4147 = vpop.xlane.xlu0 %4146
    %v4148 = vsel %vm188, %v4140, 0.0
    %4149 = vadd.xlane.f32.xlu0 %v4148
    %v4150 = vpop.xlane.xlu0 %4149
    %v4151 = vmul.f32 %v4147, %v2035
    %v4152 = vmul.f32 %v4150, %v2035
    %v4153 = vsub.f32 %v4139, %v4151
    %v4154 = vsub.f32 %v4140, %v4152
    %v4155 = vmul.f32 %v4153, %v4153
    %v4156 = vmul.f32 %v4154, %v4154
    %v4157 = vsel %vm188, %v4155, 0.0
    %4158 = vadd.xlane.f32.xlu0 %v4157
    %v4159 = vpop.xlane.xlu0 %4158
    %v4160 = vsel %vm188, %v4156, 0.0
    %4161 = vadd.xlane.f32.xlu0 %v4160
    %v4162 = vpop.xlane.xlu0 %4161
    %v4163 = vmul.f32 %v4159, %v2035
    %v4164 = vmul.f32 %v4162, %v2035
    %v4165 = vadd.f32 %v4163, 1e-05
    %v4166 = vadd.f32 %v4164, 1e-05
    %v4167 = vrsqrt.pop %v4165
    %v4168 = vrsqrt.pop %v4166
    %v4169 = vmul.f32 %v4153, %v4167
    %v4170 = vmul.f32 %v4154, %v4168
    %v4172 = vlaneseq
    %v4173 = vshrl.u32 %v4172, 7
    %v4174 = vsub.s32 0, %v4173
    %v4175 = vrot.slane %v4142, %v4174
    %v4177 = vmul.f32 %v4169, %v4175
    %v4178 = vmul.f32 %v4170, %v4175
    %v4180 = vlaneseq
    %v4181 = vshrl.u32 %v4180, 7
    %v4182 = vsub.s32 0, %v4181
    %v4183 = vrot.slane %v4144, %v4182
    %v4185 = vadd.f32 %v4177, %v4183
    %v4186 = vadd.f32 %v4178, %v4183
    %s4187 = scalar_lea.vmem %s14, 16
    %v4188 = vld [vmem:[%s4187] sm:$0xf]
    %v4189 = vld [vmem:[%s4187 + $0x4] sm:$0xf]
    %v4190 = vld [vmem:[%s4187 + $0x8] sm:$0xf]
    %v4191 = vld [vmem:[%s4187 + $0xc] sm:$0xf]
    %v4192 = vpack.c.bf16 %v4186, %v4185
    %s4193 = scalar_lea.vmem %s15, 1
    %v4194 = vld [vmem:[%s4193] sm:$0x1]
    %v4196 = vlaneseq
    %v4197 = vshrl.u32 %v4196, 7
    %v4198 = vsub.s32 0, %v4197
    %v4199 = vrot.slane %v4194, %v4198
    %v4205 = vunpack.c.l.b16 %v4188
    %v4206 = vunpack.c.l.b16 %v4189
    %v4207 = vunpack.c.l.b16 %v4190
    %v4208 = vunpack.c.l.b16 %v4191
    %v4209 = vpack.c.b16 %v4206, %v4205
    %v4210 = vpack.c.b16 %v4208, %v4207
    %v4214 = vsel %vm188, %v4192, 0
    %4216 = vmatprep.subr.bf16.mxu0 0
    %4217 = vmatpush1.bf16.msra.mxu0 0
    %4218 = vmatprep.subr.bf16.mxu0 0
    %4219 = vmatpush1.bf16.msra.mxu0 0
    %4220 = vmatprep.subr.bf16.mxu0 0
    %4221 = vmatpush1.bf16.msra.mxu0 0
    %4222 = vmatprep.subr.bf16.mxu0 0
    %4223 = vmatpush1.bf16.msra.mxu0 0
    %4224 = vmatprep.subr.bf16.mxu0 0
    %4225 = vmatpush1.bf16.msra.mxu0 0
    %4226 = vmatprep.subr.bf16.mxu0 0
    %4227 = vmatpush1.bf16.msra.mxu0 0
    %4228 = vmatprep.subr.bf16.mxu0 0
    %4229 = vmatpush1.bf16.msra.mxu0 %v4210
    %4230 = vmatprep.subr.bf16.mxu0 0
    %4231 = vmatpush1.bf16.msra.mxu0 %v4209
    %4232 = vmatprep.subr.bf16.mxu0 0
    %4233 = vmatpush2.bf16.msra.mxu0 0
    %4234 = vmatprep.subr.bf16.mxu0 0
    %4235 = vmatpush2.bf16.msra.mxu0 0
    %4236 = vmatprep.subr.bf16.mxu0 0
    %4237 = vmatpush2.bf16.msra.mxu0 0
    %4238 = vmatprep.subr.bf16.mxu0 0
    %4239 = vmatpush2.bf16.msra.mxu0 0
    %4240 = vmatprep.subr.bf16.mxu0 0
    %4241 = vmatpush2.bf16.msra.mxu0 0
    %4242 = vmatprep.subr.bf16.mxu0 0
    %4243 = vmatpush2.bf16.msra.mxu0 0
    %4244 = vmatprep.subr.bf16.mxu0 0
    %4245 = vmatpush2.bf16.msra.mxu0 0
    %4246 = vmatprep.subr.bf16.mxu0 0
    %4247 = vmatpush2.bf16.msra.mxu0 0
    %4248 = vmatprep.mubr.bf16.mxu0 0
    %4249 = vmatmul.mubr.bf16.gmra.mxu0 %v4214
    %v4250 = vpop.f32.mrf.mxu0
    %v4251 = vadd.f32 %v4199, %v4250
    %v4252 = vpop.f32.mrf.mxu0
    %v4253 = vpop.f32.mrf.mxu0
    %v4254 = vadd.f32 %v4199, %v4253
    %v4255 = vpop.f32.mrf.mxu0
    %4256 = vdwg.mxu0
    %v4257 = vmax.f32 %v4251, 0.0
    %v4258 = vmax.f32 %v4254, 0.0
    %s4259 = scalar_lea.vmem %s16, 32
    %v4260 = vld [vmem:[%s4259] sm:$0xf]
    %v4261 = vld [vmem:[%s4259 + $0x4] sm:$0xf]
    %v4262 = vld [vmem:[%s4259 + $0x8] sm:$0xf]
    %v4263 = vld [vmem:[%s4259 + $0xc] sm:$0xf]
    %v4264 = vld [vmem:[%s4259 + $0x10] sm:$0xf]
    %v4265 = vld [vmem:[%s4259 + $0x14] sm:$0xf]
    %v4266 = vld [vmem:[%s4259 + $0x18] sm:$0xf]
    %v4267 = vld [vmem:[%s4259 + $0x1c] sm:$0xf]
    %v4268 = vpack.c.bf16 %v4258, %v4257
    %s4269 = scalar_lea.vmem %s17, 1
    %v4270 = vld [vmem:[%s4269] sm:$0x1]
    %v4272 = vlaneseq
    %v4273 = vshrl.u32 %v4272, 7
    %v4274 = vsub.s32 0, %v4273
    %v4275 = vrot.slane %v4270, %v4274
    %v4285 = vunpack.c.l.b16 %v4260
    %v4286 = vunpack.c.l.b16 %v4261
    %v4287 = vunpack.c.l.b16 %v4262
    %v4288 = vunpack.c.l.b16 %v4263
    %v4289 = vunpack.c.l.b16 %v4264
    %v4290 = vunpack.c.l.b16 %v4265
    %v4291 = vunpack.c.l.b16 %v4266
    %v4292 = vunpack.c.l.b16 %v4267
    %v4293 = vpack.c.b16 %v4286, %v4285
    %v4294 = vpack.c.b16 %v4288, %v4287
    %v4295 = vpack.c.b16 %v4290, %v4289
    %v4296 = vpack.c.b16 %v4292, %v4291
    %v4302 = vsel %vm2182, %v4268, 0
    %4304 = vmatprep.subr.bf16.mxu0 0
    %4305 = vmatpush1.bf16.msra.mxu0 0
    %4306 = vmatprep.subr.bf16.mxu0 0
    %4307 = vmatpush1.bf16.msra.mxu0 0
    %4308 = vmatprep.subr.bf16.mxu0 0
    %4309 = vmatpush1.bf16.msra.mxu0 0
    %4310 = vmatprep.subr.bf16.mxu0 0
    %4311 = vmatpush1.bf16.msra.mxu0 0
    %4312 = vmatprep.subr.bf16.mxu0 0
    %4313 = vmatpush1.bf16.msra.mxu0 %v4296
    %4314 = vmatprep.subr.bf16.mxu0 0
    %4315 = vmatpush1.bf16.msra.mxu0 %v4295
    %4316 = vmatprep.subr.bf16.mxu0 0
    %4317 = vmatpush1.bf16.msra.mxu0 %v4294
    %4318 = vmatprep.subr.bf16.mxu0 0
    %4319 = vmatpush1.bf16.msra.mxu0 %v4293
    %4320 = vmatprep.subr.bf16.mxu0 0
    %4321 = vmatpush2.bf16.msra.mxu0 0
    %4322 = vmatprep.subr.bf16.mxu0 0
    %4323 = vmatpush2.bf16.msra.mxu0 0
    %4324 = vmatprep.subr.bf16.mxu0 0
    %4325 = vmatpush2.bf16.msra.mxu0 0
    %4326 = vmatprep.subr.bf16.mxu0 0
    %4327 = vmatpush2.bf16.msra.mxu0 0
    %4328 = vmatprep.subr.bf16.mxu0 0
    %4329 = vmatpush2.bf16.msra.mxu0 0
    %4330 = vmatprep.subr.bf16.mxu0 0
    %4331 = vmatpush2.bf16.msra.mxu0 0
    %4332 = vmatprep.subr.bf16.mxu0 0
    %4333 = vmatpush2.bf16.msra.mxu0 0
    %4334 = vmatprep.subr.bf16.mxu0 0
    %4335 = vmatpush2.bf16.msra.mxu0 0
    %4336 = vmatprep.mubr.bf16.mxu0 0
    %4337 = vmatmul.mubr.bf16.gmra.mxu0 %v4302
    %v4338 = vpop.f32.mrf.mxu0
    %v4339 = vadd.f32 %v4275, %v4338
    %v4340 = vpop.f32.mrf.mxu0
    %v4341 = vpop.f32.mrf.mxu0
    %v4342 = vadd.f32 %v4275, %v4341
    %v4343 = vpop.f32.mrf.mxu0
    %4344 = vdwg.mxu0
    %v4345 = vadd.f32 %v4185, %v4339
    %v4346 = vadd.f32 %v4186, %v4342
    %s4347 = scalar_lea.vmem %s18, 1
    %v4348 = vld [vmem:[%s4347] sm:$0x1]
    %s4349 = scalar_lea.vmem %s19, 1
    %v4350 = vld [vmem:[%s4349] sm:$0x1]
    %v4351 = vsel %vm188, %v4345, 0.0
    %4352 = vadd.xlane.f32.xlu0 %v4351
    %v4353 = vpop.xlane.xlu0 %4352
    %v4354 = vsel %vm188, %v4346, 0.0
    %4355 = vadd.xlane.f32.xlu0 %v4354
    %v4356 = vpop.xlane.xlu0 %4355
    %v4357 = vmul.f32 %v4353, %v2035
    %v4358 = vmul.f32 %v4356, %v2035
    %v4359 = vsub.f32 %v4345, %v4357
    %v4360 = vsub.f32 %v4346, %v4358
    %v4361 = vmul.f32 %v4359, %v4359
    %v4362 = vmul.f32 %v4360, %v4360
    %v4363 = vsel %vm188, %v4361, 0.0
    %4364 = vadd.xlane.f32.xlu0 %v4363
    %v4365 = vpop.xlane.xlu0 %4364
    %v4366 = vsel %vm188, %v4362, 0.0
    %4367 = vadd.xlane.f32.xlu0 %v4366
    %v4368 = vpop.xlane.xlu0 %4367
    %v4369 = vmul.f32 %v4365, %v2035
    %v4370 = vmul.f32 %v4368, %v2035
    %v4371 = vadd.f32 %v4369, 1e-05
    %v4372 = vadd.f32 %v4370, 1e-05
    %v4373 = vrsqrt.pop %v4371
    %v4374 = vrsqrt.pop %v4372
    %v4375 = vmul.f32 %v4359, %v4373
    %v4376 = vmul.f32 %v4360, %v4374
    %v4378 = vlaneseq
    %v4379 = vshrl.u32 %v4378, 7
    %v4380 = vsub.s32 0, %v4379
    %v4381 = vrot.slane %v4348, %v4380
    %v4383 = vmul.f32 %v4375, %v4381
    %v4384 = vmul.f32 %v4376, %v4381
    %v4386 = vlaneseq
    %v4387 = vshrl.u32 %v4386, 7
    %v4388 = vsub.s32 0, %v4387
    %v4389 = vrot.slane %v4350, %v4388
    %v4391 = vadd.f32 %v4383, %v4389
    %v4392 = vadd.f32 %v4384, %v4389
    %v4393 = vsel %vm188, %v4391, 0.0
    %v4394 = vrot.slane %v4393, 4
    %v4395 = vadd.f32 %v4393, %v4394
    %v4396 = vrot.slane %v4395, 2
    %v4397 = vadd.f32 %v4395, %v4396
    %v4398 = vrot.slane %v4397, 1
    %v4399 = vadd.f32 %v4397, %v4398
    %v4400 = vsel %vm188, %v4392, 0.0
    %v4401 = vrot.slane %v4400, 4
    %v4402 = vadd.f32 %v4400, %v4401
    %v4403 = vrot.slane %v4402, 2
    %v4404 = vadd.f32 %v4402, %v4403
    %v4405 = vrot.slane %v4404, 1
    %v4406 = vadd.f32 %v4404, %v4405
    %v4407 = vrcp.pop 8.0
    %v4408 = vmul.f32 %v4399, %v4407
    %v4409 = vmul.f32 %v4406, %v4407
    %v4410 = vld [vmem:[%s20] sm:$0xf]
    %v4411 = vld [vmem:[%s20 + $0x4] sm:$0xf]
    %v4412 = vld [vmem:[%s20 + $0x8] sm:$0xf]
    %v4413 = vld [vmem:[%s20 + $0xc] sm:$0xf]
    %v4414 = vpack.c.bf16 %v4408, %v4408
    %v4415 = vpack.c.bf16 %v4409, %v4409
    %v4416 = vld [vmem:[%s21] sm:$0x1]
    %v4418 = vlaneseq
    %v4419 = vshrl.u32 %v4418, 7
    %v4420 = vsub.s32 0, %v4419
    %v4421 = vrot.slane %v4416, %v4420
    %v4425 = vunpack.c.l.b16 %v4414
    %v4426 = vunpack.c.l.b16 %v4415
    %vm4427 = vcmask 1041409
    %v4428 = vsel %vm4427, %v4426, %v4425
    %v4429 = vpack.c.b16 %v4428, %v4428
    %v4434 = vunpack.c.l.b16 %v4410
    %v4435 = vunpack.c.l.b16 %v4411
    %v4436 = vunpack.c.l.b16 %v4412
    %v4437 = vunpack.c.l.b16 %v4413
    %v4438 = vpack.c.b16 %v4435, %v4434
    %v4439 = vpack.c.b16 %v4437, %v4436
    %v4443 = vsel %vm188, %v4429, 0
    %4445 = vmatprep.subr.bf16.mxu0 0
    %4446 = vmatpush1.bf16.msra.mxu0 0
    %4447 = vmatprep.subr.bf16.mxu0 0
    %4448 = vmatpush1.bf16.msra.mxu0 0
    %4449 = vmatprep.subr.bf16.mxu0 0
    %4450 = vmatpush1.bf16.msra.mxu0 0
    %4451 = vmatprep.subr.bf16.mxu0 0
    %4452 = vmatpush1.bf16.msra.mxu0 0
    %4453 = vmatprep.subr.bf16.mxu0 0
    %4454 = vmatpush1.bf16.msra.mxu0 0
    %4455 = vmatprep.subr.bf16.mxu0 0
    %4456 = vmatpush1.bf16.msra.mxu0 0
    %4457 = vmatprep.subr.bf16.mxu0 0
    %4458 = vmatpush1.bf16.msra.mxu0 %v4439
    %4459 = vmatprep.subr.bf16.mxu0 0
    %4460 = vmatpush1.bf16.msra.mxu0 %v4438
    %4461 = vmatprep.subr.bf16.mxu0 0
    %4462 = vmatpush2.bf16.msra.mxu0 0
    %4463 = vmatprep.subr.bf16.mxu0 0
    %4464 = vmatpush2.bf16.msra.mxu0 0
    %4465 = vmatprep.subr.bf16.mxu0 0
    %4466 = vmatpush2.bf16.msra.mxu0 0
    %4467 = vmatprep.subr.bf16.mxu0 0
    %4468 = vmatpush2.bf16.msra.mxu0 0
    %4469 = vmatprep.subr.bf16.mxu0 0
    %4470 = vmatpush2.bf16.msra.mxu0 0
    %4471 = vmatprep.subr.bf16.mxu0 0
    %4472 = vmatpush2.bf16.msra.mxu0 0
    %4473 = vmatprep.subr.bf16.mxu0 0
    %4474 = vmatpush2.bf16.msra.mxu0 0
    %4475 = vmatprep.subr.bf16.mxu0 0
    %4476 = vmatpush2.bf16.msra.mxu0 0
    %4477 = vmatprep.mubr.bf16.mxu0 0
    %4478 = vmatmul.mubr.bf16.gmra.mxu0 %v4443
    %v4479 = vpop.f32.mrf.mxu0
    %v4480 = vadd.f32 %v4421, %v4479
    %v4481 = vpop.f32.mrf.mxu0
    %v4482 = vpop.f32.mrf.mxu0
    %v4483 = vpop.f32.mrf.mxu0
    %4484 = vdwg.mxu0
    %v4485 = vld [vmem:[%s22] sm:$0x1]
    %v4486 = vld [vmem:[%s23] sm:$0x1]
    %vm4487 = vcmask 254976
    %v4488 = vsel %vm4487, %v4480, 0.0
    %4489 = vadd.xlane.f32.xlu0 %v4488
    %v4490 = vpop.xlane.xlu0 %4489
    %v4491 = vmul.f32 %v4490, %v2035
    %v4492 = vsub.f32 %v4480, %v4491
    %v4493 = vmul.f32 %v4492, %v4492
    %v4494 = vsel %vm4487, %v4493, 0.0
    %4495 = vadd.xlane.f32.xlu0 %v4494
    %v4496 = vpop.xlane.xlu0 %4495
    %v4497 = vmul.f32 %v4496, %v2035
    %v4498 = vadd.f32 %v4497, 1e-05
    %v4499 = vrsqrt.pop %v4498
    %v4500 = vmul.f32 %v4492, %v4499
    %v4502 = vlaneseq
    %v4503 = vshrl.u32 %v4502, 7
    %v4504 = vsub.s32 0, %v4503
    %v4505 = vrot.slane %v4485, %v4504
    %v4507 = vmul.f32 %v4500, %v4505
    %v4509 = vlaneseq
    %v4510 = vshrl.u32 %v4509, 7
    %v4511 = vsub.s32 0, %v4510
    %v4512 = vrot.slane %v4486, %v4511
    %v4514 = vadd.f32 %v4507, %v4512
    %v4515 = vmax.f32 %v4514, 0.0
    %v4516 = vld [vmem:[%s24] sm:$0xf]
    %v4517 = vld [vmem:[%s24 + $0x4] sm:$0xf]
    %v4518 = vld [vmem:[%s24 + $0x8] sm:$0xf]
    %v4519 = vld [vmem:[%s24 + $0xc] sm:$0xf]
    %v4520 = vpack.c.bf16 %v4515, %v4515
    %v4521 = vld [vmem:[%s25] sm:$0x1]
    %v4523 = vlaneseq
    %v4524 = vshrl.u32 %v4523, 7
    %v4525 = vsub.s32 0, %v4524
    %v4526 = vrot.slane %v4521, %v4525
    %v4532 = vunpack.c.l.b16 %v4516
    %v4533 = vunpack.c.l.b16 %v4517
    %v4534 = vunpack.c.l.b16 %v4518
    %v4535 = vunpack.c.l.b16 %v4519
    %v4536 = vpack.c.b16 %v4533, %v4532
    %v4537 = vpack.c.b16 %v4535, %v4534
    %v4541 = vsel %vm188, %v4520, 0
    %4543 = vmatprep.subr.bf16.mxu0 0
    %4544 = vmatpush1.bf16.msra.mxu0 0
    %4545 = vmatprep.subr.bf16.mxu0 0
    %4546 = vmatpush1.bf16.msra.mxu0 0
    %4547 = vmatprep.subr.bf16.mxu0 0
    %4548 = vmatpush1.bf16.msra.mxu0 0
    %4549 = vmatprep.subr.bf16.mxu0 0
    %4550 = vmatpush1.bf16.msra.mxu0 0
    %4551 = vmatprep.subr.bf16.mxu0 0
    %4552 = vmatpush1.bf16.msra.mxu0 0
    %4553 = vmatprep.subr.bf16.mxu0 0
    %4554 = vmatpush1.bf16.msra.mxu0 0
    %4555 = vmatprep.subr.bf16.mxu0 0
    %4556 = vmatpush1.bf16.msra.mxu0 %v4537
    %4557 = vmatprep.subr.bf16.mxu0 0
    %4558 = vmatpush1.bf16.msra.mxu0 %v4536
    %4559 = vmatprep.subr.bf16.mxu0 0
    %4560 = vmatpush2.bf16.msra.mxu0 0
    %4561 = vmatprep.subr.bf16.mxu0 0
    %4562 = vmatpush2.bf16.msra.mxu0 0
    %4563 = vmatprep.subr.bf16.mxu0 0
    %4564 = vmatpush2.bf16.msra.mxu0 0
    %4565 = vmatprep.subr.bf16.mxu0 0
    %4566 = vmatpush2.bf16.msra.mxu0 0
    %4567 = vmatprep.subr.bf16.mxu0 0
    %4568 = vmatpush2.bf16.msra.mxu0 0
    %4569 = vmatprep.subr.bf16.mxu0 0
    %4570 = vmatpush2.bf16.msra.mxu0 0
    %4571 = vmatprep.subr.bf16.mxu0 0
    %4572 = vmatpush2.bf16.msra.mxu0 0
    %4573 = vmatprep.subr.bf16.mxu0 0
    %4574 = vmatpush2.bf16.msra.mxu0 0
    %4575 = vmatprep.mubr.bf16.mxu0 0
    %4576 = vmatmul.mubr.bf16.gmra.mxu0 %v4541
    %v4577 = vpop.f32.mrf.mxu0
    %v4578 = vadd.f32 %v4526, %v4577
    %v4579 = vpop.f32.mrf.mxu0
    %v4580 = vpop.f32.mrf.mxu0
    %v4581 = vpop.f32.mrf.mxu0
    %4582 = vdwg.mxu0
    %4583 = vst [vmem:[#allocation2] sm:$0x3] %v4578
    // Predicated region
    $region106: #{tpu_custom_call.1} parent=1 // pred_check
      _
    $region107: #{tpu_custom_call.1} parent=1 // pred_check_branch
      %4585 = sbr.rel (0) target = $region109
    $region108: #{tpu_custom_call.1} parent=1 // pred_region
      %s4587 = ssub.s32 32, 32
      %4588 = vsyncadd [#allocation3], %s4587
      %s4590 = sshll.u32 [#allocation2], 4
      %s4591 = int_to_ptr.vmem [resolvable:$true] %s4590
      %4593 = dma.vmem_to_hbm [thread:$0]  %s4591, 32, %s26, [#allocation3]
    $region109: #{tpu_custom_call.1} parent=1 // pred_fallthru
      _
    // Predicated region
    $region110: #{tpu_custom_call.1} parent=1 // pred_check
      _
    $region111: #{tpu_custom_call.1} parent=1 // pred_check_branch
      %4595 = sbr.rel (0) target = $region113
    $region112: #{tpu_custom_call.1} parent=1 // pred_region
      %4596 = dma.done [#allocation3], 32
    $region113: #{tpu_custom_call.1} parent=1 // pred_fallthru
      _
    %4597 = vsyncpa [#allocation3], 1

</llo_original>
